<compile_context>
chip_gen: v7x
topology: tpu7x:2x2x1
jax: 0.10.0
libtpu: 0.0.40
codegen_flags: <defaults>
</compile_context>

<pallas_src>
import jax
import jax.numpy as jnp
from jax.experimental import pallas as pl
from jax.experimental.pallas import tpu as pltpu

# ----------------------- configuration (small shapes) -----------------------
B = 2            # batch
INPUT_LEN = 8    # L
NUM_ID = 16      # N  (number of variables / graph nodes)
OUT_LEN = 6      # forecast horizon
IN_SIZE = 4      # C  (input feature channels)
EMB_SIZE = 32    # E
GRAP_SIZE = 8    # node embedding size for interpolation attention
LAYER_NUM = 2
DROPOUT = 0.1    # identity at inference

OPAD = 128                    # lane-dense output / packed-weight width
W_ROW_WG1 = 0                 # packed-weight row offsets (16-row aligned for bf16)
W_ROW_WG2 = 16
W_ROW_DEC = 48
W_ROWS = 112


# ------------------------------ fused Pallas kernel ------------------------------
def ginar_fused_kernel(x_ref,          # (L*B*N, C)        bf16
                       m_ref,          # (2, LBN, LBN)     bf16   kron(I_{L*B}, adj@A_ia)
                       w_ref,          # (W_ROWS, 128)     bf16   [Wg1 | Wg2 | w_dec] packed
                       b_ref,          # (LBN+8, 128)      f32    [beff1 | beff2 | b_dec] packed
                       o_ref,          # (B*N, 128)        f32    (lane-dense, sliced outside)
                       v_ref,          # scratch (LBN, 2E) f32
                       h1_ref):        # scratch (LBN, E)  f32
    L, BN, E, C = INPUT_LEN, B * NUM_ID, EMB_SIZE, IN_SIZE
    LBN = L * BN
    K = LAYER_NUM * E
    TE = 2 * E
    f32 = jnp.float32
    bf16 = jnp.bfloat16

    # -------- layer 1: pre-gate matmuls batched over all L time steps --------
    u1 = jnp.dot(x_ref[...], w_ref[W_ROW_WG1:W_ROW_WG1 + C, 0:TE],
                 preferred_element_type=f32)                              # (LBN, 2E)
    v_ref[...] = (jnp.dot(m_ref[0], u1.astype(bf16), preferred_element_type=f32)
                  + b_ref[0:LBN, 0:TE])

    # purely elementwise recurrence (VPU/EUP); h written straight to scratch
    c = jnp.zeros((BN, E), f32)
    for j in range(L):
        v = v_ref[j * BN:(j + 1) * BN, :]
        f = jax.nn.sigmoid(v[:, :E])
        g = jnp.tanh(v[:, E:])
        c = f * c + (1.0 - f) * g
        h1_ref[j * BN:(j + 1) * BN, :] = f * jnp.tanh(c)

    # -------- layer 2 (same structure, input = stacked layer-1 h) --------
    u2 = jnp.dot(h1_ref[...].astype(bf16), w_ref[W_ROW_WG2:W_ROW_WG2 + E, 0:TE],
                 preferred_element_type=f32)                              # (LBN, 2E)
    v_ref[...] = (jnp.dot(m_ref[1], u2.astype(bf16), preferred_element_type=f32)
                  + b_ref[0:LBN, TE:2 * TE])

    c = jnp.zeros((BN, E), f32)
    h2_last = jnp.zeros((BN, E), f32)
    for j in range(L):
        v = v_ref[j * BN:(j + 1) * BN, :]
        f = jax.nn.sigmoid(v[:, :E])
        g = jnp.tanh(v[:, E:])
        c = f * c + (1.0 - f) * g
        if j == L - 1:                       # only the last h feeds the decoder
            h2_last = f * jnp.tanh(c)

    # -------- folded decoder (lane-dense: 128 output lanes, unmasked store) --------
    final = jnp.concatenate([h1_ref[(L - 1) * BN:LBN, :], h2_last], axis=-1)  # (BN, 2E)
    o_ref[...] = (jnp.dot(final.astype(bf16), w_ref[W_ROW_DEC:W_ROW_DEC + K, :],
                          preferred_element_type=f32)
                  + b_ref[LBN:LBN + 1, :])


# ------------------------------- full forward --------------------------------
def ginar_forward(history_data, params, adj):
    Bb, L, N, C = history_data.shape
    E, O = EMB_SIZE, OUT_LEN
    BN = Bb * N
    LBN = L * BN
    K = LAYER_NUM * E
    TE = 2 * E

    # time-major, batch folded onto sublanes: (L*B*N, C)
    x_flat = jnp.transpose(history_data, (1, 0, 2, 3)).reshape(LBN, C)
    x_flat = x_flat.astype(jnp.float32)

    adj_f = adj.astype(jnp.float32)
    rowsum = jnp.sum(adj_f, axis=-1, keepdims=True)           # (N, 1)
    eye_lb = jnp.eye(L * Bb, dtype=jnp.float32)

    def fold_layer(p):
        # v = adj @ (A_ia @ x @ W + b) @ G  ==  (adj@A_ia) @ x @ (W@G) + rowsum(adj) (x) (b@G)
        m_node = adj_f @ p['A_ia']                             # (N, N)
        m = jnp.kron(eye_lb, m_node)                           # (LBN, LBN) block-diag over (l, b)
        wg = jnp.concatenate([p['W_f'] @ p['G_f'],
                              p['W_g'] @ p['G_g']], axis=1)    # (in, 2E)
        beff_node = jnp.concatenate([rowsum @ (p['b_f'] @ p['G_f']),
                                     rowsum @ (p['b_g'] @ p['G_g'])], axis=1)  # (N, 2E)
        beff = jnp.tile(beff_node, (L * Bb, 1))                # (LBN, 2E)
        return m, wg, beff

    m1, wg1, beff1 = fold_layer(params['first'])
    m2, wg2, beff2 = fold_layer(params['other'])
    m_stack = jnp.stack([m1, m2], axis=0)                      # (2, LBN, LBN)

    # Fold decoder Conv2d(layer_num->out_len, kernel (1,E)) and the 1x1 output
    # Conv2d into a single affine map: y = final @ w_dec + b_dec
    wd = params['dec_w'].reshape(O, K).T                       # (K, O)
    bd = params['dec_b'].reshape(1, O)
    wo = params['out_w'].reshape(O, O).T                       # (O, O)
    bo = params['out_b'].reshape(1, O)
    w_dec = wd @ wo                                            # (K, O)
    b_dec = bd @ wo + bo                                       # (1, O)

    # ---- pack weights into one lane-dense bf16 buffer (tile-aligned rows) ----
    wpack = jnp.zeros((W_ROWS, OPAD), jnp.float32)
    wpack = wpack.at[W_ROW_WG1:W_ROW_WG1 + C, 0:TE].set(wg1)
    wpack = wpack.at[W_ROW_WG2:W_ROW_WG2 + E, 0:TE].set(wg2)
    wpack = wpack.at[W_ROW_DEC:W_ROW_DEC + K, 0:O].set(w_dec)  # cols O:128 stay zero

    # ---- pack biases into one f32 buffer ----
    bpack = jnp.zeros((LBN + 8, OPAD), jnp.float32)
    bpack = bpack.at[0:LBN, 0:TE].set(beff1)
    bpack = bpack.at[0:LBN, TE:2 * TE].set(beff2)
    bpack = bpack.at[LBN, 0:O].set(b_dec[0])

    vmem = pl.BlockSpec(memory_space=pltpu.MemorySpace.VMEM)

    # NOTE(v7x): at these toy shapes a single TensorCore is optimal; if B/N are
    # scaled up, add a leading "parallel" grid axis over sublane blocks of B*N
    # so the second TC participates.
    out = pl.pallas_call(
        ginar_fused_kernel,
        out_shape=jax.ShapeDtypeStruct((BN, OPAD), jnp.float32),
        in_specs=[vmem, vmem, vmem, vmem],
        out_specs=vmem,
        scratch_shapes=[pltpu.VMEM((LBN, TE), jnp.float32),    # per-step gate inputs
                        pltpu.VMEM((LBN, E), jnp.float32)],    # stacked layer-1 h
        cost_estimate=pl.CostEstimate(flops=19_000_000,
                                      transcendentals=50_000,
                                      bytes_accessed=450_000),
    )(x_flat.astype(jnp.bfloat16),
      m_stack.astype(jnp.bfloat16),
      wpack.astype(jnp.bfloat16),
      bpack)

    y = out[:, :O].reshape(Bb, N, O)
    return jnp.transpose(y, (0, 2, 1))[..., None]              # (B, out_len, N, 1)


# -------------------------- pure-JAX reference (same math, f32) --------------------------
def ginar_reference(history_data, params, adj):
    x = jnp.transpose(history_data, (1, 0, 2, 3)).astype(jnp.float32)   # (L, B, N, C)
    finals = []
    for z in range(LAYER_NUM):
        p = params['first'] if z == 0 else params['other']
        c = jnp.zeros((B, NUM_ID, EMB_SIZE), jnp.float32)
        hs = []
        for j in range(INPUT_LEN):
            xt = x[j]
            xm = jnp.einsum('nm,bmc->bnc', p['A_ia'], xt)
            u_f = xm @ p['W_f'] + p['b_f']
            u_g = xm @ p['W_g'] + p['b_g']
            v_f = jnp.einsum('nm,bme->bne', adj, u_f) @ p['G_f']
            v_g = jnp.einsum('nm,bme->bne', adj, u_g) @ p['G_g']
            f = jax.nn.sigmoid(v_f)
            g = jnp.tanh(v_g)
            c = f * c + (1.0 - f) * g
            hs.append(f * jnp.tanh(c))
        x = jnp.stack(hs, axis=0)
        finals.append(hs[-1])
    final = jnp.stack(finals, axis=1)                                    # (B, Z, N, E)
    K = LAYER_NUM * EMB_SIZE
    final_flat = jnp.transpose(final, (0, 2, 1, 3)).reshape(B, NUM_ID, K)
    wd = params['dec_w'].reshape(OUT_LEN, K).T
    bd = params['dec_b'].reshape(1, OUT_LEN)
    wo = params['out_w'].reshape(OUT_LEN, OUT_LEN).T
    bo = params['out_b'].reshape(1, OUT_LEN)
    y = final_flat @ wd + bd
    y = y @ wo + bo
    return jnp.transpose(y, (0, 2, 1))[..., None]


# -------------------------- deterministic parameters --------------------------
def init_cell_params(keys, in_size):
    k_e, k_wf, k_wg, k_gf, k_gg = keys
    e_node = jax.random.normal(k_e, (NUM_ID, GRAP_SIZE), jnp.float32) * 0.5
    a_ia = jax.nn.softmax(jax.nn.relu(e_node @ e_node.T), axis=-1)
    s_in = 1.0 / jnp.sqrt(jnp.float32(in_size))
    s_e = 1.0 / jnp.sqrt(jnp.float32(EMB_SIZE))
    return dict(
        A_ia=a_ia,
        W_f=jax.random.normal(k_wf, (in_size, EMB_SIZE), jnp.float32) * s_in,
        W_g=jax.random.normal(k_wg, (in_size, EMB_SIZE), jnp.float32) * s_in,
        b_f=jnp.zeros((1, EMB_SIZE), jnp.float32),
        b_g=jnp.zeros((1, EMB_SIZE), jnp.float32),
        G_f=jax.random.normal(k_gf, (EMB_SIZE, EMB_SIZE), jnp.float32) * s_e,
        G_g=jax.random.normal(k_gg, (EMB_SIZE, EMB_SIZE), jnp.float32) * s_e,
    )


def init_params(key):
    keys = jax.random.split(key, 12)
    return dict(
        first=init_cell_params(keys[0:5], IN_SIZE),
        other=init_cell_params(keys[5:10], EMB_SIZE),
        dec_w=jax.random.normal(keys[10], (OUT_LEN, LAYER_NUM, 1, EMB_SIZE),
                                jnp.float32) / jnp.sqrt(jnp.float32(LAYER_NUM * EMB_SIZE)),
        dec_b=jnp.zeros((OUT_LEN,), jnp.float32),
        out_w=jax.random.normal(keys[11], (OUT_LEN, OUT_LEN, 1, 1),
                                jnp.float32) / jnp.sqrt(jnp.float32(OUT_LEN)),
        out_b=jnp.zeros((OUT_LEN,), jnp.float32),
    )


# ------------------------------------ main ------------------------------------
if __name__ == "__main__":
    key = jax.random.PRNGKey(0)
    k_data, k_param, k_adj = jax.random.split(key, 3)

    history_data = jax.random.normal(
        k_data, (B, INPUT_LEN, NUM_ID, IN_SIZE), jnp.float32)
    params = init_params(k_param)

    adj_raw = jnp.abs(jax.random.normal(k_adj, (NUM_ID, NUM_ID), jnp.float32)) + 0.1
    adj = adj_raw / jnp.sum(adj_raw, axis=-1, keepdims=True)   # row-normalized adj_mx

    fwd = jax.jit(lambda h: ginar_forward(h, params, adj))
    out = jax.block_until_ready(fwd(history_data))

    assert out.shape == (B, OUT_LEN, NUM_ID, 1), out.shape
    assert bool(jnp.all(jnp.isfinite(out)))

    ref = ginar_reference(history_data, params, adj)
    max_err = float(jnp.max(jnp.abs(out - ref)))
    # bf16 MXU operands (f32 accumulation) vs. pure-f32 reference -> 3e-2 tolerance
    assert max_err < 3e-2, f"mismatch vs reference: {max_err}"

    print("KERNEL_OK")
</pallas_src>

<mosaic_0001>
module attributes {stable_mosaic.version = 11 : i64} {
  func.func @ginar_fused_kernel(%arg0: memref<256x4xbf16, #tpu.memory_space<vmem>>, %arg1: memref<2x256x256xbf16, #tpu.memory_space<vmem>>, %arg2: memref<112x128xbf16, #tpu.memory_space<vmem>>, %arg3: memref<264x128xf32, #tpu.memory_space<vmem>>, %arg4: memref<32x128xf32, #tpu.memory_space<vmem>>, %arg5: memref<256x64xf32, #tpu.memory_space<vmem>>, %arg6: memref<256x32xf32, #tpu.memory_space<vmem>>) attributes {dimension_semantics = [], scalar_prefetch = 0 : i64, scratch_operands = 2 : i64, tpu.core_type = #tpu.core_type<tc>} {
    %c0 = arith.constant 0 : index
    %c0_0 = arith.constant 0 : index
    %0 = vector.load %arg0[%c0, %c0_0] : memref<256x4xbf16, #tpu.memory_space<vmem>>, vector<256x4xbf16>
    %c0_1 = arith.constant 0 : index
    %c0_2 = arith.constant 0 : index
    %1 = vector.load %arg2[%c0_1, %c0_2] : memref<112x128xbf16, #tpu.memory_space<vmem>>, vector<4x64xbf16>
    %cst = arith.constant dense<0.000000e+00> : vector<256x64xf32>
    %2 = tpu.matmul %0, %1, %cst {dimension_numbers = #tpu.dot_dimension_numbers<[1], [0], [0], [1], [0, 0, 1, 1], [], []>} : vector<256x4xbf16>, vector<4x64xbf16>, vector<256x64xf32> -> vector<256x64xf32>
    %c0_3 = arith.constant 0 : index
    %c0_4 = arith.constant 0 : index
    %c0_5 = arith.constant 0 : index
    %3 = vector.load %arg1[%c0_3, %c0_4, %c0_5] : memref<2x256x256xbf16, #tpu.memory_space<vmem>>, vector<1x256x256xbf16>
    %4 = vector.shape_cast %3 : vector<1x256x256xbf16> to vector<256x256xbf16>
    %5 = arith.truncf %2 : vector<256x64xf32> to vector<256x64xbf16>
    %cst_6 = arith.constant dense<0.000000e+00> : vector<256x64xf32>
    %6 = tpu.matmul %4, %5, %cst_6 {dimension_numbers = #tpu.dot_dimension_numbers<[1], [0], [0], [1], [0, 0, 1, 1], [], []>} : vector<256x256xbf16>, vector<256x64xbf16>, vector<256x64xf32> -> vector<256x64xf32>
    %c0_7 = arith.constant 0 : index
    %c0_8 = arith.constant 0 : index
    %7 = vector.load %arg3[%c0_7, %c0_8] : memref<264x128xf32, #tpu.memory_space<vmem>>, vector<256x64xf32>
    %8 = arith.addf %6, %7 : vector<256x64xf32>
    %c0_9 = arith.constant 0 : index
    %c0_10 = arith.constant 0 : index
    %9 = vector.load %arg5[%c0_9, %c0_10] : memref<256x64xf32, #tpu.memory_space<vmem>>, vector<256x64xf32>
    tpu.vector_store %arg5[%c0_9, %c0_10], %8 {strides = array<i32>} : memref<256x64xf32, #tpu.memory_space<vmem>>, vector<256x64xf32>,
    %cst_11 = arith.constant 0.000000e+00 : f32
    %10 = vector.broadcast %cst_11 : f32 to vector<32x32xf32>
    %c0_12 = arith.constant 0 : index
    %c0_13 = arith.constant 0 : index
    %11 = vector.load %arg5[%c0_12, %c0_13] : memref<256x64xf32, #tpu.memory_space<vmem>>, vector<32x64xf32>
    %12 = vector.extract_strided_slice %11 {offsets = [0, 0], sizes = [32, 32], strides = [1, 1]} : vector<32x64xf32> to vector<32x32xf32>
    %13 = arith.negf %12 : vector<32x32xf32>
    %14 = math.exp %13 : vector<32x32xf32>
    %cst_14 = arith.constant 1.000000e+00 : f32
    %15 = vector.broadcast %cst_14 : f32 to vector<32x32xf32>
    %16 = arith.addf %15, %14 : vector<32x32xf32>
    %17 = arith.divf %15, %16 : vector<32x32xf32>
    %18 = vector.extract_strided_slice %11 {offsets = [0, 32], sizes = [32, 32], strides = [1, 1]} : vector<32x64xf32> to vector<32x32xf32>
    %19 = math.tanh %18 : vector<32x32xf32>
    %20 = arith.mulf %17, %10 : vector<32x32xf32>
    %cst_15 = arith.constant 1.000000e+00 : f32
    %21 = vector.broadcast %cst_15 : f32 to vector<32x32xf32>
    %22 = arith.subf %21, %17 : vector<32x32xf32>
    %23 = arith.mulf %22, %19 : vector<32x32xf32>
    %24 = arith.addf %20, %23 : vector<32x32xf32>
    %25 = math.tanh %24 : vector<32x32xf32>
    %26 = arith.mulf %17, %25 : vector<32x32xf32>
    %c0_16 = arith.constant 0 : index
    %c0_17 = arith.constant 0 : index
    %27 = vector.load %arg6[%c0_16, %c0_17] : memref<256x32xf32, #tpu.memory_space<vmem>>, vector<32x32xf32>
    tpu.vector_store %arg6[%c0_16, %c0_17], %26 {strides = array<i32>} : memref<256x32xf32, #tpu.memory_space<vmem>>, vector<32x32xf32>,
    %c32 = arith.constant 32 : index
    %c0_18 = arith.constant 0 : index
    %28 = vector.load %arg5[%c32, %c0_18] : memref<256x64xf32, #tpu.memory_space<vmem>>, vector<32x64xf32>
    %29 = vector.extract_strided_slice %28 {offsets = [0, 0], sizes = [32, 32], strides = [1, 1]} : vector<32x64xf32> to vector<32x32xf32>
    %30 = arith.negf %29 : vector<32x32xf32>
    %31 = math.exp %30 : vector<32x32xf32>
    %cst_19 = arith.constant 1.000000e+00 : f32
    %32 = vector.broadcast %cst_19 : f32 to vector<32x32xf32>
    %33 = arith.addf %32, %31 : vector<32x32xf32>
    %34 = arith.divf %32, %33 : vector<32x32xf32>
    %35 = vector.extract_strided_slice %28 {offsets = [0, 32], sizes = [32, 32], strides = [1, 1]} : vector<32x64xf32> to vector<32x32xf32>
    %36 = math.tanh %35 : vector<32x32xf32>
    %37 = arith.mulf %34, %24 : vector<32x32xf32>
    %cst_20 = arith.constant 1.000000e+00 : f32
    %38 = vector.broadcast %cst_20 : f32 to vector<32x32xf32>
    %39 = arith.subf %38, %34 : vector<32x32xf32>
    %40 = arith.mulf %39, %36 : vector<32x32xf32>
    %41 = arith.addf %37, %40 : vector<32x32xf32>
    %42 = math.tanh %41 : vector<32x32xf32>
    %43 = arith.mulf %34, %42 : vector<32x32xf32>
    %c32_21 = arith.constant 32 : index
    %c0_22 = arith.constant 0 : index
    %44 = vector.load %arg6[%c32_21, %c0_22] : memref<256x32xf32, #tpu.memory_space<vmem>>, vector<32x32xf32>
    tpu.vector_store %arg6[%c32_21, %c0_22], %43 {strides = array<i32>} : memref<256x32xf32, #tpu.memory_space<vmem>>, vector<32x32xf32>,
    %c64 = arith.constant 64 : index
    %c0_23 = arith.constant 0 : index
    %45 = vector.load %arg5[%c64, %c0_23] : memref<256x64xf32, #tpu.memory_space<vmem>>, vector<32x64xf32>
    %46 = vector.extract_strided_slice %45 {offsets = [0, 0], sizes = [32, 32], strides = [1, 1]} : vector<32x64xf32> to vector<32x32xf32>
    %47 = arith.negf %46 : vector<32x32xf32>
    %48 = math.exp %47 : vector<32x32xf32>
    %cst_24 = arith.constant 1.000000e+00 : f32
    %49 = vector.broadcast %cst_24 : f32 to vector<32x32xf32>
    %50 = arith.addf %49, %48 : vector<32x32xf32>
    %51 = arith.divf %49, %50 : vector<32x32xf32>
    %52 = vector.extract_strided_slice %45 {offsets = [0, 32], sizes = [32, 32], strides = [1, 1]} : vector<32x64xf32> to vector<32x32xf32>
    %53 = math.tanh %52 : vector<32x32xf32>
    %54 = arith.mulf %51, %41 : vector<32x32xf32>
    %cst_25 = arith.constant 1.000000e+00 : f32
    %55 = vector.broadcast %cst_25 : f32 to vector<32x32xf32>
    %56 = arith.subf %55, %51 : vector<32x32xf32>
    %57 = arith.mulf %56, %53 : vector<32x32xf32>
    %58 = arith.addf %54, %57 : vector<32x32xf32>
    %59 = math.tanh %58 : vector<32x32xf32>
    %60 = arith.mulf %51, %59 : vector<32x32xf32>
    %c64_26 = arith.constant 64 : index
    %c0_27 = arith.constant 0 : index
    %61 = vector.load %arg6[%c64_26, %c0_27] : memref<256x32xf32, #tpu.memory_space<vmem>>, vector<32x32xf32>
    tpu.vector_store %arg6[%c64_26, %c0_27], %60 {strides = array<i32>} : memref<256x32xf32, #tpu.memory_space<vmem>>, vector<32x32xf32>,
    %c96 = arith.constant 96 : index
    %c0_28 = arith.constant 0 : index
    %62 = vector.load %arg5[%c96, %c0_28] : memref<256x64xf32, #tpu.memory_space<vmem>>, vector<32x64xf32>
    %63 = vector.extract_strided_slice %62 {offsets = [0, 0], sizes = [32, 32], strides = [1, 1]} : vector<32x64xf32> to vector<32x32xf32>
    %64 = arith.negf %63 : vector<32x32xf32>
    %65 = math.exp %64 : vector<32x32xf32>
    %cst_29 = arith.constant 1.000000e+00 : f32
    %66 = vector.broadcast %cst_29 : f32 to vector<32x32xf32>
    %67 = arith.addf %66, %65 : vector<32x32xf32>
    %68 = arith.divf %66, %67 : vector<32x32xf32>
    %69 = vector.extract_strided_slice %62 {offsets = [0, 32], sizes = [32, 32], strides = [1, 1]} : vector<32x64xf32> to vector<32x32xf32>
    %70 = math.tanh %69 : vector<32x32xf32>
    %71 = arith.mulf %68, %58 : vector<32x32xf32>
    %cst_30 = arith.constant 1.000000e+00 : f32
    %72 = vector.broadcast %cst_30 : f32 to vector<32x32xf32>
    %73 = arith.subf %72, %68 : vector<32x32xf32>
    %74 = arith.mulf %73, %70 : vector<32x32xf32>
    %75 = arith.addf %71, %74 : vector<32x32xf32>
    %76 = math.tanh %75 : vector<32x32xf32>
    %77 = arith.mulf %68, %76 : vector<32x32xf32>
    %c96_31 = arith.constant 96 : index
    %c0_32 = arith.constant 0 : index
    %78 = vector.load %arg6[%c96_31, %c0_32] : memref<256x32xf32, #tpu.memory_space<vmem>>, vector<32x32xf32>
    tpu.vector_store %arg6[%c96_31, %c0_32], %77 {strides = array<i32>} : memref<256x32xf32, #tpu.memory_space<vmem>>, vector<32x32xf32>,
    %c128 = arith.constant 128 : index
    %c0_33 = arith.constant 0 : index
    %79 = vector.load %arg5[%c128, %c0_33] : memref<256x64xf32, #tpu.memory_space<vmem>>, vector<32x64xf32>
    %80 = vector.extract_strided_slice %79 {offsets = [0, 0], sizes = [32, 32], strides = [1, 1]} : vector<32x64xf32> to vector<32x32xf32>
    %81 = arith.negf %80 : vector<32x32xf32>
    %82 = math.exp %81 : vector<32x32xf32>
    %cst_34 = arith.constant 1.000000e+00 : f32
    %83 = vector.broadcast %cst_34 : f32 to vector<32x32xf32>
    %84 = arith.addf %83, %82 : vector<32x32xf32>
    %85 = arith.divf %83, %84 : vector<32x32xf32>
    %86 = vector.extract_strided_slice %79 {offsets = [0, 32], sizes = [32, 32], strides = [1, 1]} : vector<32x64xf32> to vector<32x32xf32>
    %87 = math.tanh %86 : vector<32x32xf32>
    %88 = arith.mulf %85, %75 : vector<32x32xf32>
    %cst_35 = arith.constant 1.000000e+00 : f32
    %89 = vector.broadcast %cst_35 : f32 to vector<32x32xf32>
    %90 = arith.subf %89, %85 : vector<32x32xf32>
    %91 = arith.mulf %90, %87 : vector<32x32xf32>
    %92 = arith.addf %88, %91 : vector<32x32xf32>
    %93 = math.tanh %92 : vector<32x32xf32>
    %94 = arith.mulf %85, %93 : vector<32x32xf32>
    %c128_36 = arith.constant 128 : index
    %c0_37 = arith.constant 0 : index
    %95 = vector.load %arg6[%c128_36, %c0_37] : memref<256x32xf32, #tpu.memory_space<vmem>>, vector<32x32xf32>
    tpu.vector_store %arg6[%c128_36, %c0_37], %94 {strides = array<i32>} : memref<256x32xf32, #tpu.memory_space<vmem>>, vector<32x32xf32>,
    %c160 = arith.constant 160 : index
    %c0_38 = arith.constant 0 : index
    %96 = vector.load %arg5[%c160, %c0_38] : memref<256x64xf32, #tpu.memory_space<vmem>>, vector<32x64xf32>
    %97 = vector.extract_strided_slice %96 {offsets = [0, 0], sizes = [32, 32], strides = [1, 1]} : vector<32x64xf32> to vector<32x32xf32>
    %98 = arith.negf %97 : vector<32x32xf32>
    %99 = math.exp %98 : vector<32x32xf32>
    %cst_39 = arith.constant 1.000000e+00 : f32
    %100 = vector.broadcast %cst_39 : f32 to vector<32x32xf32>
    %101 = arith.addf %100, %99 : vector<32x32xf32>
    %102 = arith.divf %100, %101 : vector<32x32xf32>
    %103 = vector.extract_strided_slice %96 {offsets = [0, 32], sizes = [32, 32], strides = [1, 1]} : vector<32x64xf32> to vector<32x32xf32>
    %104 = math.tanh %103 : vector<32x32xf32>
    %105 = arith.mulf %102, %92 : vector<32x32xf32>
    %cst_40 = arith.constant 1.000000e+00 : f32
    %106 = vector.broadcast %cst_40 : f32 to vector<32x32xf32>
    %107 = arith.subf %106, %102 : vector<32x32xf32>
    %108 = arith.mulf %107, %104 : vector<32x32xf32>
    %109 = arith.addf %105, %108 : vector<32x32xf32>
    %110 = math.tanh %109 : vector<32x32xf32>
    %111 = arith.mulf %102, %110 : vector<32x32xf32>
    %c160_41 = arith.constant 160 : index
    %c0_42 = arith.constant 0 : index
    %112 = vector.load %arg6[%c160_41, %c0_42] : memref<256x32xf32, #tpu.memory_space<vmem>>, vector<32x32xf32>
    tpu.vector_store %arg6[%c160_41, %c0_42], %111 {strides = array<i32>} : memref<256x32xf32, #tpu.memory_space<vmem>>, vector<32x32xf32>,
    %c192 = arith.constant 192 : index
    %c0_43 = arith.constant 0 : index
    %113 = vector.load %arg5[%c192, %c0_43] : memref<256x64xf32, #tpu.memory_space<vmem>>, vector<32x64xf32>
    %114 = vector.extract_strided_slice %113 {offsets = [0, 0], sizes = [32, 32], strides = [1, 1]} : vector<32x64xf32> to vector<32x32xf32>
    %115 = arith.negf %114 : vector<32x32xf32>
    %116 = math.exp %115 : vector<32x32xf32>
    %cst_44 = arith.constant 1.000000e+00 : f32
    %117 = vector.broadcast %cst_44 : f32 to vector<32x32xf32>
    %118 = arith.addf %117, %116 : vector<32x32xf32>
    %119 = arith.divf %117, %118 : vector<32x32xf32>
    %120 = vector.extract_strided_slice %113 {offsets = [0, 32], sizes = [32, 32], strides = [1, 1]} : vector<32x64xf32> to vector<32x32xf32>
    %121 = math.tanh %120 : vector<32x32xf32>
    %122 = arith.mulf %119, %109 : vector<32x32xf32>
    %cst_45 = arith.constant 1.000000e+00 : f32
    %123 = vector.broadcast %cst_45 : f32 to vector<32x32xf32>
    %124 = arith.subf %123, %119 : vector<32x32xf32>
    %125 = arith.mulf %124, %121 : vector<32x32xf32>
    %126 = arith.addf %122, %125 : vector<32x32xf32>
    %127 = math.tanh %126 : vector<32x32xf32>
    %128 = arith.mulf %119, %127 : vector<32x32xf32>
    %c192_46 = arith.constant 192 : index
    %c0_47 = arith.constant 0 : index
    %129 = vector.load %arg6[%c192_46, %c0_47] : memref<256x32xf32, #tpu.memory_space<vmem>>, vector<32x32xf32>
    tpu.vector_store %arg6[%c192_46, %c0_47], %128 {strides = array<i32>} : memref<256x32xf32, #tpu.memory_space<vmem>>, vector<32x32xf32>,
    %c224 = arith.constant 224 : index
    %c0_48 = arith.constant 0 : index
    %130 = vector.load %arg5[%c224, %c0_48] : memref<256x64xf32, #tpu.memory_space<vmem>>, vector<32x64xf32>
    %131 = vector.extract_strided_slice %130 {offsets = [0, 0], sizes = [32, 32], strides = [1, 1]} : vector<32x64xf32> to vector<32x32xf32>
    %132 = arith.negf %131 : vector<32x32xf32>
    %133 = math.exp %132 : vector<32x32xf32>
    %cst_49 = arith.constant 1.000000e+00 : f32
    %134 = vector.broadcast %cst_49 : f32 to vector<32x32xf32>
    %135 = arith.addf %134, %133 : vector<32x32xf32>
    %136 = arith.divf %134, %135 : vector<32x32xf32>
    %137 = vector.extract_strided_slice %130 {offsets = [0, 32], sizes = [32, 32], strides = [1, 1]} : vector<32x64xf32> to vector<32x32xf32>
    %138 = math.tanh %137 : vector<32x32xf32>
    %139 = arith.mulf %136, %126 : vector<32x32xf32>
    %cst_50 = arith.constant 1.000000e+00 : f32
    %140 = vector.broadcast %cst_50 : f32 to vector<32x32xf32>
    %141 = arith.subf %140, %136 : vector<32x32xf32>
    %142 = arith.mulf %141, %138 : vector<32x32xf32>
    %143 = arith.addf %139, %142 : vector<32x32xf32>
    %144 = math.tanh %143 : vector<32x32xf32>
    %145 = arith.mulf %136, %144 : vector<32x32xf32>
    %c224_51 = arith.constant 224 : index
    %c0_52 = arith.constant 0 : index
    %146 = vector.load %arg6[%c224_51, %c0_52] : memref<256x32xf32, #tpu.memory_space<vmem>>, vector<32x32xf32>
    tpu.vector_store %arg6[%c224_51, %c0_52], %145 {strides = array<i32>} : memref<256x32xf32, #tpu.memory_space<vmem>>, vector<32x32xf32>,
    %c0_53 = arith.constant 0 : index
    %c0_54 = arith.constant 0 : index
    %147 = vector.load %arg6[%c0_53, %c0_54] : memref<256x32xf32, #tpu.memory_space<vmem>>, vector<256x32xf32>
    %148 = arith.truncf %147 : vector<256x32xf32> to vector<256x32xbf16>
    %c16 = arith.constant 16 : index
    %c0_55 = arith.constant 0 : index
    %149 = vector.load %arg2[%c16, %c0_55] : memref<112x128xbf16, #tpu.memory_space<vmem>>, vector<32x64xbf16>
    %cst_56 = arith.constant dense<0.000000e+00> : vector<256x64xf32>
    %150 = tpu.matmul %148, %149, %cst_56 {dimension_numbers = #tpu.dot_dimension_numbers<[1], [0], [0], [1], [0, 0, 1, 1], [], []>} : vector<256x32xbf16>, vector<32x64xbf16>, vector<256x64xf32> -> vector<256x64xf32>
    %c1 = arith.constant 1 : index
    %c0_57 = arith.constant 0 : index
    %c0_58 = arith.constant 0 : index
    %151 = vector.load %arg1[%c1, %c0_57, %c0_58] : memref<2x256x256xbf16, #tpu.memory_space<vmem>>, vector<1x256x256xbf16>
    %152 = vector.shape_cast %151 : vector<1x256x256xbf16> to vector<256x256xbf16>
    %153 = arith.truncf %150 : vector<256x64xf32> to vector<256x64xbf16>
    %cst_59 = arith.constant dense<0.000000e+00> : vector<256x64xf32>
    %154 = tpu.matmul %152, %153, %cst_59 {dimension_numbers = #tpu.dot_dimension_numbers<[1], [0], [0], [1], [0, 0, 1, 1], [], []>} : vector<256x256xbf16>, vector<256x64xbf16>, vector<256x64xf32> -> vector<256x64xf32>
    %c0_60 = arith.constant 0 : index
    %c64_61 = arith.constant 64 : index
    %155 = vector.load %arg3[%c0_60, %c64_61] : memref<264x128xf32, #tpu.memory_space<vmem>>, vector<256x64xf32>
    %156 = arith.addf %154, %155 : vector<256x64xf32>
    %c0_62 = arith.constant 0 : index
    %c0_63 = arith.constant 0 : index
    %157 = vector.load %arg5[%c0_62, %c0_63] : memref<256x64xf32, #tpu.memory_space<vmem>>, vector<256x64xf32>
    tpu.vector_store %arg5[%c0_62, %c0_63], %156 {strides = array<i32>} : memref<256x64xf32, #tpu.memory_space<vmem>>, vector<256x64xf32>,
    %cst_64 = arith.constant 0.000000e+00 : f32
    %158 = vector.broadcast %cst_64 : f32 to vector<32x32xf32>
    %c0_65 = arith.constant 0 : index
    %c0_66 = arith.constant 0 : index
    %159 = vector.load %arg5[%c0_65, %c0_66] : memref<256x64xf32, #tpu.memory_space<vmem>>, vector<32x64xf32>
    %160 = vector.extract_strided_slice %159 {offsets = [0, 0], sizes = [32, 32], strides = [1, 1]} : vector<32x64xf32> to vector<32x32xf32>
    %161 = arith.negf %160 : vector<32x32xf32>
    %162 = math.exp %161 : vector<32x32xf32>
    %cst_67 = arith.constant 1.000000e+00 : f32
    %163 = vector.broadcast %cst_67 : f32 to vector<32x32xf32>
    %164 = arith.addf %163, %162 : vector<32x32xf32>
    %165 = arith.divf %163, %164 : vector<32x32xf32>
    %166 = vector.extract_strided_slice %159 {offsets = [0, 32], sizes = [32, 32], strides = [1, 1]} : vector<32x64xf32> to vector<32x32xf32>
    %167 = math.tanh %166 : vector<32x32xf32>
    %168 = arith.mulf %165, %158 : vector<32x32xf32>
    %cst_68 = arith.constant 1.000000e+00 : f32
    %169 = vector.broadcast %cst_68 : f32 to vector<32x32xf32>
    %170 = arith.subf %169, %165 : vector<32x32xf32>
    %171 = arith.mulf %170, %167 : vector<32x32xf32>
    %172 = arith.addf %168, %171 : vector<32x32xf32>
    %c32_69 = arith.constant 32 : index
    %c0_70 = arith.constant 0 : index
    %173 = vector.load %arg5[%c32_69, %c0_70] : memref<256x64xf32, #tpu.memory_space<vmem>>, vector<32x64xf32>
    %174 = vector.extract_strided_slice %173 {offsets = [0, 0], sizes = [32, 32], strides = [1, 1]} : vector<32x64xf32> to vector<32x32xf32>
    %175 = arith.negf %174 : vector<32x32xf32>
    %176 = math.exp %175 : vector<32x32xf32>
    %cst_71 = arith.constant 1.000000e+00 : f32
    %177 = vector.broadcast %cst_71 : f32 to vector<32x32xf32>
    %178 = arith.addf %177, %176 : vector<32x32xf32>
    %179 = arith.divf %177, %178 : vector<32x32xf32>
    %180 = vector.extract_strided_slice %173 {offsets = [0, 32], sizes = [32, 32], strides = [1, 1]} : vector<32x64xf32> to vector<32x32xf32>
    %181 = math.tanh %180 : vector<32x32xf32>
    %182 = arith.mulf %179, %172 : vector<32x32xf32>
    %cst_72 = arith.constant 1.000000e+00 : f32
    %183 = vector.broadcast %cst_72 : f32 to vector<32x32xf32>
    %184 = arith.subf %183, %179 : vector<32x32xf32>
    %185 = arith.mulf %184, %181 : vector<32x32xf32>
    %186 = arith.addf %182, %185 : vector<32x32xf32>
    %c64_73 = arith.constant 64 : index
    %c0_74 = arith.constant 0 : index
    %187 = vector.load %arg5[%c64_73, %c0_74] : memref<256x64xf32, #tpu.memory_space<vmem>>, vector<32x64xf32>
    %188 = vector.extract_strided_slice %187 {offsets = [0, 0], sizes = [32, 32], strides = [1, 1]} : vector<32x64xf32> to vector<32x32xf32>
    %189 = arith.negf %188 : vector<32x32xf32>
    %190 = math.exp %189 : vector<32x32xf32>
    %cst_75 = arith.constant 1.000000e+00 : f32
    %191 = vector.broadcast %cst_75 : f32 to vector<32x32xf32>
    %192 = arith.addf %191, %190 : vector<32x32xf32>
    %193 = arith.divf %191, %192 : vector<32x32xf32>
    %194 = vector.extract_strided_slice %187 {offsets = [0, 32], sizes = [32, 32], strides = [1, 1]} : vector<32x64xf32> to vector<32x32xf32>
    %195 = math.tanh %194 : vector<32x32xf32>
    %196 = arith.mulf %193, %186 : vector<32x32xf32>
    %cst_76 = arith.constant 1.000000e+00 : f32
    %197 = vector.broadcast %cst_76 : f32 to vector<32x32xf32>
    %198 = arith.subf %197, %193 : vector<32x32xf32>
    %199 = arith.mulf %198, %195 : vector<32x32xf32>
    %200 = arith.addf %196, %199 : vector<32x32xf32>
    %c96_77 = arith.constant 96 : index
    %c0_78 = arith.constant 0 : index
    %201 = vector.load %arg5[%c96_77, %c0_78] : memref<256x64xf32, #tpu.memory_space<vmem>>, vector<32x64xf32>
    %202 = vector.extract_strided_slice %201 {offsets = [0, 0], sizes = [32, 32], strides = [1, 1]} : vector<32x64xf32> to vector<32x32xf32>
    %203 = arith.negf %202 : vector<32x32xf32>
    %204 = math.exp %203 : vector<32x32xf32>
    %cst_79 = arith.constant 1.000000e+00 : f32
    %205 = vector.broadcast %cst_79 : f32 to vector<32x32xf32>
    %206 = arith.addf %205, %204 : vector<32x32xf32>
    %207 = arith.divf %205, %206 : vector<32x32xf32>
    %208 = vector.extract_strided_slice %201 {offsets = [0, 32], sizes = [32, 32], strides = [1, 1]} : vector<32x64xf32> to vector<32x32xf32>
    %209 = math.tanh %208 : vector<32x32xf32>
    %210 = arith.mulf %207, %200 : vector<32x32xf32>
    %cst_80 = arith.constant 1.000000e+00 : f32
    %211 = vector.broadcast %cst_80 : f32 to vector<32x32xf32>
    %212 = arith.subf %211, %207 : vector<32x32xf32>
    %213 = arith.mulf %212, %209 : vector<32x32xf32>
    %214 = arith.addf %210, %213 : vector<32x32xf32>
    %c128_81 = arith.constant 128 : index
    %c0_82 = arith.constant 0 : index
    %215 = vector.load %arg5[%c128_81, %c0_82] : memref<256x64xf32, #tpu.memory_space<vmem>>, vector<32x64xf32>
    %216 = vector.extract_strided_slice %215 {offsets = [0, 0], sizes = [32, 32], strides = [1, 1]} : vector<32x64xf32> to vector<32x32xf32>
    %217 = arith.negf %216 : vector<32x32xf32>
    %218 = math.exp %217 : vector<32x32xf32>
    %cst_83 = arith.constant 1.000000e+00 : f32
    %219 = vector.broadcast %cst_83 : f32 to vector<32x32xf32>
    %220 = arith.addf %219, %218 : vector<32x32xf32>
    %221 = arith.divf %219, %220 : vector<32x32xf32>
    %222 = vector.extract_strided_slice %215 {offsets = [0, 32], sizes = [32, 32], strides = [1, 1]} : vector<32x64xf32> to vector<32x32xf32>
    %223 = math.tanh %222 : vector<32x32xf32>
    %224 = arith.mulf %221, %214 : vector<32x32xf32>
    %cst_84 = arith.constant 1.000000e+00 : f32
    %225 = vector.broadcast %cst_84 : f32 to vector<32x32xf32>
    %226 = arith.subf %225, %221 : vector<32x32xf32>
    %227 = arith.mulf %226, %223 : vector<32x32xf32>
    %228 = arith.addf %224, %227 : vector<32x32xf32>
    %c160_85 = arith.constant 160 : index
    %c0_86 = arith.constant 0 : index
    %229 = vector.load %arg5[%c160_85, %c0_86] : memref<256x64xf32, #tpu.memory_space<vmem>>, vector<32x64xf32>
    %230 = vector.extract_strided_slice %229 {offsets = [0, 0], sizes = [32, 32], strides = [1, 1]} : vector<32x64xf32> to vector<32x32xf32>
    %231 = arith.negf %230 : vector<32x32xf32>
    %232 = math.exp %231 : vector<32x32xf32>
    %cst_87 = arith.constant 1.000000e+00 : f32
    %233 = vector.broadcast %cst_87 : f32 to vector<32x32xf32>
    %234 = arith.addf %233, %232 : vector<32x32xf32>
    %235 = arith.divf %233, %234 : vector<32x32xf32>
    %236 = vector.extract_strided_slice %229 {offsets = [0, 32], sizes = [32, 32], strides = [1, 1]} : vector<32x64xf32> to vector<32x32xf32>
    %237 = math.tanh %236 : vector<32x32xf32>
    %238 = arith.mulf %235, %228 : vector<32x32xf32>
    %cst_88 = arith.constant 1.000000e+00 : f32
    %239 = vector.broadcast %cst_88 : f32 to vector<32x32xf32>
    %240 = arith.subf %239, %235 : vector<32x32xf32>
    %241 = arith.mulf %240, %237 : vector<32x32xf32>
    %242 = arith.addf %238, %241 : vector<32x32xf32>
    %c192_89 = arith.constant 192 : index
    %c0_90 = arith.constant 0 : index
    %243 = vector.load %arg5[%c192_89, %c0_90] : memref<256x64xf32, #tpu.memory_space<vmem>>, vector<32x64xf32>
    %244 = vector.extract_strided_slice %243 {offsets = [0, 0], sizes = [32, 32], strides = [1, 1]} : vector<32x64xf32> to vector<32x32xf32>
    %245 = arith.negf %244 : vector<32x32xf32>
    %246 = math.exp %245 : vector<32x32xf32>
    %cst_91 = arith.constant 1.000000e+00 : f32
    %247 = vector.broadcast %cst_91 : f32 to vector<32x32xf32>
    %248 = arith.addf %247, %246 : vector<32x32xf32>
    %249 = arith.divf %247, %248 : vector<32x32xf32>
    %250 = vector.extract_strided_slice %243 {offsets = [0, 32], sizes = [32, 32], strides = [1, 1]} : vector<32x64xf32> to vector<32x32xf32>
    %251 = math.tanh %250 : vector<32x32xf32>
    %252 = arith.mulf %249, %242 : vector<32x32xf32>
    %cst_92 = arith.constant 1.000000e+00 : f32
    %253 = vector.broadcast %cst_92 : f32 to vector<32x32xf32>
    %254 = arith.subf %253, %249 : vector<32x32xf32>
    %255 = arith.mulf %254, %251 : vector<32x32xf32>
    %256 = arith.addf %252, %255 : vector<32x32xf32>
    %c224_93 = arith.constant 224 : index
    %c0_94 = arith.constant 0 : index
    %257 = vector.load %arg5[%c224_93, %c0_94] : memref<256x64xf32, #tpu.memory_space<vmem>>, vector<32x64xf32>
    %258 = vector.extract_strided_slice %257 {offsets = [0, 0], sizes = [32, 32], strides = [1, 1]} : vector<32x64xf32> to vector<32x32xf32>
    %259 = arith.negf %258 : vector<32x32xf32>
    %260 = math.exp %259 : vector<32x32xf32>
    %cst_95 = arith.constant 1.000000e+00 : f32
    %261 = vector.broadcast %cst_95 : f32 to vector<32x32xf32>
    %262 = arith.addf %261, %260 : vector<32x32xf32>
    %263 = arith.divf %261, %262 : vector<32x32xf32>
    %264 = vector.extract_strided_slice %257 {offsets = [0, 32], sizes = [32, 32], strides = [1, 1]} : vector<32x64xf32> to vector<32x32xf32>
    %265 = math.tanh %264 : vector<32x32xf32>
    %266 = arith.mulf %263, %256 : vector<32x32xf32>
    %cst_96 = arith.constant 1.000000e+00 : f32
    %267 = vector.broadcast %cst_96 : f32 to vector<32x32xf32>
    %268 = arith.subf %267, %263 : vector<32x32xf32>
    %269 = arith.mulf %268, %265 : vector<32x32xf32>
    %270 = arith.addf %266, %269 : vector<32x32xf32>
    %271 = math.tanh %270 : vector<32x32xf32>
    %272 = arith.mulf %263, %271 : vector<32x32xf32>
    %c224_97 = arith.constant 224 : index
    %c0_98 = arith.constant 0 : index
    %273 = vector.load %arg6[%c224_97, %c0_98] : memref<256x32xf32, #tpu.memory_space<vmem>>, vector<32x32xf32>
    %274 = tpu.concatenate %273, %272 in 1 : vector<32x32xf32>, vector<32x32xf32> -> vector<32x64xf32>
    %275 = arith.truncf %274 : vector<32x64xf32> to vector<32x64xbf16>
    %c48 = arith.constant 48 : index
    %c0_99 = arith.constant 0 : index
    %276 = vector.load %arg2[%c48, %c0_99] : memref<112x128xbf16, #tpu.memory_space<vmem>>, vector<64x128xbf16>
    %cst_100 = arith.constant dense<0.000000e+00> : vector<32x128xf32>
    %277 = tpu.matmul %275, %276, %cst_100 {dimension_numbers = #tpu.dot_dimension_numbers<[1], [0], [0], [1], [0, 0, 1, 1], [], []>} : vector<32x64xbf16>, vector<64x128xbf16>, vector<32x128xf32> -> vector<32x128xf32>
    %c256 = arith.constant 256 : index
    %c0_101 = arith.constant 0 : index
    %278 = vector.load %arg3[%c256, %c0_101] : memref<264x128xf32, #tpu.memory_space<vmem>>, vector<1x128xf32>
    %279 = vector.broadcast %278 : vector<1x128xf32> to vector<32x128xf32>
    %280 = arith.addf %277, %279 : vector<32x128xf32>
    %c0_102 = arith.constant 0 : index
    %c0_103 = arith.constant 0 : index
    %281 = vector.load %arg4[%c0_102, %c0_103] : memref<32x128xf32, #tpu.memory_space<vmem>>, vector<32x128xf32>
    tpu.vector_store %arg4[%c0_102, %c0_103], %280 {strides = array<i32>} : memref<32x128xf32, #tpu.memory_space<vmem>>, vector<32x128xf32>,
    return
  }
}

</mosaic_0001>

<llo_original>
// kernel: _lambda_.1
$region0: #{_lambda_.1}
  #allocation0 [shape = 'u32[]', space=smem, size = 0x4, offset = 0x4, fixed_abs, tag = 'smem constant byte address 0x4 - core index']
  #allocation1 [shape = 'u32[144,128]{1,0:T(1,128)}', space=vmem, size = 0x12000, scoped, tag = 'internal scratch']
  #allocation2 [shape = 'f32[256,64]{1,0:T(8,128)}', space=vmem, size = 0x20000, scoped, tag = 'scratch operand']
  #allocation3 [shape = 'f32[256,32]{1,0:T(8,128)}', space=vmem, size = 0x20000, scoped, tag = 'scratch operand']
  %s0 = inlined_call_operand.vmem [shape: bf16[256,4], index: 0, kind: input, shape index: {}]
  %s1 = inlined_call_operand.vmem [shape: bf16[2,256,256], index: 1, kind: input, shape index: {}]
  %s2 = inlined_call_operand.vmem [shape: bf16[112,128], index: 2, kind: input, shape index: {}]
  %s3 = inlined_call_operand.vmem [shape: f32[264,128], index: 3, kind: input, shape index: {}]
  %s4 = inlined_call_operand.vmem [shape: f32[32,128], index: 4, kind: output, shape index: {}]
  %s5 = sld [smem:[#allocation0]]
  $region26: #{_lambda_.1} parent=0
    _
  %s7 = ssub.s32 1, %s5
  %s8 = scalar_select 0, %s7, %s5
  // Predicated region
  $region2: #{_lambda_.1} parent=0 // pred_check
    _
  $region3: #{_lambda_.1} parent=0 // pred_check_branch
    %10 = sbr.rel (0) target = $region5
  $region4: #{_lambda_.1} parent=0 // pred_region
    _
  $region5: #{_lambda_.1} parent=0 // pred_fallthru
    _
  // Predicated region
  $region6: #{_lambda_.1} parent=0 // pred_check
    _
  $region7: #{_lambda_.1} parent=0 // pred_check_branch
    %12 = sbr.rel (0) target = $region9
  $region8: #{_lambda_.1} parent=0 // pred_region
    _
  $region9: #{_lambda_.1} parent=0 // pred_fallthru
    _
  // Predicated region
  $region10: #{_lambda_.1} parent=0 // pred_check
    _
  $region11: #{_lambda_.1} parent=0 // pred_check_branch
    %14 = sbr.rel (0) target = $region13
  $region12: #{_lambda_.1} parent=0 // pred_region
    _
  $region13: #{_lambda_.1} parent=0 // pred_fallthru
    _
  // Predicated region
  $region14: #{_lambda_.1} parent=0 // pred_check
    _
  $region15: #{_lambda_.1} parent=0 // pred_check_branch
    %16 = sbr.rel (0) target = $region17
  $region16: #{_lambda_.1} parent=0 // pred_region
    _
  $region17: #{_lambda_.1} parent=0 // pred_fallthru
    _
  %v18 = vld [vmem:[%s0] sm:$0xf]
  %v19 = vld [vmem:[%s0 + $0x4] sm:$0xf]
  %v20 = vld [vmem:[%s0 + $0x8] sm:$0xf]
  %v21 = vld [vmem:[%s0 + $0xc] sm:$0xf]
  %v22 = vld [vmem:[%s0 + $0x10] sm:$0xf]
  %v23 = vld [vmem:[%s0 + $0x14] sm:$0xf]
  %v24 = vld [vmem:[%s0 + $0x18] sm:$0xf]
  %v25 = vld [vmem:[%s0 + $0x1c] sm:$0xf]
  %v26 = vld [vmem:[%s0 + $0x20] sm:$0xf]
  %v27 = vld [vmem:[%s0 + $0x24] sm:$0xf]
  %v28 = vld [vmem:[%s0 + $0x28] sm:$0xf]
  %v29 = vld [vmem:[%s0 + $0x2c] sm:$0xf]
  %v30 = vld [vmem:[%s0 + $0x30] sm:$0xf]
  %v31 = vld [vmem:[%s0 + $0x34] sm:$0xf]
  %v32 = vld [vmem:[%s0 + $0x38] sm:$0xf]
  %v33 = vld [vmem:[%s0 + $0x3c] sm:$0xf]
  %v34 = vld [vmem:[%s0 + $0x40] sm:$0xf]
  %v35 = vld [vmem:[%s0 + $0x44] sm:$0xf]
  %v36 = vld [vmem:[%s0 + $0x48] sm:$0xf]
  %v37 = vld [vmem:[%s0 + $0x4c] sm:$0xf]
  %v38 = vld [vmem:[%s0 + $0x50] sm:$0xf]
  %v39 = vld [vmem:[%s0 + $0x54] sm:$0xf]
  %v40 = vld [vmem:[%s0 + $0x58] sm:$0xf]
  %v41 = vld [vmem:[%s0 + $0x5c] sm:$0xf]
  %v42 = vld [vmem:[%s0 + $0x60] sm:$0xf]
  %v43 = vld [vmem:[%s0 + $0x64] sm:$0xf]
  %v44 = vld [vmem:[%s0 + $0x68] sm:$0xf]
  %v45 = vld [vmem:[%s0 + $0x6c] sm:$0xf]
  %v46 = vld [vmem:[%s0 + $0x70] sm:$0xf]
  %v47 = vld [vmem:[%s0 + $0x74] sm:$0xf]
  %v48 = vld [vmem:[%s0 + $0x78] sm:$0xf]
  %v49 = vld [vmem:[%s0 + $0x7c] sm:$0xf]
  %v50 = vld [vmem:[%s2] sm:$0x3]
  %v83 = vunpack.c.l.b16 %v18
  %v84 = vunpack.c.l.b16 %v19
  %v85 = vunpack.c.l.b16 %v20
  %v86 = vunpack.c.l.b16 %v21
  %v87 = vunpack.c.l.b16 %v22
  %v88 = vunpack.c.l.b16 %v23
  %v89 = vunpack.c.l.b16 %v24
  %v90 = vunpack.c.l.b16 %v25
  %v91 = vunpack.c.l.b16 %v26
  %v92 = vunpack.c.l.b16 %v27
  %v93 = vunpack.c.l.b16 %v28
  %v94 = vunpack.c.l.b16 %v29
  %v95 = vunpack.c.l.b16 %v30
  %v96 = vunpack.c.l.b16 %v31
  %v97 = vunpack.c.l.b16 %v32
  %v98 = vunpack.c.l.b16 %v33
  %v99 = vunpack.c.l.b16 %v34
  %v100 = vunpack.c.l.b16 %v35
  %v101 = vunpack.c.l.b16 %v36
  %v102 = vunpack.c.l.b16 %v37
  %v103 = vunpack.c.l.b16 %v38
  %v104 = vunpack.c.l.b16 %v39
  %v105 = vunpack.c.l.b16 %v40
  %v106 = vunpack.c.l.b16 %v41
  %v107 = vunpack.c.l.b16 %v42
  %v108 = vunpack.c.l.b16 %v43
  %v109 = vunpack.c.l.b16 %v44
  %v110 = vunpack.c.l.b16 %v45
  %v111 = vunpack.c.l.b16 %v46
  %v112 = vunpack.c.l.b16 %v47
  %v113 = vunpack.c.l.b16 %v48
  %v114 = vunpack.c.l.b16 %v49
  %v115 = vpack.c.b16 %v84, %v83
  %v116 = vpack.c.b16 %v86, %v85
  %v117 = vpack.c.b16 %v88, %v87
  %v118 = vpack.c.b16 %v90, %v89
  %v119 = vpack.c.b16 %v92, %v91
  %v120 = vpack.c.b16 %v94, %v93
  %v121 = vpack.c.b16 %v96, %v95
  %v122 = vpack.c.b16 %v98, %v97
  %v123 = vpack.c.b16 %v100, %v99
  %v124 = vpack.c.b16 %v102, %v101
  %v125 = vpack.c.b16 %v104, %v103
  %v126 = vpack.c.b16 %v106, %v105
  %v127 = vpack.c.b16 %v108, %v107
  %v128 = vpack.c.b16 %v110, %v109
  %v129 = vpack.c.b16 %v112, %v111
  %v130 = vpack.c.b16 %v114, %v113
  %vm131 = vcmask 31744
  %v133 = vsel %vm131, %v115, 0
  %v136 = vsel %vm131, %v116, 0
  %v139 = vsel %vm131, %v117, 0
  %v142 = vsel %vm131, %v118, 0
  %v145 = vsel %vm131, %v119, 0
  %v148 = vsel %vm131, %v120, 0
  %v151 = vsel %vm131, %v121, 0
  %v154 = vsel %vm131, %v122, 0
  %v157 = vsel %vm131, %v123, 0
  %v160 = vsel %vm131, %v124, 0
  %v163 = vsel %vm131, %v125, 0
  %v166 = vsel %vm131, %v126, 0
  %v169 = vsel %vm131, %v127, 0
  %v172 = vsel %vm131, %v128, 0
  %v175 = vsel %vm131, %v129, 0
  %v178 = vsel %vm131, %v130, 0
  %vm180 = vcmask 1041408
  %v182 = vsel %vm180, %v50, 0
  %184 = vmatprep.subr.bf16.mxu0 0
  %185 = vmatpush1.bf16.msra.mxu0 %v182
  %186 = vmatprep.subr.bf16.mxu0 0
  %187 = vmatpush1.bf16.msra.mxu0 0
  %188 = vmatprep.subr.bf16.mxu0 0
  %189 = vmatpush1.bf16.msra.mxu0 0
  %190 = vmatprep.subr.bf16.mxu0 0
  %191 = vmatpush1.bf16.msra.mxu0 0
  %192 = vmatprep.subr.bf16.mxu0 0
  %193 = vmatpush1.bf16.msra.mxu0 0
  %194 = vmatprep.subr.bf16.mxu0 0
  %195 = vmatpush1.bf16.msra.mxu0 0
  %196 = vmatprep.subr.bf16.mxu0 0
  %197 = vmatpush1.bf16.msra.mxu0 0
  %198 = vmatprep.subr.bf16.mxu0 0
  %199 = vmatpush1.bf16.msra.mxu0 0
  %200 = vmatprep.subr.bf16.mxu0 0
  %201 = vmatpush1.bf16.msra.mxu0 0
  %202 = vmatprep.subr.bf16.mxu0 0
  %203 = vmatpush1.bf16.msra.mxu0 0
  %204 = vmatprep.subr.bf16.mxu0 0
  %205 = vmatpush1.bf16.msra.mxu0 0
  %206 = vmatprep.subr.bf16.mxu0 0
  %207 = vmatpush1.bf16.msra.mxu0 0
  %208 = vmatprep.subr.bf16.mxu0 0
  %209 = vmatpush1.bf16.msra.mxu0 0
  %210 = vmatprep.subr.bf16.mxu0 0
  %211 = vmatpush1.bf16.msra.mxu0 0
  %212 = vmatprep.subr.bf16.mxu0 0
  %213 = vmatpush1.bf16.msra.mxu0 0
  %214 = vmatprep.subr.bf16.mxu0 0
  %215 = vmatpush1.bf16.msra.mxu0 0
  %216 = vmatprep.mubr.bf16.mxu0 0
  %217 = vmatmul.mubr.bf16.gmra.mrb[0].mxu0 %v133
  %v218 = vpop.f32.mrb[0].mxu0
  %v219 = vadd.f32 0.0, %v218
  %v220 = vpop.f32.mrb[0].mxu0
  %v221 = vpop.f32.mrb[0].mxu0
  %v222 = vadd.f32 0.0, %v221
  %v223 = vpop.f32.mrb[0].mxu0
  %224 = vmatprep.mubr.bf16.mxu0 0
  %225 = vmatmul.mubr.bf16.gmra.mrb[0].mxu0 %v136
  %v226 = vpop.f32.mrb[0].mxu0
  %v227 = vadd.f32 0.0, %v226
  %v228 = vpop.f32.mrb[0].mxu0
  %v229 = vpop.f32.mrb[0].mxu0
  %v230 = vadd.f32 0.0, %v229
  %v231 = vpop.f32.mrb[0].mxu0
  %232 = vmatprep.mubr.bf16.mxu0 0
  %233 = vmatmul.mubr.bf16.gmra.mrb[0].mxu0 %v139
  %v234 = vpop.f32.mrb[0].mxu0
  %v235 = vadd.f32 0.0, %v234
  %v236 = vpop.f32.mrb[0].mxu0
  %v237 = vpop.f32.mrb[0].mxu0
  %v238 = vadd.f32 0.0, %v237
  %v239 = vpop.f32.mrb[0].mxu0
  %240 = vmatprep.mubr.bf16.mxu0 0
  %241 = vmatmul.mubr.bf16.gmra.mrb[0].mxu0 %v142
  %v242 = vpop.f32.mrb[0].mxu0
  %v243 = vadd.f32 0.0, %v242
  %v244 = vpop.f32.mrb[0].mxu0
  %v245 = vpop.f32.mrb[0].mxu0
  %v246 = vadd.f32 0.0, %v245
  %v247 = vpop.f32.mrb[0].mxu0
  %248 = vmatprep.mubr.bf16.mxu0 0
  %249 = vmatmul.mubr.bf16.gmra.mrb[0].mxu0 %v145
  %v250 = vpop.f32.mrb[0].mxu0
  %v251 = vadd.f32 0.0, %v250
  %v252 = vpop.f32.mrb[0].mxu0
  %v253 = vpop.f32.mrb[0].mxu0
  %v254 = vadd.f32 0.0, %v253
  %v255 = vpop.f32.mrb[0].mxu0
  %256 = vmatprep.mubr.bf16.mxu0 0
  %257 = vmatmul.mubr.bf16.gmra.mrb[0].mxu0 %v148
  %v258 = vpop.f32.mrb[0].mxu0
  %v259 = vadd.f32 0.0, %v258
  %v260 = vpop.f32.mrb[0].mxu0
  %v261 = vpop.f32.mrb[0].mxu0
  %v262 = vadd.f32 0.0, %v261
  %v263 = vpop.f32.mrb[0].mxu0
  %264 = vmatprep.mubr.bf16.mxu0 0
  %265 = vmatmul.mubr.bf16.gmra.mrb[0].mxu0 %v151
  %v266 = vpop.f32.mrb[0].mxu0
  %v267 = vadd.f32 0.0, %v266
  %v268 = vpop.f32.mrb[0].mxu0
  %v269 = vpop.f32.mrb[0].mxu0
  %v270 = vadd.f32 0.0, %v269
  %v271 = vpop.f32.mrb[0].mxu0
  %272 = vmatprep.mubr.bf16.mxu0 0
  %273 = vmatmul.mubr.bf16.gmra.mrb[0].mxu0 %v154
  %v274 = vpop.f32.mrb[0].mxu0
  %v275 = vadd.f32 0.0, %v274
  %v276 = vpop.f32.mrb[0].mxu0
  %v277 = vpop.f32.mrb[0].mxu0
  %v278 = vadd.f32 0.0, %v277
  %v279 = vpop.f32.mrb[0].mxu0
  %280 = vmatprep.mubr.bf16.mxu0 0
  %281 = vmatmul.mubr.bf16.gmra.mrb[0].mxu0 %v157
  %v282 = vpop.f32.mrb[0].mxu0
  %v283 = vadd.f32 0.0, %v282
  %v284 = vpop.f32.mrb[0].mxu0
  %v285 = vpop.f32.mrb[0].mxu0
  %v286 = vadd.f32 0.0, %v285
  %v287 = vpop.f32.mrb[0].mxu0
  %288 = vmatprep.mubr.bf16.mxu0 0
  %289 = vmatmul.mubr.bf16.gmra.mrb[0].mxu0 %v160
  %v290 = vpop.f32.mrb[0].mxu0
  %v291 = vadd.f32 0.0, %v290
  %v292 = vpop.f32.mrb[0].mxu0
  %v293 = vpop.f32.mrb[0].mxu0
  %v294 = vadd.f32 0.0, %v293
  %v295 = vpop.f32.mrb[0].mxu0
  %296 = vmatprep.mubr.bf16.mxu0 0
  %297 = vmatmul.mubr.bf16.gmra.mrb[0].mxu0 %v163
  %v298 = vpop.f32.mrb[0].mxu0
  %v299 = vadd.f32 0.0, %v298
  %v300 = vpop.f32.mrb[0].mxu0
  %v301 = vpop.f32.mrb[0].mxu0
  %v302 = vadd.f32 0.0, %v301
  %v303 = vpop.f32.mrb[0].mxu0
  %304 = vmatprep.mubr.bf16.mxu0 0
  %305 = vmatmul.mubr.bf16.gmra.mrb[0].mxu0 %v166
  %v306 = vpop.f32.mrb[0].mxu0
  %v307 = vadd.f32 0.0, %v306
  %v308 = vpop.f32.mrb[0].mxu0
  %v309 = vpop.f32.mrb[0].mxu0
  %v310 = vadd.f32 0.0, %v309
  %v311 = vpop.f32.mrb[0].mxu0
  %312 = vmatprep.mubr.bf16.mxu0 0
  %313 = vmatmul.mubr.bf16.gmra.mrb[0].mxu0 %v169
  %v314 = vpop.f32.mrb[0].mxu0
  %v315 = vadd.f32 0.0, %v314
  %v316 = vpop.f32.mrb[0].mxu0
  %v317 = vpop.f32.mrb[0].mxu0
  %v318 = vadd.f32 0.0, %v317
  %v319 = vpop.f32.mrb[0].mxu0
  %320 = vmatprep.mubr.bf16.mxu0 0
  %321 = vmatmul.mubr.bf16.gmra.mrb[0].mxu0 %v172
  %v322 = vpop.f32.mrb[0].mxu0
  %v323 = vadd.f32 0.0, %v322
  %v324 = vpop.f32.mrb[0].mxu0
  %v325 = vpop.f32.mrb[0].mxu0
  %v326 = vadd.f32 0.0, %v325
  %v327 = vpop.f32.mrb[0].mxu0
  %328 = vmatprep.mubr.bf16.mxu0 0
  %329 = vmatmul.mubr.bf16.gmra.mrb[0].mxu0 %v175
  %v330 = vpop.f32.mrb[0].mxu0
  %v331 = vadd.f32 0.0, %v330
  %v332 = vpop.f32.mrb[0].mxu0
  %v333 = vpop.f32.mrb[0].mxu0
  %v334 = vadd.f32 0.0, %v333
  %v335 = vpop.f32.mrb[0].mxu0
  %336 = vmatprep.mubr.bf16.mxu0 0
  %337 = vmatmul.mubr.bf16.gmra.mrb[0].mxu0 %v178
  %v338 = vpop.f32.mrb[0].mxu0
  %v339 = vadd.f32 0.0, %v338
  %v340 = vpop.f32.mrb[0].mxu0
  %v341 = vpop.f32.mrb[0].mxu0
  %v342 = vadd.f32 0.0, %v341
  %v343 = vpop.f32.mrb[0].mxu0
  %344 = vdwg.mxu0
  %v345 = vld [vmem:[%s1] sm:$0xff]
  %v346 = vld [vmem:[%s1 + $0x8] sm:$0xff]
  %v347 = vld [vmem:[%s1 + $0x10] sm:$0xff]
  %v348 = vld [vmem:[%s1 + $0x18] sm:$0xff]
  %v349 = vld [vmem:[%s1 + $0x20] sm:$0xff]
  %v350 = vld [vmem:[%s1 + $0x28] sm:$0xff]
  %v351 = vld [vmem:[%s1 + $0x30] sm:$0xff]
  %v352 = vld [vmem:[%s1 + $0x38] sm:$0xff]
  %v353 = vld [vmem:[%s1 + $0x40] sm:$0xff]
  %v354 = vld [vmem:[%s1 + $0x48] sm:$0xff]
  %v355 = vld [vmem:[%s1 + $0x50] sm:$0xff]
  %v356 = vld [vmem:[%s1 + $0x58] sm:$0xff]
  %v357 = vld [vmem:[%s1 + $0x60] sm:$0xff]
  %v358 = vld [vmem:[%s1 + $0x68] sm:$0xff]
  %v359 = vld [vmem:[%s1 + $0x70] sm:$0xff]
  %v360 = vld [vmem:[%s1 + $0x78] sm:$0xff]
  %v361 = vld [vmem:[%s1 + $0x80] sm:$0xff]
  %v362 = vld [vmem:[%s1 + $0x88] sm:$0xff]
  %v363 = vld [vmem:[%s1 + $0x90] sm:$0xff]
  %v364 = vld [vmem:[%s1 + $0x98] sm:$0xff]
  %v365 = vld [vmem:[%s1 + $0xa0] sm:$0xff]
  %v366 = vld [vmem:[%s1 + $0xa8] sm:$0xff]
  %v367 = vld [vmem:[%s1 + $0xb0] sm:$0xff]
  %v368 = vld [vmem:[%s1 + $0xb8] sm:$0xff]
  %v369 = vld [vmem:[%s1 + $0xc0] sm:$0xff]
  %v370 = vld [vmem:[%s1 + $0xc8] sm:$0xff]
  %v371 = vld [vmem:[%s1 + $0xd0] sm:$0xff]
  %v372 = vld [vmem:[%s1 + $0xd8] sm:$0xff]
  %v373 = vld [vmem:[%s1 + $0xe0] sm:$0xff]
  %v374 = vld [vmem:[%s1 + $0xe8] sm:$0xff]
  %v375 = vld [vmem:[%s1 + $0xf0] sm:$0xff]
  %v376 = vld [vmem:[%s1 + $0xf8] sm:$0xff]
  %v377 = vpack.c.bf16 %v222, %v219
  %v378 = vpack.c.bf16 %v230, %v227
  %v379 = vpack.c.bf16 %v238, %v235
  %v380 = vpack.c.bf16 %v246, %v243
  %v381 = vpack.c.bf16 %v254, %v251
  %v382 = vpack.c.bf16 %v262, %v259
  %v383 = vpack.c.bf16 %v270, %v267
  %v384 = vpack.c.bf16 %v278, %v275
  %v385 = vpack.c.bf16 %v286, %v283
  %v386 = vpack.c.bf16 %v294, %v291
  %v387 = vpack.c.bf16 %v302, %v299
  %v388 = vpack.c.bf16 %v310, %v307
  %v389 = vpack.c.bf16 %v318, %v315
  %v390 = vpack.c.bf16 %v326, %v323
  %v391 = vpack.c.bf16 %v334, %v331
  %v392 = vpack.c.bf16 %v342, %v339
  %v393 = vld [vmem:[%s3] sm:$0xff]
  %v394 = vld [vmem:[%s3 + $0x8] sm:$0xff]
  %v395 = vld [vmem:[%s3 + $0x10] sm:$0xff]
  %v396 = vld [vmem:[%s3 + $0x18] sm:$0xff]
  %v397 = vld [vmem:[%s3 + $0x20] sm:$0xff]
  %v398 = vld [vmem:[%s3 + $0x28] sm:$0xff]
  %v399 = vld [vmem:[%s3 + $0x30] sm:$0xff]
  %v400 = vld [vmem:[%s3 + $0x38] sm:$0xff]
  %v401 = vld [vmem:[%s3 + $0x40] sm:$0xff]
  %v402 = vld [vmem:[%s3 + $0x48] sm:$0xff]
  %v403 = vld [vmem:[%s3 + $0x50] sm:$0xff]
  %v404 = vld [vmem:[%s3 + $0x58] sm:$0xff]
  %v405 = vld [vmem:[%s3 + $0x60] sm:$0xff]
  %v406 = vld [vmem:[%s3 + $0x68] sm:$0xff]
  %v407 = vld [vmem:[%s3 + $0x70] sm:$0xff]
  %v408 = vld [vmem:[%s3 + $0x78] sm:$0xff]
  %v409 = vld [vmem:[%s3 + $0x80] sm:$0xff]
  %v410 = vld [vmem:[%s3 + $0x88] sm:$0xff]
  %v411 = vld [vmem:[%s3 + $0x90] sm:$0xff]
  %v412 = vld [vmem:[%s3 + $0x98] sm:$0xff]
  %v413 = vld [vmem:[%s3 + $0xa0] sm:$0xff]
  %v414 = vld [vmem:[%s3 + $0xa8] sm:$0xff]
  %v415 = vld [vmem:[%s3 + $0xb0] sm:$0xff]
  %v416 = vld [vmem:[%s3 + $0xb8] sm:$0xff]
  %v417 = vld [vmem:[%s3 + $0xc0] sm:$0xff]
  %v418 = vld [vmem:[%s3 + $0xc8] sm:$0xff]
  %v419 = vld [vmem:[%s3 + $0xd0] sm:$0xff]
  %v420 = vld [vmem:[%s3 + $0xd8] sm:$0xff]
  %v421 = vld [vmem:[%s3 + $0xe0] sm:$0xff]
  %v422 = vld [vmem:[%s3 + $0xe8] sm:$0xff]
  %v423 = vld [vmem:[%s3 + $0xf0] sm:$0xff]
  %v424 = vld [vmem:[%s3 + $0xf8] sm:$0xff]
  %v457 = vunpack.c.l.b16 %v345
  %v458 = vunpack.c.h.b16 %v345
  %v459 = vunpack.c.l.b16 %v346
  %v460 = vunpack.c.h.b16 %v346
  %v461 = vunpack.c.l.b16 %v347
  %v462 = vunpack.c.h.b16 %v347
  %v463 = vunpack.c.l.b16 %v348
  %v464 = vunpack.c.h.b16 %v348
  %v465 = vunpack.c.l.b16 %v349
  %v466 = vunpack.c.h.b16 %v349
  %v467 = vunpack.c.l.b16 %v350
  %v468 = vunpack.c.h.b16 %v350
  %v469 = vunpack.c.l.b16 %v351
  %v470 = vunpack.c.h.b16 %v351
  %v471 = vunpack.c.l.b16 %v352
  %v472 = vunpack.c.h.b16 %v352
  %v473 = vunpack.c.l.b16 %v353
  %v474 = vunpack.c.h.b16 %v353
  %v475 = vunpack.c.l.b16 %v354
  %v476 = vunpack.c.h.b16 %v354
  %v477 = vunpack.c.l.b16 %v355
  %v478 = vunpack.c.h.b16 %v355
  %v479 = vunpack.c.l.b16 %v356
  %v480 = vunpack.c.h.b16 %v356
  %v481 = vunpack.c.l.b16 %v357
  %v482 = vunpack.c.h.b16 %v357
  %v483 = vunpack.c.l.b16 %v358
  %v484 = vunpack.c.h.b16 %v358
  %v485 = vunpack.c.l.b16 %v359
  %v486 = vunpack.c.h.b16 %v359
  %v487 = vunpack.c.l.b16 %v360
  %v488 = vunpack.c.h.b16 %v360
  %v489 = vunpack.c.l.b16 %v361
  %v490 = vunpack.c.h.b16 %v361
  %v491 = vunpack.c.l.b16 %v362
  %v492 = vunpack.c.h.b16 %v362
  %v493 = vunpack.c.l.b16 %v363
  %v494 = vunpack.c.h.b16 %v363
  %v495 = vunpack.c.l.b16 %v364
  %v496 = vunpack.c.h.b16 %v364
  %v497 = vunpack.c.l.b16 %v365
  %v498 = vunpack.c.h.b16 %v365
  %v499 = vunpack.c.l.b16 %v366
  %v500 = vunpack.c.h.b16 %v366
  %v501 = vunpack.c.l.b16 %v367
  %v502 = vunpack.c.h.b16 %v367
  %v503 = vunpack.c.l.b16 %v368
  %v504 = vunpack.c.h.b16 %v368
  %v505 = vunpack.c.l.b16 %v369
  %v506 = vunpack.c.h.b16 %v369
  %v507 = vunpack.c.l.b16 %v370
  %v508 = vunpack.c.h.b16 %v370
  %v509 = vunpack.c.l.b16 %v371
  %v510 = vunpack.c.h.b16 %v371
  %v511 = vunpack.c.l.b16 %v372
  %v512 = vunpack.c.h.b16 %v372
  %v513 = vunpack.c.l.b16 %v373
  %v514 = vunpack.c.h.b16 %v373
  %v515 = vunpack.c.l.b16 %v374
  %v516 = vunpack.c.h.b16 %v374
  %v517 = vunpack.c.l.b16 %v375
  %v518 = vunpack.c.h.b16 %v375
  %v519 = vunpack.c.l.b16 %v376
  %v520 = vunpack.c.h.b16 %v376
  %v521 = vpack.c.b16 %v459, %v457
  %v522 = vpack.c.b16 %v460, %v458
  %v523 = vpack.c.b16 %v463, %v461
  %v524 = vpack.c.b16 %v464, %v462
  %v525 = vpack.c.b16 %v467, %v465
  %v526 = vpack.c.b16 %v468, %v466
  %v527 = vpack.c.b16 %v471, %v469
  %v528 = vpack.c.b16 %v472, %v470
  %v529 = vpack.c.b16 %v475, %v473
  %v530 = vpack.c.b16 %v476, %v474
  %v531 = vpack.c.b16 %v479, %v477
  %v532 = vpack.c.b16 %v480, %v478
  %v533 = vpack.c.b16 %v483, %v481
  %v534 = vpack.c.b16 %v484, %v482
  %v535 = vpack.c.b16 %v487, %v485
  %v536 = vpack.c.b16 %v488, %v486
  %v537 = vpack.c.b16 %v491, %v489
  %v538 = vpack.c.b16 %v492, %v490
  %v539 = vpack.c.b16 %v495, %v493
  %v540 = vpack.c.b16 %v496, %v494
  %v541 = vpack.c.b16 %v499, %v497
  %v542 = vpack.c.b16 %v500, %v498
  %v543 = vpack.c.b16 %v503, %v501
  %v544 = vpack.c.b16 %v504, %v502
  %v545 = vpack.c.b16 %v507, %v505
  %v546 = vpack.c.b16 %v508, %v506
  %v547 = vpack.c.b16 %v511, %v509
  %v548 = vpack.c.b16 %v512, %v510
  %v549 = vpack.c.b16 %v515, %v513
  %v550 = vpack.c.b16 %v516, %v514
  %v551 = vpack.c.b16 %v519, %v517
  %v552 = vpack.c.b16 %v520, %v518
  %585 = vmatprep.subr.bf16.mxu0 0
  %586 = vmatpush1.bf16.msra.mxu0 %v377
  %587 = vmatprep.subr.bf16.mxu0 0
  %588 = vmatpush1.bf16.msra.mxu0 %v378
  %589 = vmatprep.subr.bf16.mxu0 0
  %590 = vmatpush1.bf16.msra.mxu0 %v379
  %591 = vmatprep.subr.bf16.mxu0 0
  %592 = vmatpush1.bf16.msra.mxu0 %v380
  %593 = vmatprep.subr.bf16.mxu0 0
  %594 = vmatpush1.bf16.msra.mxu0 %v381
  %595 = vmatprep.subr.bf16.mxu0 0
  %596 = vmatpush1.bf16.msra.mxu0 %v382
  %597 = vmatprep.subr.bf16.mxu0 0
  %598 = vmatpush1.bf16.msra.mxu0 %v383
  %599 = vmatprep.subr.bf16.mxu0 0
  %600 = vmatpush1.bf16.msra.mxu0 %v384
  %601 = vmatprep.subr.bf16.mxu0 0
  %602 = vmatpush1.bf16.msra.mxu0 %v385
  %603 = vmatprep.subr.bf16.mxu0 0
  %604 = vmatpush1.bf16.msra.mxu0 %v386
  %605 = vmatprep.subr.bf16.mxu0 0
  %606 = vmatpush1.bf16.msra.mxu0 %v387
  %607 = vmatprep.subr.bf16.mxu0 0
  %608 = vmatpush1.bf16.msra.mxu0 %v388
  %609 = vmatprep.subr.bf16.mxu0 0
  %610 = vmatpush1.bf16.msra.mxu0 %v389
  %611 = vmatprep.subr.bf16.mxu0 0
  %612 = vmatpush1.bf16.msra.mxu0 %v390
  %613 = vmatprep.subr.bf16.mxu0 0
  %614 = vmatpush1.bf16.msra.mxu0 %v391
  %615 = vmatprep.subr.bf16.mxu0 0
  %616 = vmatpush1.bf16.msra.mxu0 %v392
  %617 = vmatprep.mubr.bf16.mxu0 %v522
  %618 = vmatmul.mubr.bf16.gmra.mrb[0].mxu0 %v521
  %v619 = vpop.f32.mrb[0].mxu0
  %v620 = vadd.f32 %v393, %v619
  %v621 = vpop.f32.mrb[0].mxu0
  %v622 = vpop.f32.mrb[0].mxu0
  %v623 = vadd.f32 %v394, %v622
  %v624 = vpop.f32.mrb[0].mxu0
  %625 = vmatprep.mubr.bf16.mxu0 %v524
  %626 = vmatmul.mubr.bf16.gmra.mrb[0].mxu0 %v523
  %v627 = vpop.f32.mrb[0].mxu0
  %v628 = vadd.f32 %v395, %v627
  %v629 = vpop.f32.mrb[0].mxu0
  %v630 = vpop.f32.mrb[0].mxu0
  %v631 = vadd.f32 %v396, %v630
  %v632 = vpop.f32.mrb[0].mxu0
  %633 = vmatprep.mubr.bf16.mxu0 %v526
  %634 = vmatmul.mubr.bf16.gmra.mrb[0].mxu0 %v525
  %v635 = vpop.f32.mrb[0].mxu0
  %v636 = vadd.f32 %v397, %v635
  %v637 = vpop.f32.mrb[0].mxu0
  %v638 = vpop.f32.mrb[0].mxu0
  %v639 = vadd.f32 %v398, %v638
  %v640 = vpop.f32.mrb[0].mxu0
  %641 = vmatprep.mubr.bf16.mxu0 %v528
  %642 = vmatmul.mubr.bf16.gmra.mrb[0].mxu0 %v527
  %v643 = vpop.f32.mrb[0].mxu0
  %v644 = vadd.f32 %v399, %v643
  %v645 = vpop.f32.mrb[0].mxu0
  %v646 = vpop.f32.mrb[0].mxu0
  %v647 = vadd.f32 %v400, %v646
  %v648 = vpop.f32.mrb[0].mxu0
  %649 = vmatprep.mubr.bf16.mxu0 %v530
  %650 = vmatmul.mubr.bf16.gmra.mrb[0].mxu0 %v529
  %v651 = vpop.f32.mrb[0].mxu0
  %v652 = vadd.f32 %v401, %v651
  %v653 = vpop.f32.mrb[0].mxu0
  %v654 = vpop.f32.mrb[0].mxu0
  %v655 = vadd.f32 %v402, %v654
  %v656 = vpop.f32.mrb[0].mxu0
  %657 = vmatprep.mubr.bf16.mxu0 %v532
  %658 = vmatmul.mubr.bf16.gmra.mrb[0].mxu0 %v531
  %v659 = vpop.f32.mrb[0].mxu0
  %v660 = vadd.f32 %v403, %v659
  %v661 = vpop.f32.mrb[0].mxu0
  %v662 = vpop.f32.mrb[0].mxu0
  %v663 = vadd.f32 %v404, %v662
  %v664 = vpop.f32.mrb[0].mxu0
  %665 = vmatprep.mubr.bf16.mxu0 %v534
  %666 = vmatmul.mubr.bf16.gmra.mrb[0].mxu0 %v533
  %v667 = vpop.f32.mrb[0].mxu0
  %v668 = vadd.f32 %v405, %v667
  %v669 = vpop.f32.mrb[0].mxu0
  %v670 = vpop.f32.mrb[0].mxu0
  %v671 = vadd.f32 %v406, %v670
  %v672 = vpop.f32.mrb[0].mxu0
  %673 = vmatprep.mubr.bf16.mxu0 %v536
  %674 = vmatmul.mubr.bf16.gmra.mrb[0].mxu0 %v535
  %v675 = vpop.f32.mrb[0].mxu0
  %v676 = vadd.f32 %v407, %v675
  %v677 = vpop.f32.mrb[0].mxu0
  %v678 = vpop.f32.mrb[0].mxu0
  %v679 = vadd.f32 %v408, %v678
  %v680 = vpop.f32.mrb[0].mxu0
  %681 = vmatprep.mubr.bf16.mxu0 %v538
  %682 = vmatmul.mubr.bf16.gmra.mrb[0].mxu0 %v537
  %v683 = vpop.f32.mrb[0].mxu0
  %v684 = vadd.f32 %v409, %v683
  %v685 = vpop.f32.mrb[0].mxu0
  %v686 = vpop.f32.mrb[0].mxu0
  %v687 = vadd.f32 %v410, %v686
  %v688 = vpop.f32.mrb[0].mxu0
  %689 = vmatprep.mubr.bf16.mxu0 %v540
  %690 = vmatmul.mubr.bf16.gmra.mrb[0].mxu0 %v539
  %v691 = vpop.f32.mrb[0].mxu0
  %v692 = vadd.f32 %v411, %v691
  %v693 = vpop.f32.mrb[0].mxu0
  %v694 = vpop.f32.mrb[0].mxu0
  %v695 = vadd.f32 %v412, %v694
  %v696 = vpop.f32.mrb[0].mxu0
  %697 = vmatprep.mubr.bf16.mxu0 %v542
  %698 = vmatmul.mubr.bf16.gmra.mrb[0].mxu0 %v541
  %v699 = vpop.f32.mrb[0].mxu0
  %v700 = vadd.f32 %v413, %v699
  %v701 = vpop.f32.mrb[0].mxu0
  %v702 = vpop.f32.mrb[0].mxu0
  %v703 = vadd.f32 %v414, %v702
  %v704 = vpop.f32.mrb[0].mxu0
  %705 = vmatprep.mubr.bf16.mxu0 %v544
  %706 = vmatmul.mubr.bf16.gmra.mrb[0].mxu0 %v543
  %v707 = vpop.f32.mrb[0].mxu0
  %v708 = vadd.f32 %v415, %v707
  %v709 = vpop.f32.mrb[0].mxu0
  %v710 = vpop.f32.mrb[0].mxu0
  %v711 = vadd.f32 %v416, %v710
  %v712 = vpop.f32.mrb[0].mxu0
  %713 = vmatprep.mubr.bf16.mxu0 %v546
  %714 = vmatmul.mubr.bf16.gmra.mrb[0].mxu0 %v545
  %v715 = vpop.f32.mrb[0].mxu0
  %v716 = vadd.f32 %v417, %v715
  %v717 = vpop.f32.mrb[0].mxu0
  %v718 = vpop.f32.mrb[0].mxu0
  %v719 = vadd.f32 %v418, %v718
  %v720 = vpop.f32.mrb[0].mxu0
  %721 = vmatprep.mubr.bf16.mxu0 %v548
  %722 = vmatmul.mubr.bf16.gmra.mrb[0].mxu0 %v547
  %v723 = vpop.f32.mrb[0].mxu0
  %v724 = vadd.f32 %v419, %v723
  %v725 = vpop.f32.mrb[0].mxu0
  %v726 = vpop.f32.mrb[0].mxu0
  %v727 = vadd.f32 %v420, %v726
  %v728 = vpop.f32.mrb[0].mxu0
  %729 = vmatprep.mubr.bf16.mxu0 %v550
  %730 = vmatmul.mubr.bf16.gmra.mrb[0].mxu0 %v549
  %v731 = vpop.f32.mrb[0].mxu0
  %v732 = vadd.f32 %v421, %v731
  %v733 = vpop.f32.mrb[0].mxu0
  %v734 = vpop.f32.mrb[0].mxu0
  %v735 = vadd.f32 %v422, %v734
  %v736 = vpop.f32.mrb[0].mxu0
  %737 = vmatprep.mubr.bf16.mxu0 %v552
  %738 = vmatmul.mubr.bf16.gmra.mrb[0].mxu0 %v551
  %v739 = vpop.f32.mrb[0].mxu0
  %v740 = vadd.f32 %v423, %v739
  %v741 = vpop.f32.mrb[0].mxu0
  %v742 = vpop.f32.mrb[0].mxu0
  %v743 = vadd.f32 %v424, %v742
  %v744 = vpop.f32.mrb[0].mxu0
  %745 = vdwg.mxu0
  %vm746 = vcmask 523264
  %747 = vst.msk [vmem:[#allocation2] sm:$0xff] %vm746, %v620
  %748 = vst.msk [vmem:[#allocation2 + $0x8] sm:$0xff] %vm746, %v623
  %749 = vst.msk [vmem:[#allocation2 + $0x10] sm:$0xff] %vm746, %v628
  %750 = vst.msk [vmem:[#allocation2 + $0x18] sm:$0xff] %vm746, %v631
  %751 = vst.msk [vmem:[#allocation2 + $0x20] sm:$0xff] %vm746, %v636
  %752 = vst.msk [vmem:[#allocation2 + $0x28] sm:$0xff] %vm746, %v639
  %753 = vst.msk [vmem:[#allocation2 + $0x30] sm:$0xff] %vm746, %v644
  %754 = vst.msk [vmem:[#allocation2 + $0x38] sm:$0xff] %vm746, %v647
  %755 = vst.msk [vmem:[#allocation2 + $0x40] sm:$0xff] %vm746, %v652
  %756 = vst.msk [vmem:[#allocation2 + $0x48] sm:$0xff] %vm746, %v655
  %757 = vst.msk [vmem:[#allocation2 + $0x50] sm:$0xff] %vm746, %v660
  %758 = vst.msk [vmem:[#allocation2 + $0x58] sm:$0xff] %vm746, %v663
  %759 = vst.msk [vmem:[#allocation2 + $0x60] sm:$0xff] %vm746, %v668
  %760 = vst.msk [vmem:[#allocation2 + $0x68] sm:$0xff] %vm746, %v671
  %761 = vst.msk [vmem:[#allocation2 + $0x70] sm:$0xff] %vm746, %v676
  %762 = vst.msk [vmem:[#allocation2 + $0x78] sm:$0xff] %vm746, %v679
  %763 = vst.msk [vmem:[#allocation2 + $0x80] sm:$0xff] %vm746, %v684
  %764 = vst.msk [vmem:[#allocation2 + $0x88] sm:$0xff] %vm746, %v687
  %765 = vst.msk [vmem:[#allocation2 + $0x90] sm:$0xff] %vm746, %v692
  %766 = vst.msk [vmem:[#allocation2 + $0x98] sm:$0xff] %vm746, %v695
  %767 = vst.msk [vmem:[#allocation2 + $0xa0] sm:$0xff] %vm746, %v700
  %768 = vst.msk [vmem:[#allocation2 + $0xa8] sm:$0xff] %vm746, %v703
  %769 = vst.msk [vmem:[#allocation2 + $0xb0] sm:$0xff] %vm746, %v708
  %770 = vst.msk [vmem:[#allocation2 + $0xb8] sm:$0xff] %vm746, %v711
  %771 = vst.msk [vmem:[#allocation2 + $0xc0] sm:$0xff] %vm746, %v716
  %772 = vst.msk [vmem:[#allocation2 + $0xc8] sm:$0xff] %vm746, %v719
  %773 = vst.msk [vmem:[#allocation2 + $0xd0] sm:$0xff] %vm746, %v724
  %774 = vst.msk [vmem:[#allocation2 + $0xd8] sm:$0xff] %vm746, %v727
  %775 = vst.msk [vmem:[#allocation2 + $0xe0] sm:$0xff] %vm746, %v732
  %776 = vst.msk [vmem:[#allocation2 + $0xe8] sm:$0xff] %vm746, %v735
  %777 = vst.msk [vmem:[#allocation2 + $0xf0] sm:$0xff] %vm746, %v740
  %778 = vst.msk [vmem:[#allocation2 + $0xf8] sm:$0xff] %vm746, %v743
  %v779 = vld [vmem:[#allocation2] sm:$0xff]
  %v780 = vld [vmem:[#allocation2 + $0x8] sm:$0xff]
  %v781 = vld [vmem:[#allocation2 + $0x10] sm:$0xff]
  %v782 = vld [vmem:[#allocation2 + $0x18] sm:$0xff]
  %v783 = vxor.u32 %v779, 2147483648
  %v784 = vxor.u32 %v780, 2147483648
  %v785 = vxor.u32 %v781, 2147483648
  %v786 = vxor.u32 %v782, 2147483648
  %v787 = vmul.f32 %v783, 1.442695
  %v788 = vpow.pop %v787
  %v789 = vmul.f32 %v784, 1.442695
  %v790 = vpow.pop %v789
  %v791 = vmul.f32 %v785, 1.442695
  %v792 = vpow.pop %v791
  %v793 = vmul.f32 %v786, 1.442695
  %v794 = vpow.pop %v793
  %v795 = vadd.f32 %v788, 1.0
  %v796 = vadd.f32 %v790, 1.0
  %v797 = vadd.f32 %v792, 1.0
  %v798 = vadd.f32 %v794, 1.0
  %v799 = vrcp.pop %v795
  %v800 = vmul.f32 1.0, %v799
  %v801 = vrcp.pop %v796
  %v802 = vmul.f32 1.0, %v801
  %v803 = vrcp.pop %v797
  %v804 = vmul.f32 1.0, %v803
  %v805 = vrcp.pop %v798
  %v806 = vmul.f32 1.0, %v805
  %v807 = vtanh.pop %v779
  %v808 = vtanh.pop %v780
  %v809 = vtanh.pop %v781
  %v810 = vtanh.pop %v782
  %v811 = vmul.f32 %v800, 0.0
  %v812 = vmul.f32 %v802, 0.0
  %v813 = vmul.f32 %v804, 0.0
  %v814 = vmul.f32 %v806, 0.0
  %v815 = vsub.f32 1.0, %v800
  %v816 = vsub.f32 1.0, %v802
  %v817 = vsub.f32 1.0, %v804
  %v818 = vsub.f32 1.0, %v806
  %823 = vrot.lane.b32.xlu0 %v807, 96
  %v824 = vpop.permute.xlu0 %823
  %825 = vrot.lane.b32.xlu0 %v808, 96
  %v826 = vpop.permute.xlu0 %825
  %827 = vrot.lane.b32.xlu0 %v809, 96
  %v828 = vpop.permute.xlu0 %827
  %829 = vrot.lane.b32.xlu0 %v810, 96
  %v830 = vpop.permute.xlu0 %829
  %v835 = vmul.f32 %v815, %v824
  %v836 = vmul.f32 %v816, %v826
  %v837 = vmul.f32 %v817, %v828
  %v838 = vmul.f32 %v818, %v830
  %v839 = vadd.f32 %v811, %v835
  %v840 = vadd.f32 %v812, %v836
  %v841 = vadd.f32 %v813, %v837
  %v842 = vadd.f32 %v814, %v838
  %v843 = vtanh.pop %v839
  %v844 = vtanh.pop %v840
  %v845 = vtanh.pop %v841
  %v846 = vtanh.pop %v842
  %v847 = vmul.f32 %v800, %v843
  %v848 = vmul.f32 %v802, %v844
  %v849 = vmul.f32 %v804, %v845
  %v850 = vmul.f32 %v806, %v846
  %vm851 = vcmask 261120
  %852 = vst.msk [vmem:[#allocation3] sm:$0xff] %vm851, %v847
  %853 = vst.msk [vmem:[#allocation3 + $0x8] sm:$0xff] %vm851, %v848
  %854 = vst.msk [vmem:[#allocation3 + $0x10] sm:$0xff] %vm851, %v849
  %855 = vst.msk [vmem:[#allocation3 + $0x18] sm:$0xff] %vm851, %v850
  %v856 = vld [vmem:[#allocation2 + $0x20] sm:$0xff]
  %v857 = vld [vmem:[#allocation2 + $0x28] sm:$0xff]
  %v858 = vld [vmem:[#allocation2 + $0x30] sm:$0xff]
  %v859 = vld [vmem:[#allocation2 + $0x38] sm:$0xff]
  %v860 = vxor.u32 %v856, 2147483648
  %v861 = vxor.u32 %v857, 2147483648
  %v862 = vxor.u32 %v858, 2147483648
  %v863 = vxor.u32 %v859, 2147483648
  %v864 = vmul.f32 %v860, 1.442695
  %v865 = vpow.pop %v864
  %v866 = vmul.f32 %v861, 1.442695
  %v867 = vpow.pop %v866
  %v868 = vmul.f32 %v862, 1.442695
  %v869 = vpow.pop %v868
  %v870 = vmul.f32 %v863, 1.442695
  %v871 = vpow.pop %v870
  %v872 = vadd.f32 %v865, 1.0
  %v873 = vadd.f32 %v867, 1.0
  %v874 = vadd.f32 %v869, 1.0
  %v875 = vadd.f32 %v871, 1.0
  %v876 = vrcp.pop %v872
  %v877 = vmul.f32 1.0, %v876
  %v878 = vrcp.pop %v873
  %v879 = vmul.f32 1.0, %v878
  %v880 = vrcp.pop %v874
  %v881 = vmul.f32 1.0, %v880
  %v882 = vrcp.pop %v875
  %v883 = vmul.f32 1.0, %v882
  %v884 = vtanh.pop %v856
  %v885 = vtanh.pop %v857
  %v886 = vtanh.pop %v858
  %v887 = vtanh.pop %v859
  %v888 = vmul.f32 %v877, %v839
  %v889 = vmul.f32 %v879, %v840
  %v890 = vmul.f32 %v881, %v841
  %v891 = vmul.f32 %v883, %v842
  %v892 = vsub.f32 1.0, %v877
  %v893 = vsub.f32 1.0, %v879
  %v894 = vsub.f32 1.0, %v881
  %v895 = vsub.f32 1.0, %v883
  %900 = vrot.lane.b32.xlu0 %v884, 96
  %v901 = vpop.permute.xlu0 %900
  %902 = vrot.lane.b32.xlu0 %v885, 96
  %v903 = vpop.permute.xlu0 %902
  %904 = vrot.lane.b32.xlu0 %v886, 96
  %v905 = vpop.permute.xlu0 %904
  %906 = vrot.lane.b32.xlu0 %v887, 96
  %v907 = vpop.permute.xlu0 %906
  %v912 = vmul.f32 %v892, %v901
  %v913 = vmul.f32 %v893, %v903
  %v914 = vmul.f32 %v894, %v905
  %v915 = vmul.f32 %v895, %v907
  %v916 = vadd.f32 %v888, %v912
  %v917 = vadd.f32 %v889, %v913
  %v918 = vadd.f32 %v890, %v914
  %v919 = vadd.f32 %v891, %v915
  %v920 = vtanh.pop %v916
  %v921 = vtanh.pop %v917
  %v922 = vtanh.pop %v918
  %v923 = vtanh.pop %v919
  %v924 = vmul.f32 %v877, %v920
  %v925 = vmul.f32 %v879, %v921
  %v926 = vmul.f32 %v881, %v922
  %v927 = vmul.f32 %v883, %v923
  %928 = vst.msk [vmem:[#allocation3 + $0x20] sm:$0xff] %vm851, %v924
  %929 = vst.msk [vmem:[#allocation3 + $0x28] sm:$0xff] %vm851, %v925
  %930 = vst.msk [vmem:[#allocation3 + $0x30] sm:$0xff] %vm851, %v926
  %931 = vst.msk [vmem:[#allocation3 + $0x38] sm:$0xff] %vm851, %v927
  %v932 = vld [vmem:[#allocation2 + $0x40] sm:$0xff]
  %v933 = vld [vmem:[#allocation2 + $0x48] sm:$0xff]
  %v934 = vld [vmem:[#allocation2 + $0x50] sm:$0xff]
  %v935 = vld [vmem:[#allocation2 + $0x58] sm:$0xff]
  %v936 = vxor.u32 %v932, 2147483648
  %v937 = vxor.u32 %v933, 2147483648
  %v938 = vxor.u32 %v934, 2147483648
  %v939 = vxor.u32 %v935, 2147483648
  %v940 = vmul.f32 %v936, 1.442695
  %v941 = vpow.pop %v940
  %v942 = vmul.f32 %v937, 1.442695
  %v943 = vpow.pop %v942
  %v944 = vmul.f32 %v938, 1.442695
  %v945 = vpow.pop %v944
  %v946 = vmul.f32 %v939, 1.442695
  %v947 = vpow.pop %v946
  %v948 = vadd.f32 %v941, 1.0
  %v949 = vadd.f32 %v943, 1.0
  %v950 = vadd.f32 %v945, 1.0
  %v951 = vadd.f32 %v947, 1.0
  %v952 = vrcp.pop %v948
  %v953 = vmul.f32 1.0, %v952
  %v954 = vrcp.pop %v949
  %v955 = vmul.f32 1.0, %v954
  %v956 = vrcp.pop %v950
  %v957 = vmul.f32 1.0, %v956
  %v958 = vrcp.pop %v951
  %v959 = vmul.f32 1.0, %v958
  %v960 = vtanh.pop %v932
  %v961 = vtanh.pop %v933
  %v962 = vtanh.pop %v934
  %v963 = vtanh.pop %v935
  %v964 = vmul.f32 %v953, %v916
  %v965 = vmul.f32 %v955, %v917
  %v966 = vmul.f32 %v957, %v918
  %v967 = vmul.f32 %v959, %v919
  %v968 = vsub.f32 1.0, %v953
  %v969 = vsub.f32 1.0, %v955
  %v970 = vsub.f32 1.0, %v957
  %v971 = vsub.f32 1.0, %v959
  %976 = vrot.lane.b32.xlu0 %v960, 96
  %v977 = vpop.permute.xlu0 %976
  %978 = vrot.lane.b32.xlu0 %v961, 96
  %v979 = vpop.permute.xlu0 %978
  %980 = vrot.lane.b32.xlu0 %v962, 96
  %v981 = vpop.permute.xlu0 %980
  %982 = vrot.lane.b32.xlu0 %v963, 96
  %v983 = vpop.permute.xlu0 %982
  %v988 = vmul.f32 %v968, %v977
  %v989 = vmul.f32 %v969, %v979
  %v990 = vmul.f32 %v970, %v981
  %v991 = vmul.f32 %v971, %v983
  %v992 = vadd.f32 %v964, %v988
  %v993 = vadd.f32 %v965, %v989
  %v994 = vadd.f32 %v966, %v990
  %v995 = vadd.f32 %v967, %v991
  %v996 = vtanh.pop %v992
  %v997 = vtanh.pop %v993
  %v998 = vtanh.pop %v994
  %v999 = vtanh.pop %v995
  %v1000 = vmul.f32 %v953, %v996
  %v1001 = vmul.f32 %v955, %v997
  %v1002 = vmul.f32 %v957, %v998
  %v1003 = vmul.f32 %v959, %v999
  %1004 = vst.msk [vmem:[#allocation3 + $0x40] sm:$0xff] %vm851, %v1000
  %1005 = vst.msk [vmem:[#allocation3 + $0x48] sm:$0xff] %vm851, %v1001
  %1006 = vst.msk [vmem:[#allocation3 + $0x50] sm:$0xff] %vm851, %v1002
  %1007 = vst.msk [vmem:[#allocation3 + $0x58] sm:$0xff] %vm851, %v1003
  %v1008 = vld [vmem:[#allocation2 + $0x60] sm:$0xff]
  %v1009 = vld [vmem:[#allocation2 + $0x68] sm:$0xff]
  %v1010 = vld [vmem:[#allocation2 + $0x70] sm:$0xff]
  %v1011 = vld [vmem:[#allocation2 + $0x78] sm:$0xff]
  %v1012 = vxor.u32 %v1008, 2147483648
  %v1013 = vxor.u32 %v1009, 2147483648
  %v1014 = vxor.u32 %v1010, 2147483648
  %v1015 = vxor.u32 %v1011, 2147483648
  %v1016 = vmul.f32 %v1012, 1.442695
  %v1017 = vpow.pop %v1016
  %v1018 = vmul.f32 %v1013, 1.442695
  %v1019 = vpow.pop %v1018
  %v1020 = vmul.f32 %v1014, 1.442695
  %v1021 = vpow.pop %v1020
  %v1022 = vmul.f32 %v1015, 1.442695
  %v1023 = vpow.pop %v1022
  %v1024 = vadd.f32 %v1017, 1.0
  %v1025 = vadd.f32 %v1019, 1.0
  %v1026 = vadd.f32 %v1021, 1.0
  %v1027 = vadd.f32 %v1023, 1.0
  %v1028 = vrcp.pop %v1024
  %v1029 = vmul.f32 1.0, %v1028
  %v1030 = vrcp.pop %v1025
  %v1031 = vmul.f32 1.0, %v1030
  %v1032 = vrcp.pop %v1026
  %v1033 = vmul.f32 1.0, %v1032
  %v1034 = vrcp.pop %v1027
  %v1035 = vmul.f32 1.0, %v1034
  %v1036 = vtanh.pop %v1008
  %v1037 = vtanh.pop %v1009
  %v1038 = vtanh.pop %v1010
  %v1039 = vtanh.pop %v1011
  %v1040 = vmul.f32 %v1029, %v992
  %v1041 = vmul.f32 %v1031, %v993
  %v1042 = vmul.f32 %v1033, %v994
  %v1043 = vmul.f32 %v1035, %v995
  %v1044 = vsub.f32 1.0, %v1029
  %v1045 = vsub.f32 1.0, %v1031
  %v1046 = vsub.f32 1.0, %v1033
  %v1047 = vsub.f32 1.0, %v1035
  %1052 = vrot.lane.b32.xlu0 %v1036, 96
  %v1053 = vpop.permute.xlu0 %1052
  %1054 = vrot.lane.b32.xlu0 %v1037, 96
  %v1055 = vpop.permute.xlu0 %1054
  %1056 = vrot.lane.b32.xlu0 %v1038, 96
  %v1057 = vpop.permute.xlu0 %1056
  %1058 = vrot.lane.b32.xlu0 %v1039, 96
  %v1059 = vpop.permute.xlu0 %1058
  %v1064 = vmul.f32 %v1044, %v1053
  %v1065 = vmul.f32 %v1045, %v1055
  %v1066 = vmul.f32 %v1046, %v1057
  %v1067 = vmul.f32 %v1047, %v1059
  %v1068 = vadd.f32 %v1040, %v1064
  %v1069 = vadd.f32 %v1041, %v1065
  %v1070 = vadd.f32 %v1042, %v1066
  %v1071 = vadd.f32 %v1043, %v1067
  %v1072 = vtanh.pop %v1068
  %v1073 = vtanh.pop %v1069
  %v1074 = vtanh.pop %v1070
  %v1075 = vtanh.pop %v1071
  %v1076 = vmul.f32 %v1029, %v1072
  %v1077 = vmul.f32 %v1031, %v1073
  %v1078 = vmul.f32 %v1033, %v1074
  %v1079 = vmul.f32 %v1035, %v1075
  %1080 = vst.msk [vmem:[#allocation3 + $0x60] sm:$0xff] %vm851, %v1076
  %1081 = vst.msk [vmem:[#allocation3 + $0x68] sm:$0xff] %vm851, %v1077
  %1082 = vst.msk [vmem:[#allocation3 + $0x70] sm:$0xff] %vm851, %v1078
  %1083 = vst.msk [vmem:[#allocation3 + $0x78] sm:$0xff] %vm851, %v1079
  %v1084 = vld [vmem:[#allocation2 + $0x80] sm:$0xff]
  %v1085 = vld [vmem:[#allocation2 + $0x88] sm:$0xff]
  %v1086 = vld [vmem:[#allocation2 + $0x90] sm:$0xff]
  %v1087 = vld [vmem:[#allocation2 + $0x98] sm:$0xff]
  %v1088 = vxor.u32 %v1084, 2147483648
  %v1089 = vxor.u32 %v1085, 2147483648
  %v1090 = vxor.u32 %v1086, 2147483648
  %v1091 = vxor.u32 %v1087, 2147483648
  %v1092 = vmul.f32 %v1088, 1.442695
  %v1093 = vpow.pop %v1092
  %v1094 = vmul.f32 %v1089, 1.442695
  %v1095 = vpow.pop %v1094
  %v1096 = vmul.f32 %v1090, 1.442695
  %v1097 = vpow.pop %v1096
  %v1098 = vmul.f32 %v1091, 1.442695
  %v1099 = vpow.pop %v1098
  %v1100 = vadd.f32 %v1093, 1.0
  %v1101 = vadd.f32 %v1095, 1.0
  %v1102 = vadd.f32 %v1097, 1.0
  %v1103 = vadd.f32 %v1099, 1.0
  %v1104 = vrcp.pop %v1100
  %v1105 = vmul.f32 1.0, %v1104
  %v1106 = vrcp.pop %v1101
  %v1107 = vmul.f32 1.0, %v1106
  %v1108 = vrcp.pop %v1102
  %v1109 = vmul.f32 1.0, %v1108
  %v1110 = vrcp.pop %v1103
  %v1111 = vmul.f32 1.0, %v1110
  %v1112 = vtanh.pop %v1084
  %v1113 = vtanh.pop %v1085
  %v1114 = vtanh.pop %v1086
  %v1115 = vtanh.pop %v1087
  %v1116 = vmul.f32 %v1105, %v1068
  %v1117 = vmul.f32 %v1107, %v1069
  %v1118 = vmul.f32 %v1109, %v1070
  %v1119 = vmul.f32 %v1111, %v1071
  %v1120 = vsub.f32 1.0, %v1105
  %v1121 = vsub.f32 1.0, %v1107
  %v1122 = vsub.f32 1.0, %v1109
  %v1123 = vsub.f32 1.0, %v1111
  %1128 = vrot.lane.b32.xlu0 %v1112, 96
  %v1129 = vpop.permute.xlu0 %1128
  %1130 = vrot.lane.b32.xlu0 %v1113, 96
  %v1131 = vpop.permute.xlu0 %1130
  %1132 = vrot.lane.b32.xlu0 %v1114, 96
  %v1133 = vpop.permute.xlu0 %1132
  %1134 = vrot.lane.b32.xlu0 %v1115, 96
  %v1135 = vpop.permute.xlu0 %1134
  %v1140 = vmul.f32 %v1120, %v1129
  %v1141 = vmul.f32 %v1121, %v1131
  %v1142 = vmul.f32 %v1122, %v1133
  %v1143 = vmul.f32 %v1123, %v1135
  %v1144 = vadd.f32 %v1116, %v1140
  %v1145 = vadd.f32 %v1117, %v1141
  %v1146 = vadd.f32 %v1118, %v1142
  %v1147 = vadd.f32 %v1119, %v1143
  %v1148 = vtanh.pop %v1144
  %v1149 = vtanh.pop %v1145
  %v1150 = vtanh.pop %v1146
  %v1151 = vtanh.pop %v1147
  %v1152 = vmul.f32 %v1105, %v1148
  %v1153 = vmul.f32 %v1107, %v1149
  %v1154 = vmul.f32 %v1109, %v1150
  %v1155 = vmul.f32 %v1111, %v1151
  %1156 = vst.msk [vmem:[#allocation3 + $0x80] sm:$0xff] %vm851, %v1152
  %1157 = vst.msk [vmem:[#allocation3 + $0x88] sm:$0xff] %vm851, %v1153
  %1158 = vst.msk [vmem:[#allocation3 + $0x90] sm:$0xff] %vm851, %v1154
  %1159 = vst.msk [vmem:[#allocation3 + $0x98] sm:$0xff] %vm851, %v1155
  %v1160 = vld [vmem:[#allocation2 + $0xa0] sm:$0xff]
  %v1161 = vld [vmem:[#allocation2 + $0xa8] sm:$0xff]
  %v1162 = vld [vmem:[#allocation2 + $0xb0] sm:$0xff]
  %v1163 = vld [vmem:[#allocation2 + $0xb8] sm:$0xff]
  %v1164 = vxor.u32 %v1160, 2147483648
  %v1165 = vxor.u32 %v1161, 2147483648
  %v1166 = vxor.u32 %v1162, 2147483648
  %v1167 = vxor.u32 %v1163, 2147483648
  %v1168 = vmul.f32 %v1164, 1.442695
  %v1169 = vpow.pop %v1168
  %v1170 = vmul.f32 %v1165, 1.442695
  %v1171 = vpow.pop %v1170
  %v1172 = vmul.f32 %v1166, 1.442695
  %v1173 = vpow.pop %v1172
  %v1174 = vmul.f32 %v1167, 1.442695
  %v1175 = vpow.pop %v1174
  %v1176 = vadd.f32 %v1169, 1.0
  %v1177 = vadd.f32 %v1171, 1.0
  %v1178 = vadd.f32 %v1173, 1.0
  %v1179 = vadd.f32 %v1175, 1.0
  %v1180 = vrcp.pop %v1176
  %v1181 = vmul.f32 1.0, %v1180
  %v1182 = vrcp.pop %v1177
  %v1183 = vmul.f32 1.0, %v1182
  %v1184 = vrcp.pop %v1178
  %v1185 = vmul.f32 1.0, %v1184
  %v1186 = vrcp.pop %v1179
  %v1187 = vmul.f32 1.0, %v1186
  %v1188 = vtanh.pop %v1160
  %v1189 = vtanh.pop %v1161
  %v1190 = vtanh.pop %v1162
  %v1191 = vtanh.pop %v1163
  %v1192 = vmul.f32 %v1181, %v1144
  %v1193 = vmul.f32 %v1183, %v1145
  %v1194 = vmul.f32 %v1185, %v1146
  %v1195 = vmul.f32 %v1187, %v1147
  %v1196 = vsub.f32 1.0, %v1181
  %v1197 = vsub.f32 1.0, %v1183
  %v1198 = vsub.f32 1.0, %v1185
  %v1199 = vsub.f32 1.0, %v1187
  %1204 = vrot.lane.b32.xlu0 %v1188, 96
  %v1205 = vpop.permute.xlu0 %1204
  %1206 = vrot.lane.b32.xlu0 %v1189, 96
  %v1207 = vpop.permute.xlu0 %1206
  %1208 = vrot.lane.b32.xlu0 %v1190, 96
  %v1209 = vpop.permute.xlu0 %1208
  %1210 = vrot.lane.b32.xlu0 %v1191, 96
  %v1211 = vpop.permute.xlu0 %1210
  %v1216 = vmul.f32 %v1196, %v1205
  %v1217 = vmul.f32 %v1197, %v1207
  %v1218 = vmul.f32 %v1198, %v1209
  %v1219 = vmul.f32 %v1199, %v1211
  %v1220 = vadd.f32 %v1192, %v1216
  %v1221 = vadd.f32 %v1193, %v1217
  %v1222 = vadd.f32 %v1194, %v1218
  %v1223 = vadd.f32 %v1195, %v1219
  %v1224 = vtanh.pop %v1220
  %v1225 = vtanh.pop %v1221
  %v1226 = vtanh.pop %v1222
  %v1227 = vtanh.pop %v1223
  %v1228 = vmul.f32 %v1181, %v1224
  %v1229 = vmul.f32 %v1183, %v1225
  %v1230 = vmul.f32 %v1185, %v1226
  %v1231 = vmul.f32 %v1187, %v1227
  %1232 = vst.msk [vmem:[#allocation3 + $0xa0] sm:$0xff] %vm851, %v1228
  %1233 = vst.msk [vmem:[#allocation3 + $0xa8] sm:$0xff] %vm851, %v1229
  %1234 = vst.msk [vmem:[#allocation3 + $0xb0] sm:$0xff] %vm851, %v1230
  %1235 = vst.msk [vmem:[#allocation3 + $0xb8] sm:$0xff] %vm851, %v1231
  %v1236 = vld [vmem:[#allocation2 + $0xc0] sm:$0xff]
  %v1237 = vld [vmem:[#allocation2 + $0xc8] sm:$0xff]
  %v1238 = vld [vmem:[#allocation2 + $0xd0] sm:$0xff]
  %v1239 = vld [vmem:[#allocation2 + $0xd8] sm:$0xff]
  %v1240 = vxor.u32 %v1236, 2147483648
  %v1241 = vxor.u32 %v1237, 2147483648
  %v1242 = vxor.u32 %v1238, 2147483648
  %v1243 = vxor.u32 %v1239, 2147483648
  %v1244 = vmul.f32 %v1240, 1.442695
  %v1245 = vpow.pop %v1244
  %v1246 = vmul.f32 %v1241, 1.442695
  %v1247 = vpow.pop %v1246
  %v1248 = vmul.f32 %v1242, 1.442695
  %v1249 = vpow.pop %v1248
  %v1250 = vmul.f32 %v1243, 1.442695
  %v1251 = vpow.pop %v1250
  %v1252 = vadd.f32 %v1245, 1.0
  %v1253 = vadd.f32 %v1247, 1.0
  %v1254 = vadd.f32 %v1249, 1.0
  %v1255 = vadd.f32 %v1251, 1.0
  %v1256 = vrcp.pop %v1252
  %v1257 = vmul.f32 1.0, %v1256
  %v1258 = vrcp.pop %v1253
  %v1259 = vmul.f32 1.0, %v1258
  %v1260 = vrcp.pop %v1254
  %v1261 = vmul.f32 1.0, %v1260
  %v1262 = vrcp.pop %v1255
  %v1263 = vmul.f32 1.0, %v1262
  %v1264 = vtanh.pop %v1236
  %v1265 = vtanh.pop %v1237
  %v1266 = vtanh.pop %v1238
  %v1267 = vtanh.pop %v1239
  %v1268 = vmul.f32 %v1257, %v1220
  %v1269 = vmul.f32 %v1259, %v1221
  %v1270 = vmul.f32 %v1261, %v1222
  %v1271 = vmul.f32 %v1263, %v1223
  %v1272 = vsub.f32 1.0, %v1257
  %v1273 = vsub.f32 1.0, %v1259
  %v1274 = vsub.f32 1.0, %v1261
  %v1275 = vsub.f32 1.0, %v1263
  %1280 = vrot.lane.b32.xlu0 %v1264, 96
  %v1281 = vpop.permute.xlu0 %1280
  %1282 = vrot.lane.b32.xlu0 %v1265, 96
  %v1283 = vpop.permute.xlu0 %1282
  %1284 = vrot.lane.b32.xlu0 %v1266, 96
  %v1285 = vpop.permute.xlu0 %1284
  %1286 = vrot.lane.b32.xlu0 %v1267, 96
  %v1287 = vpop.permute.xlu0 %1286
  %v1292 = vmul.f32 %v1272, %v1281
  %v1293 = vmul.f32 %v1273, %v1283
  %v1294 = vmul.f32 %v1274, %v1285
  %v1295 = vmul.f32 %v1275, %v1287
  %v1296 = vadd.f32 %v1268, %v1292
  %v1297 = vadd.f32 %v1269, %v1293
  %v1298 = vadd.f32 %v1270, %v1294
  %v1299 = vadd.f32 %v1271, %v1295
  %v1300 = vtanh.pop %v1296
  %v1301 = vtanh.pop %v1297
  %v1302 = vtanh.pop %v1298
  %v1303 = vtanh.pop %v1299
  %v1304 = vmul.f32 %v1257, %v1300
  %v1305 = vmul.f32 %v1259, %v1301
  %v1306 = vmul.f32 %v1261, %v1302
  %v1307 = vmul.f32 %v1263, %v1303
  %1308 = vst.msk [vmem:[#allocation3 + $0xc0] sm:$0xff] %vm851, %v1304
  %1309 = vst.msk [vmem:[#allocation3 + $0xc8] sm:$0xff] %vm851, %v1305
  %1310 = vst.msk [vmem:[#allocation3 + $0xd0] sm:$0xff] %vm851, %v1306
  %1311 = vst.msk [vmem:[#allocation3 + $0xd8] sm:$0xff] %vm851, %v1307
  %v1312 = vld [vmem:[#allocation2 + $0xe0] sm:$0xff]
  %v1313 = vld [vmem:[#allocation2 + $0xe8] sm:$0xff]
  %v1314 = vld [vmem:[#allocation2 + $0xf0] sm:$0xff]
  %v1315 = vld [vmem:[#allocation2 + $0xf8] sm:$0xff]
  %v1316 = vxor.u32 %v1312, 2147483648
  %v1317 = vxor.u32 %v1313, 2147483648
  %v1318 = vxor.u32 %v1314, 2147483648
  %v1319 = vxor.u32 %v1315, 2147483648
  %v1320 = vmul.f32 %v1316, 1.442695
  %v1321 = vpow.pop %v1320
  %v1322 = vmul.f32 %v1317, 1.442695
  %v1323 = vpow.pop %v1322
  %v1324 = vmul.f32 %v1318, 1.442695
  %v1325 = vpow.pop %v1324
  %v1326 = vmul.f32 %v1319, 1.442695
  %v1327 = vpow.pop %v1326
  %v1328 = vadd.f32 %v1321, 1.0
  %v1329 = vadd.f32 %v1323, 1.0
  %v1330 = vadd.f32 %v1325, 1.0
  %v1331 = vadd.f32 %v1327, 1.0
  %v1332 = vrcp.pop %v1328
  %v1333 = vmul.f32 1.0, %v1332
  %v1334 = vrcp.pop %v1329
  %v1335 = vmul.f32 1.0, %v1334
  %v1336 = vrcp.pop %v1330
  %v1337 = vmul.f32 1.0, %v1336
  %v1338 = vrcp.pop %v1331
  %v1339 = vmul.f32 1.0, %v1338
  %v1340 = vtanh.pop %v1312
  %v1341 = vtanh.pop %v1313
  %v1342 = vtanh.pop %v1314
  %v1343 = vtanh.pop %v1315
  %v1344 = vmul.f32 %v1333, %v1296
  %v1345 = vmul.f32 %v1335, %v1297
  %v1346 = vmul.f32 %v1337, %v1298
  %v1347 = vmul.f32 %v1339, %v1299
  %v1348 = vsub.f32 1.0, %v1333
  %v1349 = vsub.f32 1.0, %v1335
  %v1350 = vsub.f32 1.0, %v1337
  %v1351 = vsub.f32 1.0, %v1339
  %1356 = vrot.lane.b32.xlu0 %v1340, 96
  %v1357 = vpop.permute.xlu0 %1356
  %1358 = vrot.lane.b32.xlu0 %v1341, 96
  %v1359 = vpop.permute.xlu0 %1358
  %1360 = vrot.lane.b32.xlu0 %v1342, 96
  %v1361 = vpop.permute.xlu0 %1360
  %1362 = vrot.lane.b32.xlu0 %v1343, 96
  %v1363 = vpop.permute.xlu0 %1362
  %v1368 = vmul.f32 %v1348, %v1357
  %v1369 = vmul.f32 %v1349, %v1359
  %v1370 = vmul.f32 %v1350, %v1361
  %v1371 = vmul.f32 %v1351, %v1363
  %v1372 = vadd.f32 %v1344, %v1368
  %v1373 = vadd.f32 %v1345, %v1369
  %v1374 = vadd.f32 %v1346, %v1370
  %v1375 = vadd.f32 %v1347, %v1371
  %v1376 = vtanh.pop %v1372
  %v1377 = vtanh.pop %v1373
  %v1378 = vtanh.pop %v1374
  %v1379 = vtanh.pop %v1375
  %v1380 = vmul.f32 %v1333, %v1376
  %v1381 = vmul.f32 %v1335, %v1377
  %v1382 = vmul.f32 %v1337, %v1378
  %v1383 = vmul.f32 %v1339, %v1379
  %1384 = vst.msk [vmem:[#allocation3 + $0xe0] sm:$0xff] %vm851, %v1380
  %1385 = vst.msk [vmem:[#allocation3 + $0xe8] sm:$0xff] %vm851, %v1381
  %1386 = vst.msk [vmem:[#allocation3 + $0xf0] sm:$0xff] %vm851, %v1382
  %1387 = vst.msk [vmem:[#allocation3 + $0xf8] sm:$0xff] %vm851, %v1383
  %v1388 = vld [vmem:[#allocation3] sm:$0xff]
  %v1389 = vld [vmem:[#allocation3 + $0x8] sm:$0xff]
  %v1390 = vld [vmem:[#allocation3 + $0x10] sm:$0xff]
  %v1391 = vld [vmem:[#allocation3 + $0x18] sm:$0xff]
  %v1392 = vld [vmem:[#allocation3 + $0x20] sm:$0xff]
  %v1393 = vld [vmem:[#allocation3 + $0x28] sm:$0xff]
  %v1394 = vld [vmem:[#allocation3 + $0x30] sm:$0xff]
  %v1395 = vld [vmem:[#allocation3 + $0x38] sm:$0xff]
  %v1396 = vld [vmem:[#allocation3 + $0x40] sm:$0xff]
  %v1397 = vld [vmem:[#allocation3 + $0x48] sm:$0xff]
  %v1398 = vld [vmem:[#allocation3 + $0x50] sm:$0xff]
  %v1399 = vld [vmem:[#allocation3 + $0x58] sm:$0xff]
  %v1400 = vld [vmem:[#allocation3 + $0x60] sm:$0xff]
  %v1401 = vld [vmem:[#allocation3 + $0x68] sm:$0xff]
  %v1402 = vld [vmem:[#allocation3 + $0x70] sm:$0xff]
  %v1403 = vld [vmem:[#allocation3 + $0x78] sm:$0xff]
  %v1404 = vld [vmem:[#allocation3 + $0x80] sm:$0xff]
  %v1405 = vld [vmem:[#allocation3 + $0x88] sm:$0xff]
  %v1406 = vld [vmem:[#allocation3 + $0x90] sm:$0xff]
  %v1407 = vld [vmem:[#allocation3 + $0x98] sm:$0xff]
  %v1408 = vld [vmem:[#allocation3 + $0xa0] sm:$0xff]
  %v1409 = vld [vmem:[#allocation3 + $0xa8] sm:$0xff]
  %v1410 = vld [vmem:[#allocation3 + $0xb0] sm:$0xff]
  %v1411 = vld [vmem:[#allocation3 + $0xb8] sm:$0xff]
  %v1412 = vld [vmem:[#allocation3 + $0xc0] sm:$0xff]
  %v1413 = vld [vmem:[#allocation3 + $0xc8] sm:$0xff]
  %v1414 = vld [vmem:[#allocation3 + $0xd0] sm:$0xff]
  %v1415 = vld [vmem:[#allocation3 + $0xd8] sm:$0xff]
  %v1416 = vld [vmem:[#allocation3 + $0xe0] sm:$0xff]
  %v1417 = vld [vmem:[#allocation3 + $0xe8] sm:$0xff]
  %v1418 = vld [vmem:[#allocation3 + $0xf0] sm:$0xff]
  %v1419 = vld [vmem:[#allocation3 + $0xf8] sm:$0xff]
  %v1420 = vpack.c.bf16 %v1389, %v1388
  %v1421 = vpack.c.bf16 %v1391, %v1390
  %v1422 = vpack.c.bf16 %v1393, %v1392
  %v1423 = vpack.c.bf16 %v1395, %v1394
  %v1424 = vpack.c.bf16 %v1397, %v1396
  %v1425 = vpack.c.bf16 %v1399, %v1398
  %v1426 = vpack.c.bf16 %v1401, %v1400
  %v1427 = vpack.c.bf16 %v1403, %v1402
  %v1428 = vpack.c.bf16 %v1405, %v1404
  %v1429 = vpack.c.bf16 %v1407, %v1406
  %v1430 = vpack.c.bf16 %v1409, %v1408
  %v1431 = vpack.c.bf16 %v1411, %v1410
  %v1432 = vpack.c.bf16 %v1413, %v1412
  %v1433 = vpack.c.bf16 %v1415, %v1414
  %v1434 = vpack.c.bf16 %v1417, %v1416
  %v1435 = vpack.c.bf16 %v1419, %v1418
  %v1436 = vld [vmem:[%s2 + $0x8] sm:$0xf]
  %v1437 = vld [vmem:[%s2 + $0xc] sm:$0xf]
  %v1438 = vld [vmem:[%s2 + $0x10] sm:$0xf]
  %v1439 = vld [vmem:[%s2 + $0x14] sm:$0xf]
  %v1444 = vunpack.c.l.b16 %v1436
  %v1445 = vunpack.c.l.b16 %v1437
  %v1446 = vunpack.c.l.b16 %v1438
  %v1447 = vunpack.c.l.b16 %v1439
  %v1448 = vpack.c.b16 %v1445, %v1444
  %v1449 = vpack.c.b16 %v1447, %v1446
  %v1453 = vsel %vm851, %v1420, 0
  %v1456 = vsel %vm851, %v1421, 0
  %v1459 = vsel %vm851, %v1422, 0
  %v1462 = vsel %vm851, %v1423, 0
  %v1465 = vsel %vm851, %v1424, 0
  %v1468 = vsel %vm851, %v1425, 0
  %v1471 = vsel %vm851, %v1426, 0
  %v1474 = vsel %vm851, %v1427, 0
  %v1477 = vsel %vm851, %v1428, 0
  %v1480 = vsel %vm851, %v1429, 0
  %v1483 = vsel %vm851, %v1430, 0
  %v1486 = vsel %vm851, %v1431, 0
  %v1489 = vsel %vm851, %v1432, 0
  %v1492 = vsel %vm851, %v1433, 0
  %v1495 = vsel %vm851, %v1434, 0
  %v1498 = vsel %vm851, %v1435, 0
  %1500 = vmatprep.subr.bf16.mxu0 0
  %1501 = vmatpush1.bf16.msra.mxu0 %v1448
  %1502 = vmatprep.subr.bf16.mxu0 0
  %1503 = vmatpush1.bf16.msra.mxu0 %v1449
  %1504 = vmatprep.subr.bf16.mxu0 0
  %1505 = vmatpush1.bf16.msra.mxu0 0
  %1506 = vmatprep.subr.bf16.mxu0 0
  %1507 = vmatpush1.bf16.msra.mxu0 0
  %1508 = vmatprep.subr.bf16.mxu0 0
  %1509 = vmatpush1.bf16.msra.mxu0 0
  %1510 = vmatprep.subr.bf16.mxu0 0
  %1511 = vmatpush1.bf16.msra.mxu0 0
  %1512 = vmatprep.subr.bf16.mxu0 0
  %1513 = vmatpush1.bf16.msra.mxu0 0
  %1514 = vmatprep.subr.bf16.mxu0 0
  %1515 = vmatpush1.bf16.msra.mxu0 0
  %1516 = vmatprep.subr.bf16.mxu0 0
  %1517 = vmatpush1.bf16.msra.mxu0 0
  %1518 = vmatprep.subr.bf16.mxu0 0
  %1519 = vmatpush1.bf16.msra.mxu0 0
  %1520 = vmatprep.subr.bf16.mxu0 0
  %1521 = vmatpush1.bf16.msra.mxu0 0
  %1522 = vmatprep.subr.bf16.mxu0 0
  %1523 = vmatpush1.bf16.msra.mxu0 0
  %1524 = vmatprep.subr.bf16.mxu0 0
  %1525 = vmatpush1.bf16.msra.mxu0 0
  %1526 = vmatprep.subr.bf16.mxu0 0
  %1527 = vmatpush1.bf16.msra.mxu0 0
  %1528 = vmatprep.subr.bf16.mxu0 0
  %1529 = vmatpush1.bf16.msra.mxu0 0
  %1530 = vmatprep.subr.bf16.mxu0 0
  %1531 = vmatpush1.bf16.msra.mxu0 0
  %1532 = vmatprep.mubr.bf16.mxu0 0
  %1533 = vmatmul.mubr.bf16.gmra.mrb[0].mxu0 %v1453
  %v1534 = vpop.f32.mrb[0].mxu0
  %v1535 = vadd.f32 0.0, %v1534
  %v1536 = vpop.f32.mrb[0].mxu0
  %v1537 = vpop.f32.mrb[0].mxu0
  %v1538 = vadd.f32 0.0, %v1537
  %v1539 = vpop.f32.mrb[0].mxu0
  %1540 = vmatprep.mubr.bf16.mxu0 0
  %1541 = vmatmul.mubr.bf16.gmra.mrb[0].mxu0 %v1456
  %v1542 = vpop.f32.mrb[0].mxu0
  %v1543 = vadd.f32 0.0, %v1542
  %v1544 = vpop.f32.mrb[0].mxu0
  %v1545 = vpop.f32.mrb[0].mxu0
  %v1546 = vadd.f32 0.0, %v1545
  %v1547 = vpop.f32.mrb[0].mxu0
  %1548 = vmatprep.mubr.bf16.mxu0 0
  %1549 = vmatmul.mubr.bf16.gmra.mrb[0].mxu0 %v1459
  %v1550 = vpop.f32.mrb[0].mxu0
  %v1551 = vadd.f32 0.0, %v1550
  %v1552 = vpop.f32.mrb[0].mxu0
  %v1553 = vpop.f32.mrb[0].mxu0
  %v1554 = vadd.f32 0.0, %v1553
  %v1555 = vpop.f32.mrb[0].mxu0
  %1556 = vmatprep.mubr.bf16.mxu0 0
  %1557 = vmatmul.mubr.bf16.gmra.mrb[0].mxu0 %v1462
  %v1558 = vpop.f32.mrb[0].mxu0
  %v1559 = vadd.f32 0.0, %v1558
  %v1560 = vpop.f32.mrb[0].mxu0
  %v1561 = vpop.f32.mrb[0].mxu0
  %v1562 = vadd.f32 0.0, %v1561
  %v1563 = vpop.f32.mrb[0].mxu0
  %1564 = vmatprep.mubr.bf16.mxu0 0
  %1565 = vmatmul.mubr.bf16.gmra.mrb[0].mxu0 %v1465
  %v1566 = vpop.f32.mrb[0].mxu0
  %v1567 = vadd.f32 0.0, %v1566
  %v1568 = vpop.f32.mrb[0].mxu0
  %v1569 = vpop.f32.mrb[0].mxu0
  %v1570 = vadd.f32 0.0, %v1569
  %v1571 = vpop.f32.mrb[0].mxu0
  %1572 = vmatprep.mubr.bf16.mxu0 0
  %1573 = vmatmul.mubr.bf16.gmra.mrb[0].mxu0 %v1468
  %v1574 = vpop.f32.mrb[0].mxu0
  %v1575 = vadd.f32 0.0, %v1574
  %v1576 = vpop.f32.mrb[0].mxu0
  %v1577 = vpop.f32.mrb[0].mxu0
  %v1578 = vadd.f32 0.0, %v1577
  %v1579 = vpop.f32.mrb[0].mxu0
  %1580 = vmatprep.mubr.bf16.mxu0 0
  %1581 = vmatmul.mubr.bf16.gmra.mrb[0].mxu0 %v1471
  %v1582 = vpop.f32.mrb[0].mxu0
  %v1583 = vadd.f32 0.0, %v1582
  %v1584 = vpop.f32.mrb[0].mxu0
  %v1585 = vpop.f32.mrb[0].mxu0
  %v1586 = vadd.f32 0.0, %v1585
  %v1587 = vpop.f32.mrb[0].mxu0
  %1588 = vmatprep.mubr.bf16.mxu0 0
  %1589 = vmatmul.mubr.bf16.gmra.mrb[0].mxu0 %v1474
  %v1590 = vpop.f32.mrb[0].mxu0
  %v1591 = vadd.f32 0.0, %v1590
  %v1592 = vpop.f32.mrb[0].mxu0
  %v1593 = vpop.f32.mrb[0].mxu0
  %v1594 = vadd.f32 0.0, %v1593
  %v1595 = vpop.f32.mrb[0].mxu0
  %1596 = vmatprep.mubr.bf16.mxu0 0
  %1597 = vmatmul.mubr.bf16.gmra.mrb[0].mxu0 %v1477
  %v1598 = vpop.f32.mrb[0].mxu0
  %v1599 = vadd.f32 0.0, %v1598
  %v1600 = vpop.f32.mrb[0].mxu0
  %v1601 = vpop.f32.mrb[0].mxu0
  %v1602 = vadd.f32 0.0, %v1601
  %v1603 = vpop.f32.mrb[0].mxu0
  %1604 = vmatprep.mubr.bf16.mxu0 0
  %1605 = vmatmul.mubr.bf16.gmra.mrb[0].mxu0 %v1480
  %v1606 = vpop.f32.mrb[0].mxu0
  %v1607 = vadd.f32 0.0, %v1606
  %v1608 = vpop.f32.mrb[0].mxu0
  %v1609 = vpop.f32.mrb[0].mxu0
  %v1610 = vadd.f32 0.0, %v1609
  %v1611 = vpop.f32.mrb[0].mxu0
  %1612 = vmatprep.mubr.bf16.mxu0 0
  %1613 = vmatmul.mubr.bf16.gmra.mrb[0].mxu0 %v1483
  %v1614 = vpop.f32.mrb[0].mxu0
  %v1615 = vadd.f32 0.0, %v1614
  %v1616 = vpop.f32.mrb[0].mxu0
  %v1617 = vpop.f32.mrb[0].mxu0
  %v1618 = vadd.f32 0.0, %v1617
  %v1619 = vpop.f32.mrb[0].mxu0
  %1620 = vmatprep.mubr.bf16.mxu0 0
  %1621 = vmatmul.mubr.bf16.gmra.mrb[0].mxu0 %v1486
  %v1622 = vpop.f32.mrb[0].mxu0
  %v1623 = vadd.f32 0.0, %v1622
  %v1624 = vpop.f32.mrb[0].mxu0
  %v1625 = vpop.f32.mrb[0].mxu0
  %v1626 = vadd.f32 0.0, %v1625
  %v1627 = vpop.f32.mrb[0].mxu0
  %1628 = vmatprep.mubr.bf16.mxu0 0
  %1629 = vmatmul.mubr.bf16.gmra.mrb[0].mxu0 %v1489
  %v1630 = vpop.f32.mrb[0].mxu0
  %v1631 = vadd.f32 0.0, %v1630
  %v1632 = vpop.f32.mrb[0].mxu0
  %v1633 = vpop.f32.mrb[0].mxu0
  %v1634 = vadd.f32 0.0, %v1633
  %v1635 = vpop.f32.mrb[0].mxu0
  %1636 = vmatprep.mubr.bf16.mxu0 0
  %1637 = vmatmul.mubr.bf16.gmra.mrb[0].mxu0 %v1492
  %v1638 = vpop.f32.mrb[0].mxu0
  %v1639 = vadd.f32 0.0, %v1638
  %v1640 = vpop.f32.mrb[0].mxu0
  %v1641 = vpop.f32.mrb[0].mxu0
  %v1642 = vadd.f32 0.0, %v1641
  %v1643 = vpop.f32.mrb[0].mxu0
  %1644 = vmatprep.mubr.bf16.mxu0 0
  %1645 = vmatmul.mubr.bf16.gmra.mrb[0].mxu0 %v1495
  %v1646 = vpop.f32.mrb[0].mxu0
  %v1647 = vadd.f32 0.0, %v1646
  %v1648 = vpop.f32.mrb[0].mxu0
  %v1649 = vpop.f32.mrb[0].mxu0
  %v1650 = vadd.f32 0.0, %v1649
  %v1651 = vpop.f32.mrb[0].mxu0
  %1652 = vmatprep.mubr.bf16.mxu0 0
  %1653 = vmatmul.mubr.bf16.gmra.mrb[0].mxu0 %v1498
  %v1654 = vpop.f32.mrb[0].mxu0
  %v1655 = vadd.f32 0.0, %v1654
  %v1656 = vpop.f32.mrb[0].mxu0
  %v1657 = vpop.f32.mrb[0].mxu0
  %v1658 = vadd.f32 0.0, %v1657
  %v1659 = vpop.f32.mrb[0].mxu0
  %1660 = vdwg.mxu0
  %s1661 = scalar_lea.vmem %s1, 256
  %v1662 = vld [vmem:[%s1661] sm:$0xff]
  %v1663 = vld [vmem:[%s1661 + $0x8] sm:$0xff]
  %v1664 = vld [vmem:[%s1661 + $0x10] sm:$0xff]
  %v1665 = vld [vmem:[%s1661 + $0x18] sm:$0xff]
  %v1666 = vld [vmem:[%s1661 + $0x20] sm:$0xff]
  %v1667 = vld [vmem:[%s1661 + $0x28] sm:$0xff]
  %v1668 = vld [vmem:[%s1661 + $0x30] sm:$0xff]
  %v1669 = vld [vmem:[%s1661 + $0x38] sm:$0xff]
  %v1670 = vld [vmem:[%s1661 + $0x40] sm:$0xff]
  %v1671 = vld [vmem:[%s1661 + $0x48] sm:$0xff]
  %v1672 = vld [vmem:[%s1661 + $0x50] sm:$0xff]
  %v1673 = vld [vmem:[%s1661 + $0x58] sm:$0xff]
  %v1674 = vld [vmem:[%s1661 + $0x60] sm:$0xff]
  %v1675 = vld [vmem:[%s1661 + $0x68] sm:$0xff]
  %v1676 = vld [vmem:[%s1661 + $0x70] sm:$0xff]
  %v1677 = vld [vmem:[%s1661 + $0x78] sm:$0xff]
  %v1678 = vld [vmem:[%s1661 + $0x80] sm:$0xff]
  %v1679 = vld [vmem:[%s1661 + $0x88] sm:$0xff]
  %v1680 = vld [vmem:[%s1661 + $0x90] sm:$0xff]
  %v1681 = vld [vmem:[%s1661 + $0x98] sm:$0xff]
  %v1682 = vld [vmem:[%s1661 + $0xa0] sm:$0xff]
  %v1683 = vld [vmem:[%s1661 + $0xa8] sm:$0xff]
  %v1684 = vld [vmem:[%s1661 + $0xb0] sm:$0xff]
  %v1685 = vld [vmem:[%s1661 + $0xb8] sm:$0xff]
  %v1686 = vld [vmem:[%s1661 + $0xc0] sm:$0xff]
  %v1687 = vld [vmem:[%s1661 + $0xc8] sm:$0xff]
  %v1688 = vld [vmem:[%s1661 + $0xd0] sm:$0xff]
  %v1689 = vld [vmem:[%s1661 + $0xd8] sm:$0xff]
  %v1690 = vld [vmem:[%s1661 + $0xe0] sm:$0xff]
  %v1691 = vld [vmem:[%s1661 + $0xe8] sm:$0xff]
  %v1692 = vld [vmem:[%s1661 + $0xf0] sm:$0xff]
  %v1693 = vld [vmem:[%s1661 + $0xf8] sm:$0xff]
  %v1694 = vpack.c.bf16 %v1538, %v1535
  %v1695 = vpack.c.bf16 %v1546, %v1543
  %v1696 = vpack.c.bf16 %v1554, %v1551
  %v1697 = vpack.c.bf16 %v1562, %v1559
  %v1698 = vpack.c.bf16 %v1570, %v1567
  %v1699 = vpack.c.bf16 %v1578, %v1575
  %v1700 = vpack.c.bf16 %v1586, %v1583
  %v1701 = vpack.c.bf16 %v1594, %v1591
  %v1702 = vpack.c.bf16 %v1602, %v1599
  %v1703 = vpack.c.bf16 %v1610, %v1607
  %v1704 = vpack.c.bf16 %v1618, %v1615
  %v1705 = vpack.c.bf16 %v1626, %v1623
  %v1706 = vpack.c.bf16 %v1634, %v1631
  %v1707 = vpack.c.bf16 %v1642, %v1639
  %v1708 = vpack.c.bf16 %v1650, %v1647
  %v1709 = vpack.c.bf16 %v1658, %v1655
  %v1710 = vld [vmem:[%s3] sm:$0xff]
  %v1711 = vld [vmem:[%s3 + $0x8] sm:$0xff]
  %v1712 = vld [vmem:[%s3 + $0x10] sm:$0xff]
  %v1713 = vld [vmem:[%s3 + $0x18] sm:$0xff]
  %v1714 = vld [vmem:[%s3 + $0x20] sm:$0xff]
  %v1715 = vld [vmem:[%s3 + $0x28] sm:$0xff]
  %v1716 = vld [vmem:[%s3 + $0x30] sm:$0xff]
  %v1717 = vld [vmem:[%s3 + $0x38] sm:$0xff]
  %v1718 = vld [vmem:[%s3 + $0x40] sm:$0xff]
  %v1719 = vld [vmem:[%s3 + $0x48] sm:$0xff]
  %v1720 = vld [vmem:[%s3 + $0x50] sm:$0xff]
  %v1721 = vld [vmem:[%s3 + $0x58] sm:$0xff]
  %v1722 = vld [vmem:[%s3 + $0x60] sm:$0xff]
  %v1723 = vld [vmem:[%s3 + $0x68] sm:$0xff]
  %v1724 = vld [vmem:[%s3 + $0x70] sm:$0xff]
  %v1725 = vld [vmem:[%s3 + $0x78] sm:$0xff]
  %v1726 = vld [vmem:[%s3 + $0x80] sm:$0xff]
  %v1727 = vld [vmem:[%s3 + $0x88] sm:$0xff]
  %v1728 = vld [vmem:[%s3 + $0x90] sm:$0xff]
  %v1729 = vld [vmem:[%s3 + $0x98] sm:$0xff]
  %v1730 = vld [vmem:[%s3 + $0xa0] sm:$0xff]
  %v1731 = vld [vmem:[%s3 + $0xa8] sm:$0xff]
  %v1732 = vld [vmem:[%s3 + $0xb0] sm:$0xff]
  %v1733 = vld [vmem:[%s3 + $0xb8] sm:$0xff]
  %v1734 = vld [vmem:[%s3 + $0xc0] sm:$0xff]
  %v1735 = vld [vmem:[%s3 + $0xc8] sm:$0xff]
  %v1736 = vld [vmem:[%s3 + $0xd0] sm:$0xff]
  %v1737 = vld [vmem:[%s3 + $0xd8] sm:$0xff]
  %v1738 = vld [vmem:[%s3 + $0xe0] sm:$0xff]
  %v1739 = vld [vmem:[%s3 + $0xe8] sm:$0xff]
  %v1740 = vld [vmem:[%s3 + $0xf0] sm:$0xff]
  %v1741 = vld [vmem:[%s3 + $0xf8] sm:$0xff]
  %v1774 = vunpack.c.l.b16 %v1662
  %v1775 = vunpack.c.h.b16 %v1662
  %v1776 = vunpack.c.l.b16 %v1663
  %v1777 = vunpack.c.h.b16 %v1663
  %v1778 = vunpack.c.l.b16 %v1664
  %v1779 = vunpack.c.h.b16 %v1664
  %v1780 = vunpack.c.l.b16 %v1665
  %v1781 = vunpack.c.h.b16 %v1665
  %v1782 = vunpack.c.l.b16 %v1666
  %v1783 = vunpack.c.h.b16 %v1666
  %v1784 = vunpack.c.l.b16 %v1667
  %v1785 = vunpack.c.h.b16 %v1667
  %v1786 = vunpack.c.l.b16 %v1668
  %v1787 = vunpack.c.h.b16 %v1668
  %v1788 = vunpack.c.l.b16 %v1669
  %v1789 = vunpack.c.h.b16 %v1669
  %v1790 = vunpack.c.l.b16 %v1670
  %v1791 = vunpack.c.h.b16 %v1670
  %v1792 = vunpack.c.l.b16 %v1671
  %v1793 = vunpack.c.h.b16 %v1671
  %v1794 = vunpack.c.l.b16 %v1672
  %v1795 = vunpack.c.h.b16 %v1672
  %v1796 = vunpack.c.l.b16 %v1673
  %v1797 = vunpack.c.h.b16 %v1673
  %v1798 = vunpack.c.l.b16 %v1674
  %v1799 = vunpack.c.h.b16 %v1674
  %v1800 = vunpack.c.l.b16 %v1675
  %v1801 = vunpack.c.h.b16 %v1675
  %v1802 = vunpack.c.l.b16 %v1676
  %v1803 = vunpack.c.h.b16 %v1676
  %v1804 = vunpack.c.l.b16 %v1677
  %v1805 = vunpack.c.h.b16 %v1677
  %v1806 = vunpack.c.l.b16 %v1678
  %v1807 = vunpack.c.h.b16 %v1678
  %v1808 = vunpack.c.l.b16 %v1679
  %v1809 = vunpack.c.h.b16 %v1679
  %v1810 = vunpack.c.l.b16 %v1680
  %v1811 = vunpack.c.h.b16 %v1680
  %v1812 = vunpack.c.l.b16 %v1681
  %v1813 = vunpack.c.h.b16 %v1681
  %v1814 = vunpack.c.l.b16 %v1682
  %v1815 = vunpack.c.h.b16 %v1682
  %v1816 = vunpack.c.l.b16 %v1683
  %v1817 = vunpack.c.h.b16 %v1683
  %v1818 = vunpack.c.l.b16 %v1684
  %v1819 = vunpack.c.h.b16 %v1684
  %v1820 = vunpack.c.l.b16 %v1685
  %v1821 = vunpack.c.h.b16 %v1685
  %v1822 = vunpack.c.l.b16 %v1686
  %v1823 = vunpack.c.h.b16 %v1686
  %v1824 = vunpack.c.l.b16 %v1687
  %v1825 = vunpack.c.h.b16 %v1687
  %v1826 = vunpack.c.l.b16 %v1688
  %v1827 = vunpack.c.h.b16 %v1688
  %v1828 = vunpack.c.l.b16 %v1689
  %v1829 = vunpack.c.h.b16 %v1689
  %v1830 = vunpack.c.l.b16 %v1690
  %v1831 = vunpack.c.h.b16 %v1690
  %v1832 = vunpack.c.l.b16 %v1691
  %v1833 = vunpack.c.h.b16 %v1691
  %v1834 = vunpack.c.l.b16 %v1692
  %v1835 = vunpack.c.h.b16 %v1692
  %v1836 = vunpack.c.l.b16 %v1693
  %v1837 = vunpack.c.h.b16 %v1693
  %v1838 = vpack.c.b16 %v1776, %v1774
  %v1839 = vpack.c.b16 %v1777, %v1775
  %v1840 = vpack.c.b16 %v1780, %v1778
  %v1841 = vpack.c.b16 %v1781, %v1779
  %v1842 = vpack.c.b16 %v1784, %v1782
  %v1843 = vpack.c.b16 %v1785, %v1783
  %v1844 = vpack.c.b16 %v1788, %v1786
  %v1845 = vpack.c.b16 %v1789, %v1787
  %v1846 = vpack.c.b16 %v1792, %v1790
  %v1847 = vpack.c.b16 %v1793, %v1791
  %v1848 = vpack.c.b16 %v1796, %v1794
  %v1849 = vpack.c.b16 %v1797, %v1795
  %v1850 = vpack.c.b16 %v1800, %v1798
  %v1851 = vpack.c.b16 %v1801, %v1799
  %v1852 = vpack.c.b16 %v1804, %v1802
  %v1853 = vpack.c.b16 %v1805, %v1803
  %v1854 = vpack.c.b16 %v1808, %v1806
  %v1855 = vpack.c.b16 %v1809, %v1807
  %v1856 = vpack.c.b16 %v1812, %v1810
  %v1857 = vpack.c.b16 %v1813, %v1811
  %v1858 = vpack.c.b16 %v1816, %v1814
  %v1859 = vpack.c.b16 %v1817, %v1815
  %v1860 = vpack.c.b16 %v1820, %v1818
  %v1861 = vpack.c.b16 %v1821, %v1819
  %v1862 = vpack.c.b16 %v1824, %v1822
  %v1863 = vpack.c.b16 %v1825, %v1823
  %v1864 = vpack.c.b16 %v1828, %v1826
  %v1865 = vpack.c.b16 %v1829, %v1827
  %v1866 = vpack.c.b16 %v1832, %v1830
  %v1867 = vpack.c.b16 %v1833, %v1831
  %v1868 = vpack.c.b16 %v1836, %v1834
  %v1869 = vpack.c.b16 %v1837, %v1835
  %1934 = vrot.lane.b32.xlu0 %v1710, 64
  %v1935 = vpop.permute.xlu0 %1934
  %1936 = vrot.lane.b32.xlu0 %v1711, 64
  %v1937 = vpop.permute.xlu0 %1936
  %1938 = vrot.lane.b32.xlu0 %v1712, 64
  %v1939 = vpop.permute.xlu0 %1938
  %1940 = vrot.lane.b32.xlu0 %v1713, 64
  %v1941 = vpop.permute.xlu0 %1940
  %1942 = vrot.lane.b32.xlu0 %v1714, 64
  %v1943 = vpop.permute.xlu0 %1942
  %1944 = vrot.lane.b32.xlu0 %v1715, 64
  %v1945 = vpop.permute.xlu0 %1944
  %1946 = vrot.lane.b32.xlu0 %v1716, 64
  %v1947 = vpop.permute.xlu0 %1946
  %1948 = vrot.lane.b32.xlu0 %v1717, 64
  %v1949 = vpop.permute.xlu0 %1948
  %1950 = vrot.lane.b32.xlu0 %v1718, 64
  %v1951 = vpop.permute.xlu0 %1950
  %1952 = vrot.lane.b32.xlu0 %v1719, 64
  %v1953 = vpop.permute.xlu0 %1952
  %1954 = vrot.lane.b32.xlu0 %v1720, 64
  %v1955 = vpop.permute.xlu0 %1954
  %1956 = vrot.lane.b32.xlu0 %v1721, 64
  %v1957 = vpop.permute.xlu0 %1956
  %1958 = vrot.lane.b32.xlu0 %v1722, 64
  %v1959 = vpop.permute.xlu0 %1958
  %1960 = vrot.lane.b32.xlu0 %v1723, 64
  %v1961 = vpop.permute.xlu0 %1960
  %1962 = vrot.lane.b32.xlu0 %v1724, 64
  %v1963 = vpop.permute.xlu0 %1962
  %1964 = vrot.lane.b32.xlu0 %v1725, 64
  %v1965 = vpop.permute.xlu0 %1964
  %1966 = vrot.lane.b32.xlu0 %v1726, 64
  %v1967 = vpop.permute.xlu0 %1966
  %1968 = vrot.lane.b32.xlu0 %v1727, 64
  %v1969 = vpop.permute.xlu0 %1968
  %1970 = vrot.lane.b32.xlu0 %v1728, 64
  %v1971 = vpop.permute.xlu0 %1970
  %1972 = vrot.lane.b32.xlu0 %v1729, 64
  %v1973 = vpop.permute.xlu0 %1972
  %1974 = vrot.lane.b32.xlu0 %v1730, 64
  %v1975 = vpop.permute.xlu0 %1974
  %1976 = vrot.lane.b32.xlu0 %v1731, 64
  %v1977 = vpop.permute.xlu0 %1976
  %1978 = vrot.lane.b32.xlu0 %v1732, 64
  %v1979 = vpop.permute.xlu0 %1978
  %1980 = vrot.lane.b32.xlu0 %v1733, 64
  %v1981 = vpop.permute.xlu0 %1980
  %1982 = vrot.lane.b32.xlu0 %v1734, 64
  %v1983 = vpop.permute.xlu0 %1982
  %1984 = vrot.lane.b32.xlu0 %v1735, 64
  %v1985 = vpop.permute.xlu0 %1984
  %1986 = vrot.lane.b32.xlu0 %v1736, 64
  %v1987 = vpop.permute.xlu0 %1986
  %1988 = vrot.lane.b32.xlu0 %v1737, 64
  %v1989 = vpop.permute.xlu0 %1988
  %1990 = vrot.lane.b32.xlu0 %v1738, 64
  %v1991 = vpop.permute.xlu0 %1990
  %1992 = vrot.lane.b32.xlu0 %v1739, 64
  %v1993 = vpop.permute.xlu0 %1992
  %1994 = vrot.lane.b32.xlu0 %v1740, 64
  %v1995 = vpop.permute.xlu0 %1994
  %1996 = vrot.lane.b32.xlu0 %v1741, 64
  %v1997 = vpop.permute.xlu0 %1996
  %2030 = vmatprep.subr.bf16.mxu0 0
  %2031 = vmatpush1.bf16.msra.mxu0 %v1694
  %2032 = vmatprep.subr.bf16.mxu0 0
  %2033 = vmatpush1.bf16.msra.mxu0 %v1695
  %2034 = vmatprep.subr.bf16.mxu0 0
  %2035 = vmatpush1.bf16.msra.mxu0 %v1696
  %2036 = vmatprep.subr.bf16.mxu0 0
  %2037 = vmatpush1.bf16.msra.mxu0 %v1697
  %2038 = vmatprep.subr.bf16.mxu0 0
  %2039 = vmatpush1.bf16.msra.mxu0 %v1698
  %2040 = vmatprep.subr.bf16.mxu0 0
  %2041 = vmatpush1.bf16.msra.mxu0 %v1699
  %2042 = vmatprep.subr.bf16.mxu0 0
  %2043 = vmatpush1.bf16.msra.mxu0 %v1700
  %2044 = vmatprep.subr.bf16.mxu0 0
  %2045 = vmatpush1.bf16.msra.mxu0 %v1701
  %2046 = vmatprep.subr.bf16.mxu0 0
  %2047 = vmatpush1.bf16.msra.mxu0 %v1702
  %2048 = vmatprep.subr.bf16.mxu0 0
  %2049 = vmatpush1.bf16.msra.mxu0 %v1703
  %2050 = vmatprep.subr.bf16.mxu0 0
  %2051 = vmatpush1.bf16.msra.mxu0 %v1704
  %2052 = vmatprep.subr.bf16.mxu0 0
  %2053 = vmatpush1.bf16.msra.mxu0 %v1705
  %2054 = vmatprep.subr.bf16.mxu0 0
  %2055 = vmatpush1.bf16.msra.mxu0 %v1706
  %2056 = vmatprep.subr.bf16.mxu0 0
  %2057 = vmatpush1.bf16.msra.mxu0 %v1707
  %2058 = vmatprep.subr.bf16.mxu0 0
  %2059 = vmatpush1.bf16.msra.mxu0 %v1708
  %2060 = vmatprep.subr.bf16.mxu0 0
  %2061 = vmatpush1.bf16.msra.mxu0 %v1709
  %2062 = vmatprep.mubr.bf16.mxu0 %v1839
  %2063 = vmatmul.mubr.bf16.gmra.mrb[0].mxu0 %v1838
  %v2064 = vpop.f32.mrb[0].mxu0
  %v2065 = vadd.f32 %v1935, %v2064
  %v2066 = vpop.f32.mrb[0].mxu0
  %v2067 = vpop.f32.mrb[0].mxu0
  %v2068 = vadd.f32 %v1937, %v2067
  %v2069 = vpop.f32.mrb[0].mxu0
  %2070 = vmatprep.mubr.bf16.mxu0 %v1841
  %2071 = vmatmul.mubr.bf16.gmra.mrb[0].mxu0 %v1840
  %v2072 = vpop.f32.mrb[0].mxu0
  %v2073 = vadd.f32 %v1939, %v2072
  %v2074 = vpop.f32.mrb[0].mxu0
  %v2075 = vpop.f32.mrb[0].mxu0
  %v2076 = vadd.f32 %v1941, %v2075
  %v2077 = vpop.f32.mrb[0].mxu0
  %2078 = vmatprep.mubr.bf16.mxu0 %v1843
  %2079 = vmatmul.mubr.bf16.gmra.mrb[0].mxu0 %v1842
  %v2080 = vpop.f32.mrb[0].mxu0
  %v2081 = vadd.f32 %v1943, %v2080
  %v2082 = vpop.f32.mrb[0].mxu0
  %v2083 = vpop.f32.mrb[0].mxu0
  %v2084 = vadd.f32 %v1945, %v2083
  %v2085 = vpop.f32.mrb[0].mxu0
  %2086 = vmatprep.mubr.bf16.mxu0 %v1845
  %2087 = vmatmul.mubr.bf16.gmra.mrb[0].mxu0 %v1844
  %v2088 = vpop.f32.mrb[0].mxu0
  %v2089 = vadd.f32 %v1947, %v2088
  %v2090 = vpop.f32.mrb[0].mxu0
  %v2091 = vpop.f32.mrb[0].mxu0
  %v2092 = vadd.f32 %v1949, %v2091
  %v2093 = vpop.f32.mrb[0].mxu0
  %2094 = vmatprep.mubr.bf16.mxu0 %v1847
  %2095 = vmatmul.mubr.bf16.gmra.mrb[0].mxu0 %v1846
  %v2096 = vpop.f32.mrb[0].mxu0
  %v2097 = vadd.f32 %v1951, %v2096
  %v2098 = vpop.f32.mrb[0].mxu0
  %v2099 = vpop.f32.mrb[0].mxu0
  %v2100 = vadd.f32 %v1953, %v2099
  %v2101 = vpop.f32.mrb[0].mxu0
  %2102 = vmatprep.mubr.bf16.mxu0 %v1849
  %2103 = vmatmul.mubr.bf16.gmra.mrb[0].mxu0 %v1848
  %v2104 = vpop.f32.mrb[0].mxu0
  %v2105 = vadd.f32 %v1955, %v2104
  %v2106 = vpop.f32.mrb[0].mxu0
  %v2107 = vpop.f32.mrb[0].mxu0
  %v2108 = vadd.f32 %v1957, %v2107
  %v2109 = vpop.f32.mrb[0].mxu0
  %2110 = vmatprep.mubr.bf16.mxu0 %v1851
  %2111 = vmatmul.mubr.bf16.gmra.mrb[0].mxu0 %v1850
  %v2112 = vpop.f32.mrb[0].mxu0
  %v2113 = vadd.f32 %v1959, %v2112
  %v2114 = vpop.f32.mrb[0].mxu0
  %v2115 = vpop.f32.mrb[0].mxu0
  %v2116 = vadd.f32 %v1961, %v2115
  %v2117 = vpop.f32.mrb[0].mxu0
  %2118 = vmatprep.mubr.bf16.mxu0 %v1853
  %2119 = vmatmul.mubr.bf16.gmra.mrb[0].mxu0 %v1852
  %v2120 = vpop.f32.mrb[0].mxu0
  %v2121 = vadd.f32 %v1963, %v2120
  %v2122 = vpop.f32.mrb[0].mxu0
  %v2123 = vpop.f32.mrb[0].mxu0
  %v2124 = vadd.f32 %v1965, %v2123
  %v2125 = vpop.f32.mrb[0].mxu0
  %2126 = vmatprep.mubr.bf16.mxu0 %v1855
  %2127 = vmatmul.mubr.bf16.gmra.mrb[0].mxu0 %v1854
  %v2128 = vpop.f32.mrb[0].mxu0
  %v2129 = vadd.f32 %v1967, %v2128
  %v2130 = vpop.f32.mrb[0].mxu0
  %v2131 = vpop.f32.mrb[0].mxu0
  %v2132 = vadd.f32 %v1969, %v2131
  %v2133 = vpop.f32.mrb[0].mxu0
  %2134 = vmatprep.mubr.bf16.mxu0 %v1857
  %2135 = vmatmul.mubr.bf16.gmra.mrb[0].mxu0 %v1856
  %v2136 = vpop.f32.mrb[0].mxu0
  %v2137 = vadd.f32 %v1971, %v2136
  %v2138 = vpop.f32.mrb[0].mxu0
  %v2139 = vpop.f32.mrb[0].mxu0
  %v2140 = vadd.f32 %v1973, %v2139
  %v2141 = vpop.f32.mrb[0].mxu0
  %2142 = vmatprep.mubr.bf16.mxu0 %v1859
  %2143 = vmatmul.mubr.bf16.gmra.mrb[0].mxu0 %v1858
  %v2144 = vpop.f32.mrb[0].mxu0
  %v2145 = vadd.f32 %v1975, %v2144
  %v2146 = vpop.f32.mrb[0].mxu0
  %v2147 = vpop.f32.mrb[0].mxu0
  %v2148 = vadd.f32 %v1977, %v2147
  %v2149 = vpop.f32.mrb[0].mxu0
  %2150 = vmatprep.mubr.bf16.mxu0 %v1861
  %2151 = vmatmul.mubr.bf16.gmra.mrb[0].mxu0 %v1860
  %v2152 = vpop.f32.mrb[0].mxu0
  %v2153 = vadd.f32 %v1979, %v2152
  %v2154 = vpop.f32.mrb[0].mxu0
  %v2155 = vpop.f32.mrb[0].mxu0
  %v2156 = vadd.f32 %v1981, %v2155
  %v2157 = vpop.f32.mrb[0].mxu0
  %2158 = vmatprep.mubr.bf16.mxu0 %v1863
  %2159 = vmatmul.mubr.bf16.gmra.mrb[0].mxu0 %v1862
  %v2160 = vpop.f32.mrb[0].mxu0
  %v2161 = vadd.f32 %v1983, %v2160
  %v2162 = vpop.f32.mrb[0].mxu0
  %v2163 = vpop.f32.mrb[0].mxu0
  %v2164 = vadd.f32 %v1985, %v2163
  %v2165 = vpop.f32.mrb[0].mxu0
  %2166 = vmatprep.mubr.bf16.mxu0 %v1865
  %2167 = vmatmul.mubr.bf16.gmra.mrb[0].mxu0 %v1864
  %v2168 = vpop.f32.mrb[0].mxu0
  %v2169 = vadd.f32 %v1987, %v2168
  %v2170 = vpop.f32.mrb[0].mxu0
  %v2171 = vpop.f32.mrb[0].mxu0
  %v2172 = vadd.f32 %v1989, %v2171
  %v2173 = vpop.f32.mrb[0].mxu0
  %2174 = vmatprep.mubr.bf16.mxu0 %v1867
  %2175 = vmatmul.mubr.bf16.gmra.mrb[0].mxu0 %v1866
  %v2176 = vpop.f32.mrb[0].mxu0
  %v2177 = vadd.f32 %v1991, %v2176
  %v2178 = vpop.f32.mrb[0].mxu0
  %v2179 = vpop.f32.mrb[0].mxu0
  %v2180 = vadd.f32 %v1993, %v2179
  %v2181 = vpop.f32.mrb[0].mxu0
  %2182 = vmatprep.mubr.bf16.mxu0 %v1869
  %2183 = vmatmul.mubr.bf16.gmra.mrb[0].mxu0 %v1868
  %v2184 = vpop.f32.mrb[0].mxu0
  %v2185 = vadd.f32 %v1995, %v2184
  %v2186 = vpop.f32.mrb[0].mxu0
  %v2187 = vpop.f32.mrb[0].mxu0
  %v2188 = vadd.f32 %v1997, %v2187
  %v2189 = vpop.f32.mrb[0].mxu0
  %2190 = vdwg.mxu0
  %2191 = vst.msk [vmem:[#allocation2] sm:$0xff] %vm746, %v2065
  %2192 = vst.msk [vmem:[#allocation2 + $0x8] sm:$0xff] %vm746, %v2068
  %2193 = vst.msk [vmem:[#allocation2 + $0x10] sm:$0xff] %vm746, %v2073
  %2194 = vst.msk [vmem:[#allocation2 + $0x18] sm:$0xff] %vm746, %v2076
  %2195 = vst.msk [vmem:[#allocation2 + $0x20] sm:$0xff] %vm746, %v2081
  %2196 = vst.msk [vmem:[#allocation2 + $0x28] sm:$0xff] %vm746, %v2084
  %2197 = vst.msk [vmem:[#allocation2 + $0x30] sm:$0xff] %vm746, %v2089
  %2198 = vst.msk [vmem:[#allocation2 + $0x38] sm:$0xff] %vm746, %v2092
  %2199 = vst.msk [vmem:[#allocation2 + $0x40] sm:$0xff] %vm746, %v2097
  %2200 = vst.msk [vmem:[#allocation2 + $0x48] sm:$0xff] %vm746, %v2100
  %2201 = vst.msk [vmem:[#allocation2 + $0x50] sm:$0xff] %vm746, %v2105
  %2202 = vst.msk [vmem:[#allocation2 + $0x58] sm:$0xff] %vm746, %v2108
  %2203 = vst.msk [vmem:[#allocation2 + $0x60] sm:$0xff] %vm746, %v2113
  %2204 = vst.msk [vmem:[#allocation2 + $0x68] sm:$0xff] %vm746, %v2116
  %2205 = vst.msk [vmem:[#allocation2 + $0x70] sm:$0xff] %vm746, %v2121
  %2206 = vst.msk [vmem:[#allocation2 + $0x78] sm:$0xff] %vm746, %v2124
  %2207 = vst.msk [vmem:[#allocation2 + $0x80] sm:$0xff] %vm746, %v2129
  %2208 = vst.msk [vmem:[#allocation2 + $0x88] sm:$0xff] %vm746, %v2132
  %2209 = vst.msk [vmem:[#allocation2 + $0x90] sm:$0xff] %vm746, %v2137
  %2210 = vst.msk [vmem:[#allocation2 + $0x98] sm:$0xff] %vm746, %v2140
  %2211 = vst.msk [vmem:[#allocation2 + $0xa0] sm:$0xff] %vm746, %v2145
  %2212 = vst.msk [vmem:[#allocation2 + $0xa8] sm:$0xff] %vm746, %v2148
  %2213 = vst.msk [vmem:[#allocation2 + $0xb0] sm:$0xff] %vm746, %v2153
  %2214 = vst.msk [vmem:[#allocation2 + $0xb8] sm:$0xff] %vm746, %v2156
  %2215 = vst.msk [vmem:[#allocation2 + $0xc0] sm:$0xff] %vm746, %v2161
  %2216 = vst.msk [vmem:[#allocation2 + $0xc8] sm:$0xff] %vm746, %v2164
  %2217 = vst.msk [vmem:[#allocation2 + $0xd0] sm:$0xff] %vm746, %v2169
  %2218 = vst.msk [vmem:[#allocation2 + $0xd8] sm:$0xff] %vm746, %v2172
  %2219 = vst.msk [vmem:[#allocation2 + $0xe0] sm:$0xff] %vm746, %v2177
  %2220 = vst.msk [vmem:[#allocation2 + $0xe8] sm:$0xff] %vm746, %v2180
  %2221 = vst.msk [vmem:[#allocation2 + $0xf0] sm:$0xff] %vm746, %v2185
  %2222 = vst.msk [vmem:[#allocation2 + $0xf8] sm:$0xff] %vm746, %v2188
  %v2223 = vld [vmem:[#allocation2] sm:$0xff]
  %v2224 = vld [vmem:[#allocation2 + $0x8] sm:$0xff]
  %v2225 = vld [vmem:[#allocation2 + $0x10] sm:$0xff]
  %v2226 = vld [vmem:[#allocation2 + $0x18] sm:$0xff]
  %v2227 = vxor.u32 %v2223, 2147483648
  %v2228 = vxor.u32 %v2224, 2147483648
  %v2229 = vxor.u32 %v2225, 2147483648
  %v2230 = vxor.u32 %v2226, 2147483648
  %v2231 = vmul.f32 %v2227, 1.442695
  %v2232 = vpow.pop %v2231
  %v2233 = vmul.f32 %v2228, 1.442695
  %v2234 = vpow.pop %v2233
  %v2235 = vmul.f32 %v2229, 1.442695
  %v2236 = vpow.pop %v2235
  %v2237 = vmul.f32 %v2230, 1.442695
  %v2238 = vpow.pop %v2237
  %v2239 = vadd.f32 %v2232, 1.0
  %v2240 = vadd.f32 %v2234, 1.0
  %v2241 = vadd.f32 %v2236, 1.0
  %v2242 = vadd.f32 %v2238, 1.0
  %v2243 = vrcp.pop %v2239
  %v2244 = vmul.f32 1.0, %v2243
  %v2245 = vrcp.pop %v2240
  %v2246 = vmul.f32 1.0, %v2245
  %v2247 = vrcp.pop %v2241
  %v2248 = vmul.f32 1.0, %v2247
  %v2249 = vrcp.pop %v2242
  %v2250 = vmul.f32 1.0, %v2249
  %v2251 = vtanh.pop %v2223
  %v2252 = vtanh.pop %v2224
  %v2253 = vtanh.pop %v2225
  %v2254 = vtanh.pop %v2226
  %v2255 = vmul.f32 %v2244, 0.0
  %v2256 = vmul.f32 %v2246, 0.0
  %v2257 = vmul.f32 %v2248, 0.0
  %v2258 = vmul.f32 %v2250, 0.0
  %v2259 = vsub.f32 1.0, %v2244
  %v2260 = vsub.f32 1.0, %v2246
  %v2261 = vsub.f32 1.0, %v2248
  %v2262 = vsub.f32 1.0, %v2250
  %2267 = vrot.lane.b32.xlu0 %v2251, 96
  %v2268 = vpop.permute.xlu0 %2267
  %2269 = vrot.lane.b32.xlu0 %v2252, 96
  %v2270 = vpop.permute.xlu0 %2269
  %2271 = vrot.lane.b32.xlu0 %v2253, 96
  %v2272 = vpop.permute.xlu0 %2271
  %2273 = vrot.lane.b32.xlu0 %v2254, 96
  %v2274 = vpop.permute.xlu0 %2273
  %v2279 = vmul.f32 %v2259, %v2268
  %v2280 = vmul.f32 %v2260, %v2270
  %v2281 = vmul.f32 %v2261, %v2272
  %v2282 = vmul.f32 %v2262, %v2274
  %v2283 = vadd.f32 %v2255, %v2279
  %v2284 = vadd.f32 %v2256, %v2280
  %v2285 = vadd.f32 %v2257, %v2281
  %v2286 = vadd.f32 %v2258, %v2282
  %v2287 = vld [vmem:[#allocation2 + $0x20] sm:$0xff]
  %v2288 = vld [vmem:[#allocation2 + $0x28] sm:$0xff]
  %v2289 = vld [vmem:[#allocation2 + $0x30] sm:$0xff]
  %v2290 = vld [vmem:[#allocation2 + $0x38] sm:$0xff]
  %v2291 = vxor.u32 %v2287, 2147483648
  %v2292 = vxor.u32 %v2288, 2147483648
  %v2293 = vxor.u32 %v2289, 2147483648
  %v2294 = vxor.u32 %v2290, 2147483648
  %v2295 = vmul.f32 %v2291, 1.442695
  %v2296 = vpow.pop %v2295
  %v2297 = vmul.f32 %v2292, 1.442695
  %v2298 = vpow.pop %v2297
  %v2299 = vmul.f32 %v2293, 1.442695
  %v2300 = vpow.pop %v2299
  %v2301 = vmul.f32 %v2294, 1.442695
  %v2302 = vpow.pop %v2301
  %v2303 = vadd.f32 %v2296, 1.0
  %v2304 = vadd.f32 %v2298, 1.0
  %v2305 = vadd.f32 %v2300, 1.0
  %v2306 = vadd.f32 %v2302, 1.0
  %v2307 = vrcp.pop %v2303
  %v2308 = vmul.f32 1.0, %v2307
  %v2309 = vrcp.pop %v2304
  %v2310 = vmul.f32 1.0, %v2309
  %v2311 = vrcp.pop %v2305
  %v2312 = vmul.f32 1.0, %v2311
  %v2313 = vrcp.pop %v2306
  %v2314 = vmul.f32 1.0, %v2313
  %v2315 = vtanh.pop %v2287
  %v2316 = vtanh.pop %v2288
  %v2317 = vtanh.pop %v2289
  %v2318 = vtanh.pop %v2290
  %v2319 = vmul.f32 %v2308, %v2283
  %v2320 = vmul.f32 %v2310, %v2284
  %v2321 = vmul.f32 %v2312, %v2285
  %v2322 = vmul.f32 %v2314, %v2286
  %v2323 = vsub.f32 1.0, %v2308
  %v2324 = vsub.f32 1.0, %v2310
  %v2325 = vsub.f32 1.0, %v2312
  %v2326 = vsub.f32 1.0, %v2314
  %2331 = vrot.lane.b32.xlu0 %v2315, 96
  %v2332 = vpop.permute.xlu0 %2331
  %2333 = vrot.lane.b32.xlu0 %v2316, 96
  %v2334 = vpop.permute.xlu0 %2333
  %2335 = vrot.lane.b32.xlu0 %v2317, 96
  %v2336 = vpop.permute.xlu0 %2335
  %2337 = vrot.lane.b32.xlu0 %v2318, 96
  %v2338 = vpop.permute.xlu0 %2337
  %v2343 = vmul.f32 %v2323, %v2332
  %v2344 = vmul.f32 %v2324, %v2334
  %v2345 = vmul.f32 %v2325, %v2336
  %v2346 = vmul.f32 %v2326, %v2338
  %v2347 = vadd.f32 %v2319, %v2343
  %v2348 = vadd.f32 %v2320, %v2344
  %v2349 = vadd.f32 %v2321, %v2345
  %v2350 = vadd.f32 %v2322, %v2346
  %v2351 = vld [vmem:[#allocation2 + $0x40] sm:$0xff]
  %v2352 = vld [vmem:[#allocation2 + $0x48] sm:$0xff]
  %v2353 = vld [vmem:[#allocation2 + $0x50] sm:$0xff]
  %v2354 = vld [vmem:[#allocation2 + $0x58] sm:$0xff]
  %v2355 = vxor.u32 %v2351, 2147483648
  %v2356 = vxor.u32 %v2352, 2147483648
  %v2357 = vxor.u32 %v2353, 2147483648
  %v2358 = vxor.u32 %v2354, 2147483648
  %v2359 = vmul.f32 %v2355, 1.442695
  %v2360 = vpow.pop %v2359
  %v2361 = vmul.f32 %v2356, 1.442695
  %v2362 = vpow.pop %v2361
  %v2363 = vmul.f32 %v2357, 1.442695
  %v2364 = vpow.pop %v2363
  %v2365 = vmul.f32 %v2358, 1.442695
  %v2366 = vpow.pop %v2365
  %v2367 = vadd.f32 %v2360, 1.0
  %v2368 = vadd.f32 %v2362, 1.0
  %v2369 = vadd.f32 %v2364, 1.0
  %v2370 = vadd.f32 %v2366, 1.0
  %v2371 = vrcp.pop %v2367
  %v2372 = vmul.f32 1.0, %v2371
  %v2373 = vrcp.pop %v2368
  %v2374 = vmul.f32 1.0, %v2373
  %v2375 = vrcp.pop %v2369
  %v2376 = vmul.f32 1.0, %v2375
  %v2377 = vrcp.pop %v2370
  %v2378 = vmul.f32 1.0, %v2377
  %v2379 = vtanh.pop %v2351
  %v2380 = vtanh.pop %v2352
  %v2381 = vtanh.pop %v2353
  %v2382 = vtanh.pop %v2354
  %v2383 = vmul.f32 %v2372, %v2347
  %v2384 = vmul.f32 %v2374, %v2348
  %v2385 = vmul.f32 %v2376, %v2349
  %v2386 = vmul.f32 %v2378, %v2350
  %v2387 = vsub.f32 1.0, %v2372
  %v2388 = vsub.f32 1.0, %v2374
  %v2389 = vsub.f32 1.0, %v2376
  %v2390 = vsub.f32 1.0, %v2378
  %2395 = vrot.lane.b32.xlu0 %v2379, 96
  %v2396 = vpop.permute.xlu0 %2395
  %2397 = vrot.lane.b32.xlu0 %v2380, 96
  %v2398 = vpop.permute.xlu0 %2397
  %2399 = vrot.lane.b32.xlu0 %v2381, 96
  %v2400 = vpop.permute.xlu0 %2399
  %2401 = vrot.lane.b32.xlu0 %v2382, 96
  %v2402 = vpop.permute.xlu0 %2401
  %v2407 = vmul.f32 %v2387, %v2396
  %v2408 = vmul.f32 %v2388, %v2398
  %v2409 = vmul.f32 %v2389, %v2400
  %v2410 = vmul.f32 %v2390, %v2402
  %v2411 = vadd.f32 %v2383, %v2407
  %v2412 = vadd.f32 %v2384, %v2408
  %v2413 = vadd.f32 %v2385, %v2409
  %v2414 = vadd.f32 %v2386, %v2410
  %v2415 = vld [vmem:[#allocation2 + $0x60] sm:$0xff]
  %v2416 = vld [vmem:[#allocation2 + $0x68] sm:$0xff]
  %v2417 = vld [vmem:[#allocation2 + $0x70] sm:$0xff]
  %v2418 = vld [vmem:[#allocation2 + $0x78] sm:$0xff]
  %v2419 = vxor.u32 %v2415, 2147483648
  %v2420 = vxor.u32 %v2416, 2147483648
  %v2421 = vxor.u32 %v2417, 2147483648
  %v2422 = vxor.u32 %v2418, 2147483648
  %v2423 = vmul.f32 %v2419, 1.442695
  %v2424 = vpow.pop %v2423
  %v2425 = vmul.f32 %v2420, 1.442695
  %v2426 = vpow.pop %v2425
  %v2427 = vmul.f32 %v2421, 1.442695
  %v2428 = vpow.pop %v2427
  %v2429 = vmul.f32 %v2422, 1.442695
  %v2430 = vpow.pop %v2429
  %v2431 = vadd.f32 %v2424, 1.0
  %v2432 = vadd.f32 %v2426, 1.0
  %v2433 = vadd.f32 %v2428, 1.0
  %v2434 = vadd.f32 %v2430, 1.0
  %v2435 = vrcp.pop %v2431
  %v2436 = vmul.f32 1.0, %v2435
  %v2437 = vrcp.pop %v2432
  %v2438 = vmul.f32 1.0, %v2437
  %v2439 = vrcp.pop %v2433
  %v2440 = vmul.f32 1.0, %v2439
  %v2441 = vrcp.pop %v2434
  %v2442 = vmul.f32 1.0, %v2441
  %v2443 = vtanh.pop %v2415
  %v2444 = vtanh.pop %v2416
  %v2445 = vtanh.pop %v2417
  %v2446 = vtanh.pop %v2418
  %v2447 = vmul.f32 %v2436, %v2411
  %v2448 = vmul.f32 %v2438, %v2412
  %v2449 = vmul.f32 %v2440, %v2413
  %v2450 = vmul.f32 %v2442, %v2414
  %v2451 = vsub.f32 1.0, %v2436
  %v2452 = vsub.f32 1.0, %v2438
  %v2453 = vsub.f32 1.0, %v2440
  %v2454 = vsub.f32 1.0, %v2442
  %2459 = vrot.lane.b32.xlu0 %v2443, 96
  %v2460 = vpop.permute.xlu0 %2459
  %2461 = vrot.lane.b32.xlu0 %v2444, 96
  %v2462 = vpop.permute.xlu0 %2461
  %2463 = vrot.lane.b32.xlu0 %v2445, 96
  %v2464 = vpop.permute.xlu0 %2463
  %2465 = vrot.lane.b32.xlu0 %v2446, 96
  %v2466 = vpop.permute.xlu0 %2465
  %v2471 = vmul.f32 %v2451, %v2460
  %v2472 = vmul.f32 %v2452, %v2462
  %v2473 = vmul.f32 %v2453, %v2464
  %v2474 = vmul.f32 %v2454, %v2466
  %v2475 = vadd.f32 %v2447, %v2471
  %v2476 = vadd.f32 %v2448, %v2472
  %v2477 = vadd.f32 %v2449, %v2473
  %v2478 = vadd.f32 %v2450, %v2474
  %v2479 = vld [vmem:[#allocation2 + $0x80] sm:$0xff]
  %v2480 = vld [vmem:[#allocation2 + $0x88] sm:$0xff]
  %v2481 = vld [vmem:[#allocation2 + $0x90] sm:$0xff]
  %v2482 = vld [vmem:[#allocation2 + $0x98] sm:$0xff]
  %v2483 = vxor.u32 %v2479, 2147483648
  %v2484 = vxor.u32 %v2480, 2147483648
  %v2485 = vxor.u32 %v2481, 2147483648
  %v2486 = vxor.u32 %v2482, 2147483648
  %v2487 = vmul.f32 %v2483, 1.442695
  %v2488 = vpow.pop %v2487
  %v2489 = vmul.f32 %v2484, 1.442695
  %v2490 = vpow.pop %v2489
  %v2491 = vmul.f32 %v2485, 1.442695
  %v2492 = vpow.pop %v2491
  %v2493 = vmul.f32 %v2486, 1.442695
  %v2494 = vpow.pop %v2493
  %v2495 = vadd.f32 %v2488, 1.0
  %v2496 = vadd.f32 %v2490, 1.0
  %v2497 = vadd.f32 %v2492, 1.0
  %v2498 = vadd.f32 %v2494, 1.0
  %v2499 = vrcp.pop %v2495
  %v2500 = vmul.f32 1.0, %v2499
  %v2501 = vrcp.pop %v2496
  %v2502 = vmul.f32 1.0, %v2501
  %v2503 = vrcp.pop %v2497
  %v2504 = vmul.f32 1.0, %v2503
  %v2505 = vrcp.pop %v2498
  %v2506 = vmul.f32 1.0, %v2505
  %v2507 = vtanh.pop %v2479
  %v2508 = vtanh.pop %v2480
  %v2509 = vtanh.pop %v2481
  %v2510 = vtanh.pop %v2482
  %v2511 = vmul.f32 %v2500, %v2475
  %v2512 = vmul.f32 %v2502, %v2476
  %v2513 = vmul.f32 %v2504, %v2477
  %v2514 = vmul.f32 %v2506, %v2478
  %v2515 = vsub.f32 1.0, %v2500
  %v2516 = vsub.f32 1.0, %v2502
  %v2517 = vsub.f32 1.0, %v2504
  %v2518 = vsub.f32 1.0, %v2506
  %2523 = vrot.lane.b32.xlu0 %v2507, 96
  %v2524 = vpop.permute.xlu0 %2523
  %2525 = vrot.lane.b32.xlu0 %v2508, 96
  %v2526 = vpop.permute.xlu0 %2525
  %2527 = vrot.lane.b32.xlu0 %v2509, 96
  %v2528 = vpop.permute.xlu0 %2527
  %2529 = vrot.lane.b32.xlu0 %v2510, 96
  %v2530 = vpop.permute.xlu0 %2529
  %v2535 = vmul.f32 %v2515, %v2524
  %v2536 = vmul.f32 %v2516, %v2526
  %v2537 = vmul.f32 %v2517, %v2528
  %v2538 = vmul.f32 %v2518, %v2530
  %v2539 = vadd.f32 %v2511, %v2535
  %v2540 = vadd.f32 %v2512, %v2536
  %v2541 = vadd.f32 %v2513, %v2537
  %v2542 = vadd.f32 %v2514, %v2538
  %v2543 = vld [vmem:[#allocation2 + $0xa0] sm:$0xff]
  %v2544 = vld [vmem:[#allocation2 + $0xa8] sm:$0xff]
  %v2545 = vld [vmem:[#allocation2 + $0xb0] sm:$0xff]
  %v2546 = vld [vmem:[#allocation2 + $0xb8] sm:$0xff]
  %v2547 = vxor.u32 %v2543, 2147483648
  %v2548 = vxor.u32 %v2544, 2147483648
  %v2549 = vxor.u32 %v2545, 2147483648
  %v2550 = vxor.u32 %v2546, 2147483648
  %v2551 = vmul.f32 %v2547, 1.442695
  %v2552 = vpow.pop %v2551
  %v2553 = vmul.f32 %v2548, 1.442695
  %v2554 = vpow.pop %v2553
  %v2555 = vmul.f32 %v2549, 1.442695
  %v2556 = vpow.pop %v2555
  %v2557 = vmul.f32 %v2550, 1.442695
  %v2558 = vpow.pop %v2557
  %v2559 = vadd.f32 %v2552, 1.0
  %v2560 = vadd.f32 %v2554, 1.0
  %v2561 = vadd.f32 %v2556, 1.0
  %v2562 = vadd.f32 %v2558, 1.0
  %v2563 = vrcp.pop %v2559
  %v2564 = vmul.f32 1.0, %v2563
  %v2565 = vrcp.pop %v2560
  %v2566 = vmul.f32 1.0, %v2565
  %v2567 = vrcp.pop %v2561
  %v2568 = vmul.f32 1.0, %v2567
  %v2569 = vrcp.pop %v2562
  %v2570 = vmul.f32 1.0, %v2569
  %v2571 = vtanh.pop %v2543
  %v2572 = vtanh.pop %v2544
  %v2573 = vtanh.pop %v2545
  %v2574 = vtanh.pop %v2546
  %v2575 = vmul.f32 %v2564, %v2539
  %v2576 = vmul.f32 %v2566, %v2540
  %v2577 = vmul.f32 %v2568, %v2541
  %v2578 = vmul.f32 %v2570, %v2542
  %v2579 = vsub.f32 1.0, %v2564
  %v2580 = vsub.f32 1.0, %v2566
  %v2581 = vsub.f32 1.0, %v2568
  %v2582 = vsub.f32 1.0, %v2570
  %2587 = vrot.lane.b32.xlu0 %v2571, 96
  %v2588 = vpop.permute.xlu0 %2587
  %2589 = vrot.lane.b32.xlu0 %v2572, 96
  %v2590 = vpop.permute.xlu0 %2589
  %2591 = vrot.lane.b32.xlu0 %v2573, 96
  %v2592 = vpop.permute.xlu0 %2591
  %2593 = vrot.lane.b32.xlu0 %v2574, 96
  %v2594 = vpop.permute.xlu0 %2593
  %v2599 = vmul.f32 %v2579, %v2588
  %v2600 = vmul.f32 %v2580, %v2590
  %v2601 = vmul.f32 %v2581, %v2592
  %v2602 = vmul.f32 %v2582, %v2594
  %v2603 = vadd.f32 %v2575, %v2599
  %v2604 = vadd.f32 %v2576, %v2600
  %v2605 = vadd.f32 %v2577, %v2601
  %v2606 = vadd.f32 %v2578, %v2602
  %v2607 = vld [vmem:[#allocation2 + $0xc0] sm:$0xff]
  %v2608 = vld [vmem:[#allocation2 + $0xc8] sm:$0xff]
  %v2609 = vld [vmem:[#allocation2 + $0xd0] sm:$0xff]
  %v2610 = vld [vmem:[#allocation2 + $0xd8] sm:$0xff]
  %v2611 = vxor.u32 %v2607, 2147483648
  %v2612 = vxor.u32 %v2608, 2147483648
  %v2613 = vxor.u32 %v2609, 2147483648
  %v2614 = vxor.u32 %v2610, 2147483648
  %v2615 = vmul.f32 %v2611, 1.442695
  %v2616 = vpow.pop %v2615
  %v2617 = vmul.f32 %v2612, 1.442695
  %v2618 = vpow.pop %v2617
  %v2619 = vmul.f32 %v2613, 1.442695
  %v2620 = vpow.pop %v2619
  %v2621 = vmul.f32 %v2614, 1.442695
  %v2622 = vpow.pop %v2621
  %v2623 = vadd.f32 %v2616, 1.0
  %v2624 = vadd.f32 %v2618, 1.0
  %v2625 = vadd.f32 %v2620, 1.0
  %v2626 = vadd.f32 %v2622, 1.0
  %v2627 = vrcp.pop %v2623
  %v2628 = vmul.f32 1.0, %v2627
  %v2629 = vrcp.pop %v2624
  %v2630 = vmul.f32 1.0, %v2629
  %v2631 = vrcp.pop %v2625
  %v2632 = vmul.f32 1.0, %v2631
  %v2633 = vrcp.pop %v2626
  %v2634 = vmul.f32 1.0, %v2633
  %v2635 = vtanh.pop %v2607
  %v2636 = vtanh.pop %v2608
  %v2637 = vtanh.pop %v2609
  %v2638 = vtanh.pop %v2610
  %v2639 = vmul.f32 %v2628, %v2603
  %v2640 = vmul.f32 %v2630, %v2604
  %v2641 = vmul.f32 %v2632, %v2605
  %v2642 = vmul.f32 %v2634, %v2606
  %v2643 = vsub.f32 1.0, %v2628
  %v2644 = vsub.f32 1.0, %v2630
  %v2645 = vsub.f32 1.0, %v2632
  %v2646 = vsub.f32 1.0, %v2634
  %2651 = vrot.lane.b32.xlu0 %v2635, 96
  %v2652 = vpop.permute.xlu0 %2651
  %2653 = vrot.lane.b32.xlu0 %v2636, 96
  %v2654 = vpop.permute.xlu0 %2653
  %2655 = vrot.lane.b32.xlu0 %v2637, 96
  %v2656 = vpop.permute.xlu0 %2655
  %2657 = vrot.lane.b32.xlu0 %v2638, 96
  %v2658 = vpop.permute.xlu0 %2657
  %v2663 = vmul.f32 %v2643, %v2652
  %v2664 = vmul.f32 %v2644, %v2654
  %v2665 = vmul.f32 %v2645, %v2656
  %v2666 = vmul.f32 %v2646, %v2658
  %v2667 = vadd.f32 %v2639, %v2663
  %v2668 = vadd.f32 %v2640, %v2664
  %v2669 = vadd.f32 %v2641, %v2665
  %v2670 = vadd.f32 %v2642, %v2666
  %v2671 = vld [vmem:[#allocation2 + $0xe0] sm:$0xff]
  %v2672 = vld [vmem:[#allocation2 + $0xe8] sm:$0xff]
  %v2673 = vld [vmem:[#allocation2 + $0xf0] sm:$0xff]
  %v2674 = vld [vmem:[#allocation2 + $0xf8] sm:$0xff]
  %v2675 = vxor.u32 %v2671, 2147483648
  %v2676 = vxor.u32 %v2672, 2147483648
  %v2677 = vxor.u32 %v2673, 2147483648
  %v2678 = vxor.u32 %v2674, 2147483648
  %v2679 = vmul.f32 %v2675, 1.442695
  %v2680 = vpow.pop %v2679
  %v2681 = vmul.f32 %v2676, 1.442695
  %v2682 = vpow.pop %v2681
  %v2683 = vmul.f32 %v2677, 1.442695
  %v2684 = vpow.pop %v2683
  %v2685 = vmul.f32 %v2678, 1.442695
  %v2686 = vpow.pop %v2685
  %v2687 = vadd.f32 %v2680, 1.0
  %v2688 = vadd.f32 %v2682, 1.0
  %v2689 = vadd.f32 %v2684, 1.0
  %v2690 = vadd.f32 %v2686, 1.0
  %v2691 = vrcp.pop %v2687
  %v2692 = vmul.f32 1.0, %v2691
  %v2693 = vrcp.pop %v2688
  %v2694 = vmul.f32 1.0, %v2693
  %v2695 = vrcp.pop %v2689
  %v2696 = vmul.f32 1.0, %v2695
  %v2697 = vrcp.pop %v2690
  %v2698 = vmul.f32 1.0, %v2697
  %v2699 = vtanh.pop %v2671
  %v2700 = vtanh.pop %v2672
  %v2701 = vtanh.pop %v2673
  %v2702 = vtanh.pop %v2674
  %v2703 = vmul.f32 %v2692, %v2667
  %v2704 = vmul.f32 %v2694, %v2668
  %v2705 = vmul.f32 %v2696, %v2669
  %v2706 = vmul.f32 %v2698, %v2670
  %v2707 = vsub.f32 1.0, %v2692
  %v2708 = vsub.f32 1.0, %v2694
  %v2709 = vsub.f32 1.0, %v2696
  %v2710 = vsub.f32 1.0, %v2698
  %2715 = vrot.lane.b32.xlu0 %v2699, 96
  %v2716 = vpop.permute.xlu0 %2715
  %2717 = vrot.lane.b32.xlu0 %v2700, 96
  %v2718 = vpop.permute.xlu0 %2717
  %2719 = vrot.lane.b32.xlu0 %v2701, 96
  %v2720 = vpop.permute.xlu0 %2719
  %2721 = vrot.lane.b32.xlu0 %v2702, 96
  %v2722 = vpop.permute.xlu0 %2721
  %v2727 = vmul.f32 %v2707, %v2716
  %v2728 = vmul.f32 %v2708, %v2718
  %v2729 = vmul.f32 %v2709, %v2720
  %v2730 = vmul.f32 %v2710, %v2722
  %v2731 = vadd.f32 %v2703, %v2727
  %v2732 = vadd.f32 %v2704, %v2728
  %v2733 = vadd.f32 %v2705, %v2729
  %v2734 = vadd.f32 %v2706, %v2730
  %v2735 = vtanh.pop %v2731
  %v2736 = vtanh.pop %v2732
  %v2737 = vtanh.pop %v2733
  %v2738 = vtanh.pop %v2734
  %v2739 = vmul.f32 %v2692, %v2735
  %v2740 = vmul.f32 %v2694, %v2736
  %v2741 = vmul.f32 %v2696, %v2737
  %v2742 = vmul.f32 %v2698, %v2738
  %v2743 = vld [vmem:[#allocation3 + $0xe0] sm:$0xff]
  %v2744 = vld [vmem:[#allocation3 + $0xe8] sm:$0xff]
  %v2745 = vld [vmem:[#allocation3 + $0xf0] sm:$0xff]
  %v2746 = vld [vmem:[#allocation3 + $0xf8] sm:$0xff]
  %2751 = vrot.lane.b32.xlu0 %v2739, 32
  %v2752 = vpop.permute.xlu0 %2751
  %2753 = vrot.lane.b32.xlu0 %v2740, 32
  %v2754 = vpop.permute.xlu0 %2753
  %2755 = vrot.lane.b32.xlu0 %v2741, 32
  %v2756 = vpop.permute.xlu0 %2755
  %2757 = vrot.lane.b32.xlu0 %v2742, 32
  %v2758 = vpop.permute.xlu0 %2757
  %v2763 = vsel %vm851, %v2743, %v2752
  %v2764 = vsel %vm851, %v2744, %v2754
  %v2765 = vsel %vm851, %v2745, %v2756
  %v2766 = vsel %vm851, %v2746, %v2758
  %v2767 = vpack.c.bf16 %v2764, %v2763
  %v2768 = vpack.c.bf16 %v2766, %v2765
  %v2769 = vld [vmem:[%s2 + $0x18] sm:$0xf]
  %v2770 = vld [vmem:[%s2 + $0x1c] sm:$0xf]
  %v2771 = vld [vmem:[%s2 + $0x20] sm:$0xf]
  %v2772 = vld [vmem:[%s2 + $0x24] sm:$0xf]
  %v2773 = vld [vmem:[%s2 + $0x28] sm:$0xf]
  %v2774 = vld [vmem:[%s2 + $0x2c] sm:$0xf]
  %v2775 = vld [vmem:[%s2 + $0x30] sm:$0xf]
  %v2776 = vld [vmem:[%s2 + $0x34] sm:$0xf]
  %v2777 = vld [vmem:[%s3 + $0x100] sm:$0x1]
  %v2778 = vlaneseq
  %v2779 = vshrl.u32 %v2778, 7
  %v2780 = vsub.s32 0, %v2779
  %v2781 = vrot.slane %v2777, %v2780
  %v2790 = vunpack.c.l.b16 %v2769
  %v2791 = vunpack.c.l.b16 %v2770
  %v2792 = vunpack.c.l.b16 %v2771
  %v2793 = vunpack.c.l.b16 %v2772
  %v2794 = vunpack.c.l.b16 %v2773
  %v2795 = vunpack.c.l.b16 %v2774
  %v2796 = vunpack.c.l.b16 %v2775
  %v2797 = vunpack.c.l.b16 %v2776
  %v2798 = vpack.c.b16 %v2791, %v2790
  %v2799 = vpack.c.b16 %v2793, %v2792
  %v2800 = vpack.c.b16 %v2795, %v2794
  %v2801 = vpack.c.b16 %v2797, %v2796
  %v2807 = vsel %vm746, %v2767, 0
  %v2810 = vsel %vm746, %v2768, 0
  %2812 = vmatprep.subr.bf16.mxu0 0
  %2813 = vmatpush1.bf16.msra.mxu0 %v2798
  %2814 = vmatprep.subr.bf16.mxu0 0
  %2815 = vmatpush1.bf16.msra.mxu0 %v2799
  %2816 = vmatprep.subr.bf16.mxu0 0
  %2817 = vmatpush1.bf16.msra.mxu0 %v2800
  %2818 = vmatprep.subr.bf16.mxu0 0
  %2819 = vmatpush1.bf16.msra.mxu0 %v2801
  %2820 = vmatprep.subr.bf16.mxu0 0
  %2821 = vmatpush1.bf16.msra.mxu0 0
  %2822 = vmatprep.subr.bf16.mxu0 0
  %2823 = vmatpush1.bf16.msra.mxu0 0
  %2824 = vmatprep.subr.bf16.mxu0 0
  %2825 = vmatpush1.bf16.msra.mxu0 0
  %2826 = vmatprep.subr.bf16.mxu0 0
  %2827 = vmatpush1.bf16.msra.mxu0 0
  %2828 = vmatprep.subr.bf16.mxu0 0
  %2829 = vmatpush1.bf16.msra.mxu0 0
  %2830 = vmatprep.subr.bf16.mxu0 0
  %2831 = vmatpush1.bf16.msra.mxu0 0
  %2832 = vmatprep.subr.bf16.mxu0 0
  %2833 = vmatpush1.bf16.msra.mxu0 0
  %2834 = vmatprep.subr.bf16.mxu0 0
  %2835 = vmatpush1.bf16.msra.mxu0 0
  %2836 = vmatprep.subr.bf16.mxu0 0
  %2837 = vmatpush1.bf16.msra.mxu0 0
  %2838 = vmatprep.subr.bf16.mxu0 0
  %2839 = vmatpush1.bf16.msra.mxu0 0
  %2840 = vmatprep.subr.bf16.mxu0 0
  %2841 = vmatpush1.bf16.msra.mxu0 0
  %2842 = vmatprep.subr.bf16.mxu0 0
  %2843 = vmatpush1.bf16.msra.mxu0 0
  %2844 = vmatprep.mubr.bf16.mxu0 0
  %2845 = vmatmul.mubr.bf16.gmra.mrb[0].mxu0 %v2807
  %v2846 = vpop.f32.mrb[0].mxu0
  %v2847 = vadd.f32 %v2781, %v2846
  %v2848 = vpop.f32.mrb[0].mxu0
  %v2849 = vpop.f32.mrb[0].mxu0
  %v2850 = vadd.f32 %v2781, %v2849
  %v2851 = vpop.f32.mrb[0].mxu0
  %2852 = vmatprep.mubr.bf16.mxu0 0
  %2853 = vmatmul.mubr.bf16.gmra.mrb[0].mxu0 %v2810
  %v2854 = vpop.f32.mrb[0].mxu0
  %v2855 = vadd.f32 %v2781, %v2854
  %v2856 = vpop.f32.mrb[0].mxu0
  %v2857 = vpop.f32.mrb[0].mxu0
  %v2858 = vadd.f32 %v2781, %v2857
  %v2859 = vpop.f32.mrb[0].mxu0
  %2860 = vdwg.mxu0
  %2861 = vst [vmem:[%s4] sm:$0xff] %v2847
  %2862 = vst [vmem:[%s4 + $0x8] sm:$0xff] %v2850
  %2863 = vst [vmem:[%s4 + $0x10] sm:$0xff] %v2855
  %2864 = vst [vmem:[%s4 + $0x18] sm:$0xff] %v2858
  // Predicated region
  $region18: #{_lambda_.1} parent=0 // pred_check
    _
  $region19: #{_lambda_.1} parent=0 // pred_check_branch
    %2866 = sbr.rel (0) target = $region21
  $region20: #{_lambda_.1} parent=0 // pred_region
    _
  $region21: #{_lambda_.1} parent=0 // pred_fallthru
    _
  // Predicated region
  $region22: #{_lambda_.1} parent=0 // pred_check
    _
  $region23: #{_lambda_.1} parent=0 // pred_check_branch
    %2868 = sbr.rel (0) target = $region25
  $region24: #{_lambda_.1} parent=0 // pred_region
    _
  $region25: #{_lambda_.1} parent=0 // pred_fallthru
    _

</llo_original>
